<compile_context>
chip_gen: v6e
topology: v6e:2x2x1
jax: 0.10.0
libtpu: 0.0.40
codegen_flags: <defaults>
</compile_context>

<pallas_src>
import jax
import jax.numpy as jnp
from jax.experimental import pallas as pl
from jax.experimental.pallas import tpu as pltpu

SOS_IDX = 0  # stand-in for the module-global SOS token id in the reference code


# ----------------------------------------------------------------------------
# Encoder GRU: one gridless pallas_call; the recurrence runs as an unrolled
# lax.fori_loop over the in-VMEM (S, B, H) embedding block (time-major so each
# step is a plain (B, H) tile).  Weights are stored transposed (in, 3H) so each
# projection is a single MXU dot.  PyTorch gate order [r, z, n].
# ----------------------------------------------------------------------------
def _enc_kernel(emb_ref, wih_ref, whh_ref, bih_ref, bhh_ref, out_ref, hN_ref):
    S, B, H = emb_ref.shape
    wih = wih_ref[...]
    whh = whh_ref[...]
    bih = bih_ref[...]
    bhh = bhh_ref[...]

    def step(t, h):
        x = emb_ref[t]                                            # (B, H)
        gi = jnp.dot(x, wih, preferred_element_type=jnp.float32) + bih
        gh = jnp.dot(h, whh, preferred_element_type=jnp.float32) + bhh
        r = jax.nn.sigmoid(gi[:, :H] + gh[:, :H])
        z = jax.nn.sigmoid(gi[:, H:2 * H] + gh[:, H:2 * H])
        n = jnp.tanh(gi[:, 2 * H:] + r * gh[:, 2 * H:])
        h_new = (1.0 - z) * n + z * h
        out_ref[t] = h_new                                        # enc output at t
        return h_new

    h_last = jax.lax.fori_loop(0, S, step, jnp.zeros((B, H), jnp.float32),
                               unroll=True)
    hN_ref[...] = h_last                                          # final hidden (once)


def encoder_gru(emb_sbh, wih, whh, bih, bhh):
    S, B, H = emb_sbh.shape
    vmem = pl.BlockSpec(memory_space=pltpu.MemorySpace.VMEM)
    return pl.pallas_call(
        _enc_kernel,
        out_shape=(jax.ShapeDtypeStruct((S, B, H), jnp.float32),
                   jax.ShapeDtypeStruct((B, H), jnp.float32)),
        in_specs=[vmem] * 5,
        out_specs=(vmem, vmem),
    )(emb_sbh, wih, whh, bih, bhh)


# ----------------------------------------------------------------------------
# Fused greedy decoder: grid=(T,) sequential steps in a single pallas_call.
# Scratch (persists across grid steps): decoder hidden h, one-hot feedback
# token, and the hoisted Ua(enc_out)+b key projection (computed once at t==0).
# ----------------------------------------------------------------------------
def _dec_kernel(enc_h_ref, enc2d_ref, emb_tab_ref,
                wa_w_ref, wa_b_ref, ua_w_ref, ua_b_ref, va_w_ref, va_b_ref,
                wih_e_ref, wih_c_ref, whh_ref, bih_ref, bhh_ref,
                wout_ref, bout_ref,
                logits_ref, attn_ref, hT_ref,
                h_scr, oh_scr, kproj_scr):
    t = pl.program_id(0)
    B, H = h_scr.shape
    V = oh_scr.shape[1]
    S = attn_ref.shape[2]

    @pl.when(t == 0)
    def _():
        # initial decoder hidden = encoder final hidden
        h_scr[...] = enc_h_ref[...]
        # greedy-feedback token kept as a one-hot row; start with SOS
        col0 = jax.lax.broadcasted_iota(jnp.int32, (B, V), 1)
        oh_scr[...] = (col0 == SOS_IDX).astype(jnp.float32)
        # hoisted key projection Ua(enc_out) + b_ua: invariant across all steps
        kproj_scr[...] = (jnp.dot(enc2d_ref[...], ua_w_ref[...],
                                  preferred_element_type=jnp.float32)
                          + ua_b_ref[...])

    h = h_scr[...]                                                # (B, H)
    # embedding lookup of the feedback token as a one-hot (B,V)x(V,H) MXU matmul
    emb = jnp.dot(oh_scr[...], emb_tab_ref[...],
                  preferred_element_type=jnp.float32)             # (B, H)

    enc3d = enc2d_ref[...].reshape(B, S, H)                       # keys
    kproj = kproj_scr[...].reshape(B, S, H)

    # --- attention: scores = Va(tanh(Wa(query) + Ua(keys))) ---
    q = jnp.dot(h, wa_w_ref[...], preferred_element_type=jnp.float32) + wa_b_ref[...]
    e = jnp.tanh(q[:, None, :] + kproj)                           # (B, S, H)
    va = va_w_ref[...][None]                                      # (1, 1, H)
    scores = jnp.sum(e * va, axis=-1) + va_b_ref[0, 0]            # (B, S)
    m = jnp.max(scores, axis=-1, keepdims=True)
    p = jnp.exp(scores - m)
    w = p / jnp.sum(p, axis=-1, keepdims=True)                    # softmax (B, S)
    # context = bmm(weights, keys) as an explicit batched matmul (MXU)
    context = jnp.einsum('bqs,bsh->bqh', w[:, None, :], enc3d,
                         preferred_element_type=jnp.float32).reshape(B, H)

    # --- GRU cell on cat(embedded, context); W_ih split row-wise, one acc ---
    gi = (jnp.dot(emb, wih_e_ref[...], preferred_element_type=jnp.float32)
          + jnp.dot(context, wih_c_ref[...], preferred_element_type=jnp.float32)
          + bih_ref[...])
    gh = jnp.dot(h, whh_ref[...], preferred_element_type=jnp.float32) + bhh_ref[...]
    r = jax.nn.sigmoid(gi[:, :H] + gh[:, :H])
    z = jax.nn.sigmoid(gi[:, H:2 * H] + gh[:, H:2 * H])
    n = jnp.tanh(gi[:, 2 * H:] + r * gh[:, 2 * H:])
    h_new = (1.0 - z) * n + z * h

    logits = jnp.dot(h_new, wout_ref[...],
                     preferred_element_type=jnp.float32) + bout_ref[...]

    logits_ref[0] = logits
    attn_ref[0] = w
    h_scr[...] = h_new

    # greedy feedback = one-hot(argmax(logits)); lowest index wins ties,
    # matching torch .topk(1)
    col = jax.lax.broadcasted_iota(jnp.int32, (B, V), 1)
    mx = jnp.max(logits, axis=-1, keepdims=True)
    first_max = jnp.min(jnp.where(logits >= mx, col, V), axis=-1, keepdims=True)
    oh_scr[...] = (col == first_max).astype(jnp.float32)

    @pl.when(t == pl.num_programs(0) - 1)
    def _():
        hT_ref[...] = h_new


def greedy_decode(T, enc_h, enc2d, emb_tab, wa_w, wa_b, ua_w, ua_b, va_w, va_b,
                  wih_e, wih_c, whh, bih, bhh, wout, bout):
    B, H = enc_h.shape
    BS = enc2d.shape[0]
    S = BS // B
    V = wout.shape[1]

    def full(shape):
        zeros = (0,) * len(shape)
        return pl.BlockSpec(shape, lambda t, _z=zeros: _z)   # loaded once (constant index)

    return pl.pallas_call(
        _dec_kernel,
        out_shape=(jax.ShapeDtypeStruct((T, B, V), jnp.float32),
                   jax.ShapeDtypeStruct((T, B, S), jnp.float32),
                   jax.ShapeDtypeStruct((B, H), jnp.float32)),
        grid_spec=pltpu.PrefetchScalarGridSpec(
            num_scalar_prefetch=0,
            grid=(T,),
            in_specs=[
                full((B, H)),                  # encoder final hidden
                full((BS, H)),                 # encoder outputs (keys), flattened
                full((V, H)),                  # decoder embedding table
                full((H, H)), full((1, H)),    # Wa
                full((H, H)), full((1, H)),    # Ua
                full((1, H)), full((1, 1)),    # Va
                full((H, 3 * H)),              # W_ih rows acting on embedded
                full((H, 3 * H)),              # W_ih rows acting on context
                full((H, 3 * H)),              # W_hh
                full((1, 3 * H)), full((1, 3 * H)),
                full((H, V)), full((1, V)),    # output projection
            ],
            out_specs=[
                pl.BlockSpec((1, B, V), lambda t: (t, 0, 0)),
                pl.BlockSpec((1, B, S), lambda t: (t, 0, 0)),
                pl.BlockSpec((B, H), lambda t: (0, 0)),
            ],
            scratch_shapes=[
                pltpu.VMEM((B, H), jnp.float32),    # decoder hidden carried over steps
                pltpu.VMEM((B, V), jnp.float32),    # one-hot feedback token
                pltpu.VMEM((BS, H), jnp.float32),   # hoisted Ua(enc_out)+b
            ],
        ),
        compiler_params=pltpu.CompilerParams(dimension_semantics=("arbitrary",)),
    )(enc_h, enc2d, emb_tab, wa_w, wa_b, ua_w, ua_b, va_w, va_b,
      wih_e, wih_c, whh, bih, bhh, wout, bout)


# ----------------------------------------------------------------------------
# Whole forward pass in ONE jit: embedding gather -> encoder kernel ->
# fused greedy-decode kernel -> log_softmax / layout transposes.
# ----------------------------------------------------------------------------
def _forward_impl(params, x, T):
    (enc_emb, enc_wih, enc_whh, enc_bih, enc_bhh,
     dec_emb, wa_w, wa_b, ua_w, ua_b, va_w, va_b,
     wih_e, wih_c, whh, bih, bhh, out_w, out_b) = params
    B, S = x.shape
    H = enc_emb.shape[1]

    # ---- Encoder (dropout p=0 -> identity) ----
    emb_sbh = jnp.transpose(jnp.take(enc_emb, x, axis=0), (1, 0, 2))  # (S, B, H)
    enc_out_sbh, enc_h = encoder_gru(emb_sbh, enc_wih, enc_whh, enc_bih, enc_bhh)
    enc2d = jnp.transpose(enc_out_sbh, (1, 0, 2)).reshape(B * S, H)

    # ---- Decoder: entire greedy loop fused into one kernel launch ----
    logits_tbv, attn_tbs, hT = greedy_decode(
        T, enc_h, enc2d, dec_emb, wa_w, wa_b, ua_w, ua_b, va_w, va_b,
        wih_e, wih_c, whh, bih, bhh, out_w, out_b)

    dec_out = jax.nn.log_softmax(jnp.transpose(logits_tbv, (1, 0, 2)), axis=-1)
    attn = jnp.transpose(attn_tbs, (1, 0, 2))
    return dec_out, hT[None], attn                                 # (B,T,V), (1,B,H), (B,T,S)


_forward = jax.jit(_forward_impl, static_argnums=2)


# ----------------------------------------------------------------------------
# Model wrapper with deterministic synthetic parameters.
# ----------------------------------------------------------------------------
class DerivativeSolverPallas:
    def __init__(self, n_tokens=32, hidden_dim=32, seed=0):
        H, V = hidden_dim, n_tokens
        self.H, self.V = H, V
        base = jax.random.PRNGKey(seed)

        def nrm(i, shape, scale=0.1):
            return (scale * jax.random.normal(jax.random.fold_in(base, i), shape)
                    ).astype(jnp.float32)

        # Encoder: embedding + GRU(H -> H)   (weights transposed: (in, 3H))
        enc_emb = nrm(0, (V, H))
        enc_wih = nrm(1, (H, 3 * H))
        enc_whh = nrm(2, (H, 3 * H))
        enc_bih = nrm(3, (1, 3 * H))
        enc_bhh = nrm(4, (1, 3 * H))
        # Decoder: embedding + attention + GRU(2H -> H) + out(H -> V)
        dec_emb = nrm(5, (V, H))
        wa_w = nrm(6, (H, H)); wa_b = nrm(7, (1, H))
        ua_w = nrm(8, (H, H)); ua_b = nrm(9, (1, H))
        va_w = nrm(10, (1, H)); va_b = nrm(11, (1, 1))
        wih = nrm(12, (2 * H, 3 * H))
        wih_e, wih_c = wih[:H], wih[H:]    # (embedded | context) halves of cat input
        whh = nrm(13, (H, 3 * H))
        bih = nrm(14, (1, 3 * H))
        bhh = nrm(15, (1, 3 * H))
        out_w = nrm(16, (H, V))
        out_b = nrm(17, (1, V))
        self.params = (enc_emb, enc_wih, enc_whh, enc_bih, enc_bhh,
                       dec_emb, wa_w, wa_b, ua_w, ua_b, va_w, va_b,
                       wih_e, wih_c, whh, bih, bhh, out_w, out_b)

    def __call__(self, x, y=None):
        # tf_ratio = 0.0 -> teacher forcing never fires; greedy decoding only.
        T = int(y.shape[-1]) if y is not None else 32
        return _forward(self.params, x, T)


if __name__ == "__main__":
    key = jax.random.PRNGKey(0)
    B, S, H, V = 2, 8, 32, 32
    T = 6
    x = jax.random.randint(jax.random.fold_in(key, 100), (B, S), 0, V, dtype=jnp.int32)
    y = jax.random.randint(jax.random.fold_in(key, 101), (B, T), 0, V, dtype=jnp.int32)

    model = DerivativeSolverPallas(n_tokens=V, hidden_dim=H, seed=0)
    dec_out, dec_hidden, attn = model(x, y)
    jax.block_until_ready((dec_out, dec_hidden, attn))

    assert dec_out.shape == (B, T, V)
    assert dec_hidden.shape == (1, B, H)
    assert attn.shape == (B, T, S)
    assert bool(jnp.all(jnp.isfinite(dec_out)))
    # log_softmax rows sum to 1 in prob space; attention rows sum to 1
    assert bool(jnp.allclose(jnp.sum(jnp.exp(dec_out), axis=-1), 1.0, atol=1e-4))
    assert bool(jnp.allclose(jnp.sum(attn, axis=-1), 1.0, atol=1e-5))
    print("KERNEL_OK")
</pallas_src>

<mosaic_0001>
module attributes {stable_mosaic.version = 11 : i64} {
  func.func @_enc_kernel(%arg0: memref<8x2x32xf32, #tpu.memory_space<vmem>>, %arg1: memref<32x96xf32, #tpu.memory_space<vmem>>, %arg2: memref<32x96xf32, #tpu.memory_space<vmem>>, %arg3: memref<1x96xf32, #tpu.memory_space<vmem>>, %arg4: memref<1x96xf32, #tpu.memory_space<vmem>>, %arg5: memref<8x2x32xf32, #tpu.memory_space<vmem>>, %arg6: memref<2x32xf32, #tpu.memory_space<vmem>>) attributes {dimension_semantics = [], scalar_prefetch = 0 : i64, scratch_operands = 0 : i64, tpu.core_type = #tpu.core_type<tc>} {
    %c0 = arith.constant 0 : index
    %c0_0 = arith.constant 0 : index
    %0 = vector.load %arg1[%c0, %c0_0] : memref<32x96xf32, #tpu.memory_space<vmem>>, vector<32x96xf32>
    %c0_1 = arith.constant 0 : index
    %c0_2 = arith.constant 0 : index
    %1 = vector.load %arg2[%c0_1, %c0_2] : memref<32x96xf32, #tpu.memory_space<vmem>>, vector<32x96xf32>
    %c0_3 = arith.constant 0 : index
    %c0_4 = arith.constant 0 : index
    %2 = vector.load %arg3[%c0_3, %c0_4] : memref<1x96xf32, #tpu.memory_space<vmem>>, vector<1x96xf32>
    %c0_5 = arith.constant 0 : index
    %c0_6 = arith.constant 0 : index
    %3 = vector.load %arg4[%c0_5, %c0_6] : memref<1x96xf32, #tpu.memory_space<vmem>>, vector<1x96xf32>
    %cst = arith.constant 0.000000e+00 : f32
    %4 = vector.broadcast %cst : f32 to vector<2x32xf32>
    %c0_i32 = arith.constant 0 : i32
    %5 = arith.index_cast %c0_i32 : i32 to index
    %c0_7 = arith.constant 0 : index
    %c0_8 = arith.constant 0 : index
    %6 = vector.load %arg0[%5, %c0_7, %c0_8] : memref<8x2x32xf32, #tpu.memory_space<vmem>>, vector<1x2x32xf32>
    %7 = vector.shape_cast %6 : vector<1x2x32xf32> to vector<2x32xf32>
    %cst_9 = arith.constant dense<0.000000e+00> : vector<2x96xf32>
    %8 = tpu.matmul %7, %0, %cst_9 {dimension_numbers = #tpu.dot_dimension_numbers<[1], [0], [0], [1], [0, 0, 1, 1], [], []>} : vector<2x32xf32>, vector<32x96xf32>, vector<2x96xf32> -> vector<2x96xf32>
    %9 = vector.broadcast %2 : vector<1x96xf32> to vector<2x96xf32>
    %10 = arith.addf %8, %9 : vector<2x96xf32>
    %cst_10 = arith.constant dense<0.000000e+00> : vector<2x96xf32>
    %11 = tpu.matmul %4, %1, %cst_10 {dimension_numbers = #tpu.dot_dimension_numbers<[1], [0], [0], [1], [0, 0, 1, 1], [], []>} : vector<2x32xf32>, vector<32x96xf32>, vector<2x96xf32> -> vector<2x96xf32>
    %12 = vector.broadcast %3 : vector<1x96xf32> to vector<2x96xf32>
    %13 = arith.addf %11, %12 : vector<2x96xf32>
    %14 = vector.extract_strided_slice %10 {offsets = [0, 0], sizes = [2, 32], strides = [1, 1]} : vector<2x96xf32> to vector<2x32xf32>
    %15 = vector.extract_strided_slice %13 {offsets = [0, 0], sizes = [2, 32], strides = [1, 1]} : vector<2x96xf32> to vector<2x32xf32>
    %16 = arith.addf %14, %15 : vector<2x32xf32>
    %17 = arith.negf %16 : vector<2x32xf32>
    %18 = math.exp %17 : vector<2x32xf32>
    %cst_11 = arith.constant 1.000000e+00 : f32
    %19 = vector.broadcast %cst_11 : f32 to vector<2x32xf32>
    %20 = arith.addf %19, %18 : vector<2x32xf32>
    %21 = arith.divf %19, %20 : vector<2x32xf32>
    %22 = vector.extract_strided_slice %10 {offsets = [0, 32], sizes = [2, 32], strides = [1, 1]} : vector<2x96xf32> to vector<2x32xf32>
    %23 = vector.extract_strided_slice %13 {offsets = [0, 32], sizes = [2, 32], strides = [1, 1]} : vector<2x96xf32> to vector<2x32xf32>
    %24 = arith.addf %22, %23 : vector<2x32xf32>
    %25 = arith.negf %24 : vector<2x32xf32>
    %26 = math.exp %25 : vector<2x32xf32>
    %cst_12 = arith.constant 1.000000e+00 : f32
    %27 = vector.broadcast %cst_12 : f32 to vector<2x32xf32>
    %28 = arith.addf %27, %26 : vector<2x32xf32>
    %29 = arith.divf %27, %28 : vector<2x32xf32>
    %30 = vector.extract_strided_slice %10 {offsets = [0, 64], sizes = [2, 32], strides = [1, 1]} : vector<2x96xf32> to vector<2x32xf32>
    %31 = vector.extract_strided_slice %13 {offsets = [0, 64], sizes = [2, 32], strides = [1, 1]} : vector<2x96xf32> to vector<2x32xf32>
    %32 = arith.mulf %21, %31 : vector<2x32xf32>
    %33 = arith.addf %30, %32 : vector<2x32xf32>
    %34 = math.tanh %33 : vector<2x32xf32>
    %cst_13 = arith.constant 1.000000e+00 : f32
    %35 = vector.broadcast %cst_13 : f32 to vector<2x32xf32>
    %36 = arith.subf %35, %29 : vector<2x32xf32>
    %37 = arith.mulf %36, %34 : vector<2x32xf32>
    %38 = arith.mulf %29, %4 : vector<2x32xf32>
    %39 = arith.addf %37, %38 : vector<2x32xf32>
    %40 = arith.index_cast %c0_i32 : i32 to index
    %c0_14 = arith.constant 0 : index
    %c0_15 = arith.constant 0 : index
    %41 = vector.load %arg5[%40, %c0_14, %c0_15] : memref<8x2x32xf32, #tpu.memory_space<vmem>>, vector<1x2x32xf32>
    %42 = vector.shape_cast %41 : vector<1x2x32xf32> to vector<2x32xf32>
    %43 = vector.shape_cast %39 : vector<2x32xf32> to vector<1x2x32xf32>
    tpu.vector_store %arg5[%40, %c0_14, %c0_15], %43 {strides = array<i32>} : memref<8x2x32xf32, #tpu.memory_space<vmem>>, vector<1x2x32xf32>,
    %c1_i32 = arith.constant 1 : i32
    %44 = arith.index_cast %c1_i32 : i32 to index
    %c0_16 = arith.constant 0 : index
    %c0_17 = arith.constant 0 : index
    %45 = vector.load %arg0[%44, %c0_16, %c0_17] : memref<8x2x32xf32, #tpu.memory_space<vmem>>, vector<1x2x32xf32>
    %46 = vector.shape_cast %45 : vector<1x2x32xf32> to vector<2x32xf32>
    %cst_18 = arith.constant dense<0.000000e+00> : vector<2x96xf32>
    %47 = tpu.matmul %46, %0, %cst_18 {dimension_numbers = #tpu.dot_dimension_numbers<[1], [0], [0], [1], [0, 0, 1, 1], [], []>} : vector<2x32xf32>, vector<32x96xf32>, vector<2x96xf32> -> vector<2x96xf32>
    %48 = vector.broadcast %2 : vector<1x96xf32> to vector<2x96xf32>
    %49 = arith.addf %47, %48 : vector<2x96xf32>
    %cst_19 = arith.constant dense<0.000000e+00> : vector<2x96xf32>
    %50 = tpu.matmul %39, %1, %cst_19 {dimension_numbers = #tpu.dot_dimension_numbers<[1], [0], [0], [1], [0, 0, 1, 1], [], []>} : vector<2x32xf32>, vector<32x96xf32>, vector<2x96xf32> -> vector<2x96xf32>
    %51 = vector.broadcast %3 : vector<1x96xf32> to vector<2x96xf32>
    %52 = arith.addf %50, %51 : vector<2x96xf32>
    %53 = vector.extract_strided_slice %49 {offsets = [0, 0], sizes = [2, 32], strides = [1, 1]} : vector<2x96xf32> to vector<2x32xf32>
    %54 = vector.extract_strided_slice %52 {offsets = [0, 0], sizes = [2, 32], strides = [1, 1]} : vector<2x96xf32> to vector<2x32xf32>
    %55 = arith.addf %53, %54 : vector<2x32xf32>
    %56 = arith.negf %55 : vector<2x32xf32>
    %57 = math.exp %56 : vector<2x32xf32>
    %cst_20 = arith.constant 1.000000e+00 : f32
    %58 = vector.broadcast %cst_20 : f32 to vector<2x32xf32>
    %59 = arith.addf %58, %57 : vector<2x32xf32>
    %60 = arith.divf %58, %59 : vector<2x32xf32>
    %61 = vector.extract_strided_slice %49 {offsets = [0, 32], sizes = [2, 32], strides = [1, 1]} : vector<2x96xf32> to vector<2x32xf32>
    %62 = vector.extract_strided_slice %52 {offsets = [0, 32], sizes = [2, 32], strides = [1, 1]} : vector<2x96xf32> to vector<2x32xf32>
    %63 = arith.addf %61, %62 : vector<2x32xf32>
    %64 = arith.negf %63 : vector<2x32xf32>
    %65 = math.exp %64 : vector<2x32xf32>
    %cst_21 = arith.constant 1.000000e+00 : f32
    %66 = vector.broadcast %cst_21 : f32 to vector<2x32xf32>
    %67 = arith.addf %66, %65 : vector<2x32xf32>
    %68 = arith.divf %66, %67 : vector<2x32xf32>
    %69 = vector.extract_strided_slice %49 {offsets = [0, 64], sizes = [2, 32], strides = [1, 1]} : vector<2x96xf32> to vector<2x32xf32>
    %70 = vector.extract_strided_slice %52 {offsets = [0, 64], sizes = [2, 32], strides = [1, 1]} : vector<2x96xf32> to vector<2x32xf32>
    %71 = arith.mulf %60, %70 : vector<2x32xf32>
    %72 = arith.addf %69, %71 : vector<2x32xf32>
    %73 = math.tanh %72 : vector<2x32xf32>
    %cst_22 = arith.constant 1.000000e+00 : f32
    %74 = vector.broadcast %cst_22 : f32 to vector<2x32xf32>
    %75 = arith.subf %74, %68 : vector<2x32xf32>
    %76 = arith.mulf %75, %73 : vector<2x32xf32>
    %77 = arith.mulf %68, %39 : vector<2x32xf32>
    %78 = arith.addf %76, %77 : vector<2x32xf32>
    %79 = arith.index_cast %c1_i32 : i32 to index
    %c0_23 = arith.constant 0 : index
    %c0_24 = arith.constant 0 : index
    %80 = vector.load %arg5[%79, %c0_23, %c0_24] : memref<8x2x32xf32, #tpu.memory_space<vmem>>, vector<1x2x32xf32>
    %81 = vector.shape_cast %80 : vector<1x2x32xf32> to vector<2x32xf32>
    %82 = vector.shape_cast %78 : vector<2x32xf32> to vector<1x2x32xf32>
    tpu.vector_store %arg5[%79, %c0_23, %c0_24], %82 {strides = array<i32>} : memref<8x2x32xf32, #tpu.memory_space<vmem>>, vector<1x2x32xf32>,
    %c2_i32 = arith.constant 2 : i32
    %83 = arith.index_cast %c2_i32 : i32 to index
    %c0_25 = arith.constant 0 : index
    %c0_26 = arith.constant 0 : index
    %84 = vector.load %arg0[%83, %c0_25, %c0_26] : memref<8x2x32xf32, #tpu.memory_space<vmem>>, vector<1x2x32xf32>
    %85 = vector.shape_cast %84 : vector<1x2x32xf32> to vector<2x32xf32>
    %cst_27 = arith.constant dense<0.000000e+00> : vector<2x96xf32>
    %86 = tpu.matmul %85, %0, %cst_27 {dimension_numbers = #tpu.dot_dimension_numbers<[1], [0], [0], [1], [0, 0, 1, 1], [], []>} : vector<2x32xf32>, vector<32x96xf32>, vector<2x96xf32> -> vector<2x96xf32>
    %87 = vector.broadcast %2 : vector<1x96xf32> to vector<2x96xf32>
    %88 = arith.addf %86, %87 : vector<2x96xf32>
    %cst_28 = arith.constant dense<0.000000e+00> : vector<2x96xf32>
    %89 = tpu.matmul %78, %1, %cst_28 {dimension_numbers = #tpu.dot_dimension_numbers<[1], [0], [0], [1], [0, 0, 1, 1], [], []>} : vector<2x32xf32>, vector<32x96xf32>, vector<2x96xf32> -> vector<2x96xf32>
    %90 = vector.broadcast %3 : vector<1x96xf32> to vector<2x96xf32>
    %91 = arith.addf %89, %90 : vector<2x96xf32>
    %92 = vector.extract_strided_slice %88 {offsets = [0, 0], sizes = [2, 32], strides = [1, 1]} : vector<2x96xf32> to vector<2x32xf32>
    %93 = vector.extract_strided_slice %91 {offsets = [0, 0], sizes = [2, 32], strides = [1, 1]} : vector<2x96xf32> to vector<2x32xf32>
    %94 = arith.addf %92, %93 : vector<2x32xf32>
    %95 = arith.negf %94 : vector<2x32xf32>
    %96 = math.exp %95 : vector<2x32xf32>
    %cst_29 = arith.constant 1.000000e+00 : f32
    %97 = vector.broadcast %cst_29 : f32 to vector<2x32xf32>
    %98 = arith.addf %97, %96 : vector<2x32xf32>
    %99 = arith.divf %97, %98 : vector<2x32xf32>
    %100 = vector.extract_strided_slice %88 {offsets = [0, 32], sizes = [2, 32], strides = [1, 1]} : vector<2x96xf32> to vector<2x32xf32>
    %101 = vector.extract_strided_slice %91 {offsets = [0, 32], sizes = [2, 32], strides = [1, 1]} : vector<2x96xf32> to vector<2x32xf32>
    %102 = arith.addf %100, %101 : vector<2x32xf32>
    %103 = arith.negf %102 : vector<2x32xf32>
    %104 = math.exp %103 : vector<2x32xf32>
    %cst_30 = arith.constant 1.000000e+00 : f32
    %105 = vector.broadcast %cst_30 : f32 to vector<2x32xf32>
    %106 = arith.addf %105, %104 : vector<2x32xf32>
    %107 = arith.divf %105, %106 : vector<2x32xf32>
    %108 = vector.extract_strided_slice %88 {offsets = [0, 64], sizes = [2, 32], strides = [1, 1]} : vector<2x96xf32> to vector<2x32xf32>
    %109 = vector.extract_strided_slice %91 {offsets = [0, 64], sizes = [2, 32], strides = [1, 1]} : vector<2x96xf32> to vector<2x32xf32>
    %110 = arith.mulf %99, %109 : vector<2x32xf32>
    %111 = arith.addf %108, %110 : vector<2x32xf32>
    %112 = math.tanh %111 : vector<2x32xf32>
    %cst_31 = arith.constant 1.000000e+00 : f32
    %113 = vector.broadcast %cst_31 : f32 to vector<2x32xf32>
    %114 = arith.subf %113, %107 : vector<2x32xf32>
    %115 = arith.mulf %114, %112 : vector<2x32xf32>
    %116 = arith.mulf %107, %78 : vector<2x32xf32>
    %117 = arith.addf %115, %116 : vector<2x32xf32>
    %118 = arith.index_cast %c2_i32 : i32 to index
    %c0_32 = arith.constant 0 : index
    %c0_33 = arith.constant 0 : index
    %119 = vector.load %arg5[%118, %c0_32, %c0_33] : memref<8x2x32xf32, #tpu.memory_space<vmem>>, vector<1x2x32xf32>
    %120 = vector.shape_cast %119 : vector<1x2x32xf32> to vector<2x32xf32>
    %121 = vector.shape_cast %117 : vector<2x32xf32> to vector<1x2x32xf32>
    tpu.vector_store %arg5[%118, %c0_32, %c0_33], %121 {strides = array<i32>} : memref<8x2x32xf32, #tpu.memory_space<vmem>>, vector<1x2x32xf32>,
    %c3_i32 = arith.constant 3 : i32
    %122 = arith.index_cast %c3_i32 : i32 to index
    %c0_34 = arith.constant 0 : index
    %c0_35 = arith.constant 0 : index
    %123 = vector.load %arg0[%122, %c0_34, %c0_35] : memref<8x2x32xf32, #tpu.memory_space<vmem>>, vector<1x2x32xf32>
    %124 = vector.shape_cast %123 : vector<1x2x32xf32> to vector<2x32xf32>
    %cst_36 = arith.constant dense<0.000000e+00> : vector<2x96xf32>
    %125 = tpu.matmul %124, %0, %cst_36 {dimension_numbers = #tpu.dot_dimension_numbers<[1], [0], [0], [1], [0, 0, 1, 1], [], []>} : vector<2x32xf32>, vector<32x96xf32>, vector<2x96xf32> -> vector<2x96xf32>
    %126 = vector.broadcast %2 : vector<1x96xf32> to vector<2x96xf32>
    %127 = arith.addf %125, %126 : vector<2x96xf32>
    %cst_37 = arith.constant dense<0.000000e+00> : vector<2x96xf32>
    %128 = tpu.matmul %117, %1, %cst_37 {dimension_numbers = #tpu.dot_dimension_numbers<[1], [0], [0], [1], [0, 0, 1, 1], [], []>} : vector<2x32xf32>, vector<32x96xf32>, vector<2x96xf32> -> vector<2x96xf32>
    %129 = vector.broadcast %3 : vector<1x96xf32> to vector<2x96xf32>
    %130 = arith.addf %128, %129 : vector<2x96xf32>
    %131 = vector.extract_strided_slice %127 {offsets = [0, 0], sizes = [2, 32], strides = [1, 1]} : vector<2x96xf32> to vector<2x32xf32>
    %132 = vector.extract_strided_slice %130 {offsets = [0, 0], sizes = [2, 32], strides = [1, 1]} : vector<2x96xf32> to vector<2x32xf32>
    %133 = arith.addf %131, %132 : vector<2x32xf32>
    %134 = arith.negf %133 : vector<2x32xf32>
    %135 = math.exp %134 : vector<2x32xf32>
    %cst_38 = arith.constant 1.000000e+00 : f32
    %136 = vector.broadcast %cst_38 : f32 to vector<2x32xf32>
    %137 = arith.addf %136, %135 : vector<2x32xf32>
    %138 = arith.divf %136, %137 : vector<2x32xf32>
    %139 = vector.extract_strided_slice %127 {offsets = [0, 32], sizes = [2, 32], strides = [1, 1]} : vector<2x96xf32> to vector<2x32xf32>
    %140 = vector.extract_strided_slice %130 {offsets = [0, 32], sizes = [2, 32], strides = [1, 1]} : vector<2x96xf32> to vector<2x32xf32>
    %141 = arith.addf %139, %140 : vector<2x32xf32>
    %142 = arith.negf %141 : vector<2x32xf32>
    %143 = math.exp %142 : vector<2x32xf32>
    %cst_39 = arith.constant 1.000000e+00 : f32
    %144 = vector.broadcast %cst_39 : f32 to vector<2x32xf32>
    %145 = arith.addf %144, %143 : vector<2x32xf32>
    %146 = arith.divf %144, %145 : vector<2x32xf32>
    %147 = vector.extract_strided_slice %127 {offsets = [0, 64], sizes = [2, 32], strides = [1, 1]} : vector<2x96xf32> to vector<2x32xf32>
    %148 = vector.extract_strided_slice %130 {offsets = [0, 64], sizes = [2, 32], strides = [1, 1]} : vector<2x96xf32> to vector<2x32xf32>
    %149 = arith.mulf %138, %148 : vector<2x32xf32>
    %150 = arith.addf %147, %149 : vector<2x32xf32>
    %151 = math.tanh %150 : vector<2x32xf32>
    %cst_40 = arith.constant 1.000000e+00 : f32
    %152 = vector.broadcast %cst_40 : f32 to vector<2x32xf32>
    %153 = arith.subf %152, %146 : vector<2x32xf32>
    %154 = arith.mulf %153, %151 : vector<2x32xf32>
    %155 = arith.mulf %146, %117 : vector<2x32xf32>
    %156 = arith.addf %154, %155 : vector<2x32xf32>
    %157 = arith.index_cast %c3_i32 : i32 to index
    %c0_41 = arith.constant 0 : index
    %c0_42 = arith.constant 0 : index
    %158 = vector.load %arg5[%157, %c0_41, %c0_42] : memref<8x2x32xf32, #tpu.memory_space<vmem>>, vector<1x2x32xf32>
    %159 = vector.shape_cast %158 : vector<1x2x32xf32> to vector<2x32xf32>
    %160 = vector.shape_cast %156 : vector<2x32xf32> to vector<1x2x32xf32>
    tpu.vector_store %arg5[%157, %c0_41, %c0_42], %160 {strides = array<i32>} : memref<8x2x32xf32, #tpu.memory_space<vmem>>, vector<1x2x32xf32>,
    %c4_i32 = arith.constant 4 : i32
    %161 = arith.index_cast %c4_i32 : i32 to index
    %c0_43 = arith.constant 0 : index
    %c0_44 = arith.constant 0 : index
    %162 = vector.load %arg0[%161, %c0_43, %c0_44] : memref<8x2x32xf32, #tpu.memory_space<vmem>>, vector<1x2x32xf32>
    %163 = vector.shape_cast %162 : vector<1x2x32xf32> to vector<2x32xf32>
    %cst_45 = arith.constant dense<0.000000e+00> : vector<2x96xf32>
    %164 = tpu.matmul %163, %0, %cst_45 {dimension_numbers = #tpu.dot_dimension_numbers<[1], [0], [0], [1], [0, 0, 1, 1], [], []>} : vector<2x32xf32>, vector<32x96xf32>, vector<2x96xf32> -> vector<2x96xf32>
    %165 = vector.broadcast %2 : vector<1x96xf32> to vector<2x96xf32>
    %166 = arith.addf %164, %165 : vector<2x96xf32>
    %cst_46 = arith.constant dense<0.000000e+00> : vector<2x96xf32>
    %167 = tpu.matmul %156, %1, %cst_46 {dimension_numbers = #tpu.dot_dimension_numbers<[1], [0], [0], [1], [0, 0, 1, 1], [], []>} : vector<2x32xf32>, vector<32x96xf32>, vector<2x96xf32> -> vector<2x96xf32>
    %168 = vector.broadcast %3 : vector<1x96xf32> to vector<2x96xf32>
    %169 = arith.addf %167, %168 : vector<2x96xf32>
    %170 = vector.extract_strided_slice %166 {offsets = [0, 0], sizes = [2, 32], strides = [1, 1]} : vector<2x96xf32> to vector<2x32xf32>
    %171 = vector.extract_strided_slice %169 {offsets = [0, 0], sizes = [2, 32], strides = [1, 1]} : vector<2x96xf32> to vector<2x32xf32>
    %172 = arith.addf %170, %171 : vector<2x32xf32>
    %173 = arith.negf %172 : vector<2x32xf32>
    %174 = math.exp %173 : vector<2x32xf32>
    %cst_47 = arith.constant 1.000000e+00 : f32
    %175 = vector.broadcast %cst_47 : f32 to vector<2x32xf32>
    %176 = arith.addf %175, %174 : vector<2x32xf32>
    %177 = arith.divf %175, %176 : vector<2x32xf32>
    %178 = vector.extract_strided_slice %166 {offsets = [0, 32], sizes = [2, 32], strides = [1, 1]} : vector<2x96xf32> to vector<2x32xf32>
    %179 = vector.extract_strided_slice %169 {offsets = [0, 32], sizes = [2, 32], strides = [1, 1]} : vector<2x96xf32> to vector<2x32xf32>
    %180 = arith.addf %178, %179 : vector<2x32xf32>
    %181 = arith.negf %180 : vector<2x32xf32>
    %182 = math.exp %181 : vector<2x32xf32>
    %cst_48 = arith.constant 1.000000e+00 : f32
    %183 = vector.broadcast %cst_48 : f32 to vector<2x32xf32>
    %184 = arith.addf %183, %182 : vector<2x32xf32>
    %185 = arith.divf %183, %184 : vector<2x32xf32>
    %186 = vector.extract_strided_slice %166 {offsets = [0, 64], sizes = [2, 32], strides = [1, 1]} : vector<2x96xf32> to vector<2x32xf32>
    %187 = vector.extract_strided_slice %169 {offsets = [0, 64], sizes = [2, 32], strides = [1, 1]} : vector<2x96xf32> to vector<2x32xf32>
    %188 = arith.mulf %177, %187 : vector<2x32xf32>
    %189 = arith.addf %186, %188 : vector<2x32xf32>
    %190 = math.tanh %189 : vector<2x32xf32>
    %cst_49 = arith.constant 1.000000e+00 : f32
    %191 = vector.broadcast %cst_49 : f32 to vector<2x32xf32>
    %192 = arith.subf %191, %185 : vector<2x32xf32>
    %193 = arith.mulf %192, %190 : vector<2x32xf32>
    %194 = arith.mulf %185, %156 : vector<2x32xf32>
    %195 = arith.addf %193, %194 : vector<2x32xf32>
    %196 = arith.index_cast %c4_i32 : i32 to index
    %c0_50 = arith.constant 0 : index
    %c0_51 = arith.constant 0 : index
    %197 = vector.load %arg5[%196, %c0_50, %c0_51] : memref<8x2x32xf32, #tpu.memory_space<vmem>>, vector<1x2x32xf32>
    %198 = vector.shape_cast %197 : vector<1x2x32xf32> to vector<2x32xf32>
    %199 = vector.shape_cast %195 : vector<2x32xf32> to vector<1x2x32xf32>
    tpu.vector_store %arg5[%196, %c0_50, %c0_51], %199 {strides = array<i32>} : memref<8x2x32xf32, #tpu.memory_space<vmem>>, vector<1x2x32xf32>,
    %c5_i32 = arith.constant 5 : i32
    %200 = arith.index_cast %c5_i32 : i32 to index
    %c0_52 = arith.constant 0 : index
    %c0_53 = arith.constant 0 : index
    %201 = vector.load %arg0[%200, %c0_52, %c0_53] : memref<8x2x32xf32, #tpu.memory_space<vmem>>, vector<1x2x32xf32>
    %202 = vector.shape_cast %201 : vector<1x2x32xf32> to vector<2x32xf32>
    %cst_54 = arith.constant dense<0.000000e+00> : vector<2x96xf32>
    %203 = tpu.matmul %202, %0, %cst_54 {dimension_numbers = #tpu.dot_dimension_numbers<[1], [0], [0], [1], [0, 0, 1, 1], [], []>} : vector<2x32xf32>, vector<32x96xf32>, vector<2x96xf32> -> vector<2x96xf32>
    %204 = vector.broadcast %2 : vector<1x96xf32> to vector<2x96xf32>
    %205 = arith.addf %203, %204 : vector<2x96xf32>
    %cst_55 = arith.constant dense<0.000000e+00> : vector<2x96xf32>
    %206 = tpu.matmul %195, %1, %cst_55 {dimension_numbers = #tpu.dot_dimension_numbers<[1], [0], [0], [1], [0, 0, 1, 1], [], []>} : vector<2x32xf32>, vector<32x96xf32>, vector<2x96xf32> -> vector<2x96xf32>
    %207 = vector.broadcast %3 : vector<1x96xf32> to vector<2x96xf32>
    %208 = arith.addf %206, %207 : vector<2x96xf32>
    %209 = vector.extract_strided_slice %205 {offsets = [0, 0], sizes = [2, 32], strides = [1, 1]} : vector<2x96xf32> to vector<2x32xf32>
    %210 = vector.extract_strided_slice %208 {offsets = [0, 0], sizes = [2, 32], strides = [1, 1]} : vector<2x96xf32> to vector<2x32xf32>
    %211 = arith.addf %209, %210 : vector<2x32xf32>
    %212 = arith.negf %211 : vector<2x32xf32>
    %213 = math.exp %212 : vector<2x32xf32>
    %cst_56 = arith.constant 1.000000e+00 : f32
    %214 = vector.broadcast %cst_56 : f32 to vector<2x32xf32>
    %215 = arith.addf %214, %213 : vector<2x32xf32>
    %216 = arith.divf %214, %215 : vector<2x32xf32>
    %217 = vector.extract_strided_slice %205 {offsets = [0, 32], sizes = [2, 32], strides = [1, 1]} : vector<2x96xf32> to vector<2x32xf32>
    %218 = vector.extract_strided_slice %208 {offsets = [0, 32], sizes = [2, 32], strides = [1, 1]} : vector<2x96xf32> to vector<2x32xf32>
    %219 = arith.addf %217, %218 : vector<2x32xf32>
    %220 = arith.negf %219 : vector<2x32xf32>
    %221 = math.exp %220 : vector<2x32xf32>
    %cst_57 = arith.constant 1.000000e+00 : f32
    %222 = vector.broadcast %cst_57 : f32 to vector<2x32xf32>
    %223 = arith.addf %222, %221 : vector<2x32xf32>
    %224 = arith.divf %222, %223 : vector<2x32xf32>
    %225 = vector.extract_strided_slice %205 {offsets = [0, 64], sizes = [2, 32], strides = [1, 1]} : vector<2x96xf32> to vector<2x32xf32>
    %226 = vector.extract_strided_slice %208 {offsets = [0, 64], sizes = [2, 32], strides = [1, 1]} : vector<2x96xf32> to vector<2x32xf32>
    %227 = arith.mulf %216, %226 : vector<2x32xf32>
    %228 = arith.addf %225, %227 : vector<2x32xf32>
    %229 = math.tanh %228 : vector<2x32xf32>
    %cst_58 = arith.constant 1.000000e+00 : f32
    %230 = vector.broadcast %cst_58 : f32 to vector<2x32xf32>
    %231 = arith.subf %230, %224 : vector<2x32xf32>
    %232 = arith.mulf %231, %229 : vector<2x32xf32>
    %233 = arith.mulf %224, %195 : vector<2x32xf32>
    %234 = arith.addf %232, %233 : vector<2x32xf32>
    %235 = arith.index_cast %c5_i32 : i32 to index
    %c0_59 = arith.constant 0 : index
    %c0_60 = arith.constant 0 : index
    %236 = vector.load %arg5[%235, %c0_59, %c0_60] : memref<8x2x32xf32, #tpu.memory_space<vmem>>, vector<1x2x32xf32>
    %237 = vector.shape_cast %236 : vector<1x2x32xf32> to vector<2x32xf32>
    %238 = vector.shape_cast %234 : vector<2x32xf32> to vector<1x2x32xf32>
    tpu.vector_store %arg5[%235, %c0_59, %c0_60], %238 {strides = array<i32>} : memref<8x2x32xf32, #tpu.memory_space<vmem>>, vector<1x2x32xf32>,
    %c6_i32 = arith.constant 6 : i32
    %239 = arith.index_cast %c6_i32 : i32 to index
    %c0_61 = arith.constant 0 : index
    %c0_62 = arith.constant 0 : index
    %240 = vector.load %arg0[%239, %c0_61, %c0_62] : memref<8x2x32xf32, #tpu.memory_space<vmem>>, vector<1x2x32xf32>
    %241 = vector.shape_cast %240 : vector<1x2x32xf32> to vector<2x32xf32>
    %cst_63 = arith.constant dense<0.000000e+00> : vector<2x96xf32>
    %242 = tpu.matmul %241, %0, %cst_63 {dimension_numbers = #tpu.dot_dimension_numbers<[1], [0], [0], [1], [0, 0, 1, 1], [], []>} : vector<2x32xf32>, vector<32x96xf32>, vector<2x96xf32> -> vector<2x96xf32>
    %243 = vector.broadcast %2 : vector<1x96xf32> to vector<2x96xf32>
    %244 = arith.addf %242, %243 : vector<2x96xf32>
    %cst_64 = arith.constant dense<0.000000e+00> : vector<2x96xf32>
    %245 = tpu.matmul %234, %1, %cst_64 {dimension_numbers = #tpu.dot_dimension_numbers<[1], [0], [0], [1], [0, 0, 1, 1], [], []>} : vector<2x32xf32>, vector<32x96xf32>, vector<2x96xf32> -> vector<2x96xf32>
    %246 = vector.broadcast %3 : vector<1x96xf32> to vector<2x96xf32>
    %247 = arith.addf %245, %246 : vector<2x96xf32>
    %248 = vector.extract_strided_slice %244 {offsets = [0, 0], sizes = [2, 32], strides = [1, 1]} : vector<2x96xf32> to vector<2x32xf32>
    %249 = vector.extract_strided_slice %247 {offsets = [0, 0], sizes = [2, 32], strides = [1, 1]} : vector<2x96xf32> to vector<2x32xf32>
    %250 = arith.addf %248, %249 : vector<2x32xf32>
    %251 = arith.negf %250 : vector<2x32xf32>
    %252 = math.exp %251 : vector<2x32xf32>
    %cst_65 = arith.constant 1.000000e+00 : f32
    %253 = vector.broadcast %cst_65 : f32 to vector<2x32xf32>
    %254 = arith.addf %253, %252 : vector<2x32xf32>
    %255 = arith.divf %253, %254 : vector<2x32xf32>
    %256 = vector.extract_strided_slice %244 {offsets = [0, 32], sizes = [2, 32], strides = [1, 1]} : vector<2x96xf32> to vector<2x32xf32>
    %257 = vector.extract_strided_slice %247 {offsets = [0, 32], sizes = [2, 32], strides = [1, 1]} : vector<2x96xf32> to vector<2x32xf32>
    %258 = arith.addf %256, %257 : vector<2x32xf32>
    %259 = arith.negf %258 : vector<2x32xf32>
    %260 = math.exp %259 : vector<2x32xf32>
    %cst_66 = arith.constant 1.000000e+00 : f32
    %261 = vector.broadcast %cst_66 : f32 to vector<2x32xf32>
    %262 = arith.addf %261, %260 : vector<2x32xf32>
    %263 = arith.divf %261, %262 : vector<2x32xf32>
    %264 = vector.extract_strided_slice %244 {offsets = [0, 64], sizes = [2, 32], strides = [1, 1]} : vector<2x96xf32> to vector<2x32xf32>
    %265 = vector.extract_strided_slice %247 {offsets = [0, 64], sizes = [2, 32], strides = [1, 1]} : vector<2x96xf32> to vector<2x32xf32>
    %266 = arith.mulf %255, %265 : vector<2x32xf32>
    %267 = arith.addf %264, %266 : vector<2x32xf32>
    %268 = math.tanh %267 : vector<2x32xf32>
    %cst_67 = arith.constant 1.000000e+00 : f32
    %269 = vector.broadcast %cst_67 : f32 to vector<2x32xf32>
    %270 = arith.subf %269, %263 : vector<2x32xf32>
    %271 = arith.mulf %270, %268 : vector<2x32xf32>
    %272 = arith.mulf %263, %234 : vector<2x32xf32>
    %273 = arith.addf %271, %272 : vector<2x32xf32>
    %274 = arith.index_cast %c6_i32 : i32 to index
    %c0_68 = arith.constant 0 : index
    %c0_69 = arith.constant 0 : index
    %275 = vector.load %arg5[%274, %c0_68, %c0_69] : memref<8x2x32xf32, #tpu.memory_space<vmem>>, vector<1x2x32xf32>
    %276 = vector.shape_cast %275 : vector<1x2x32xf32> to vector<2x32xf32>
    %277 = vector.shape_cast %273 : vector<2x32xf32> to vector<1x2x32xf32>
    tpu.vector_store %arg5[%274, %c0_68, %c0_69], %277 {strides = array<i32>} : memref<8x2x32xf32, #tpu.memory_space<vmem>>, vector<1x2x32xf32>,
    %c7_i32 = arith.constant 7 : i32
    %278 = arith.index_cast %c7_i32 : i32 to index
    %c0_70 = arith.constant 0 : index
    %c0_71 = arith.constant 0 : index
    %279 = vector.load %arg0[%278, %c0_70, %c0_71] : memref<8x2x32xf32, #tpu.memory_space<vmem>>, vector<1x2x32xf32>
    %280 = vector.shape_cast %279 : vector<1x2x32xf32> to vector<2x32xf32>
    %cst_72 = arith.constant dense<0.000000e+00> : vector<2x96xf32>
    %281 = tpu.matmul %280, %0, %cst_72 {dimension_numbers = #tpu.dot_dimension_numbers<[1], [0], [0], [1], [0, 0, 1, 1], [], []>} : vector<2x32xf32>, vector<32x96xf32>, vector<2x96xf32> -> vector<2x96xf32>
    %282 = vector.broadcast %2 : vector<1x96xf32> to vector<2x96xf32>
    %283 = arith.addf %281, %282 : vector<2x96xf32>
    %cst_73 = arith.constant dense<0.000000e+00> : vector<2x96xf32>
    %284 = tpu.matmul %273, %1, %cst_73 {dimension_numbers = #tpu.dot_dimension_numbers<[1], [0], [0], [1], [0, 0, 1, 1], [], []>} : vector<2x32xf32>, vector<32x96xf32>, vector<2x96xf32> -> vector<2x96xf32>
    %285 = vector.broadcast %3 : vector<1x96xf32> to vector<2x96xf32>
    %286 = arith.addf %284, %285 : vector<2x96xf32>
    %287 = vector.extract_strided_slice %283 {offsets = [0, 0], sizes = [2, 32], strides = [1, 1]} : vector<2x96xf32> to vector<2x32xf32>
    %288 = vector.extract_strided_slice %286 {offsets = [0, 0], sizes = [2, 32], strides = [1, 1]} : vector<2x96xf32> to vector<2x32xf32>
    %289 = arith.addf %287, %288 : vector<2x32xf32>
    %290 = arith.negf %289 : vector<2x32xf32>
    %291 = math.exp %290 : vector<2x32xf32>
    %cst_74 = arith.constant 1.000000e+00 : f32
    %292 = vector.broadcast %cst_74 : f32 to vector<2x32xf32>
    %293 = arith.addf %292, %291 : vector<2x32xf32>
    %294 = arith.divf %292, %293 : vector<2x32xf32>
    %295 = vector.extract_strided_slice %283 {offsets = [0, 32], sizes = [2, 32], strides = [1, 1]} : vector<2x96xf32> to vector<2x32xf32>
    %296 = vector.extract_strided_slice %286 {offsets = [0, 32], sizes = [2, 32], strides = [1, 1]} : vector<2x96xf32> to vector<2x32xf32>
    %297 = arith.addf %295, %296 : vector<2x32xf32>
    %298 = arith.negf %297 : vector<2x32xf32>
    %299 = math.exp %298 : vector<2x32xf32>
    %cst_75 = arith.constant 1.000000e+00 : f32
    %300 = vector.broadcast %cst_75 : f32 to vector<2x32xf32>
    %301 = arith.addf %300, %299 : vector<2x32xf32>
    %302 = arith.divf %300, %301 : vector<2x32xf32>
    %303 = vector.extract_strided_slice %283 {offsets = [0, 64], sizes = [2, 32], strides = [1, 1]} : vector<2x96xf32> to vector<2x32xf32>
    %304 = vector.extract_strided_slice %286 {offsets = [0, 64], sizes = [2, 32], strides = [1, 1]} : vector<2x96xf32> to vector<2x32xf32>
    %305 = arith.mulf %294, %304 : vector<2x32xf32>
    %306 = arith.addf %303, %305 : vector<2x32xf32>
    %307 = math.tanh %306 : vector<2x32xf32>
    %cst_76 = arith.constant 1.000000e+00 : f32
    %308 = vector.broadcast %cst_76 : f32 to vector<2x32xf32>
    %309 = arith.subf %308, %302 : vector<2x32xf32>
    %310 = arith.mulf %309, %307 : vector<2x32xf32>
    %311 = arith.mulf %302, %273 : vector<2x32xf32>
    %312 = arith.addf %310, %311 : vector<2x32xf32>
    %313 = arith.index_cast %c7_i32 : i32 to index
    %c0_77 = arith.constant 0 : index
    %c0_78 = arith.constant 0 : index
    %314 = vector.load %arg5[%313, %c0_77, %c0_78] : memref<8x2x32xf32, #tpu.memory_space<vmem>>, vector<1x2x32xf32>
    %315 = vector.shape_cast %314 : vector<1x2x32xf32> to vector<2x32xf32>
    %316 = vector.shape_cast %312 : vector<2x32xf32> to vector<1x2x32xf32>
    tpu.vector_store %arg5[%313, %c0_77, %c0_78], %316 {strides = array<i32>} : memref<8x2x32xf32, #tpu.memory_space<vmem>>, vector<1x2x32xf32>,
    %c8_i32 = arith.constant 8 : i32
    %c0_79 = arith.constant 0 : index
    %c0_80 = arith.constant 0 : index
    %317 = vector.load %arg6[%c0_79, %c0_80] : memref<2x32xf32, #tpu.memory_space<vmem>>, vector<2x32xf32>
    tpu.vector_store %arg6[%c0_79, %c0_80], %312 {strides = array<i32>} : memref<2x32xf32, #tpu.memory_space<vmem>>, vector<2x32xf32>,
    return
  }
}

module attributes {stable_mosaic.version = 11 : i64} {
  func.func @_dec_kernel(%arg0: i32, %arg1: memref<2x32xf32, #tpu.memory_space<vmem>>, %arg2: memref<16x32xf32, #tpu.memory_space<vmem>>, %arg3: memref<32x32xf32, #tpu.memory_space<vmem>>, %arg4: memref<32x32xf32, #tpu.memory_space<vmem>>, %arg5: memref<1x32xf32, #tpu.memory_space<vmem>>, %arg6: memref<32x32xf32, #tpu.memory_space<vmem>>, %arg7: memref<1x32xf32, #tpu.memory_space<vmem>>, %arg8: memref<1x32xf32, #tpu.memory_space<vmem>>, %arg9: memref<1x1xf32, #tpu.memory_space<vmem>>, %arg10: memref<32x96xf32, #tpu.memory_space<vmem>>, %arg11: memref<32x96xf32, #tpu.memory_space<vmem>>, %arg12: memref<32x96xf32, #tpu.memory_space<vmem>>, %arg13: memref<1x96xf32, #tpu.memory_space<vmem>>, %arg14: memref<1x96xf32, #tpu.memory_space<vmem>>, %arg15: memref<32x32xf32, #tpu.memory_space<vmem>>, %arg16: memref<1x32xf32, #tpu.memory_space<vmem>>, %arg17: memref<1x2x32xf32, #tpu.memory_space<vmem>>, %arg18: memref<1x2x8xf32, #tpu.memory_space<vmem>>, %arg19: memref<2x32xf32, #tpu.memory_space<vmem>>, %arg20: memref<2x32xf32, #tpu.memory_space<vmem>>, %arg21: memref<2x32xf32, #tpu.memory_space<vmem>>, %arg22: memref<16x32xf32, #tpu.memory_space<vmem>>) attributes {dimension_semantics = [#tpu.dimension_semantics<arbitrary>], iteration_bounds = array<i64: 6>, scalar_prefetch = 0 : i64, scratch_operands = 3 : i64, tpu.core_type = #tpu.core_type<tc>, window_params = [{pipeline_mode = #tpu.pipeline_mode<synchronous>, transform_indices = @transform_0, window_bounds = array<i64: 2, 32>}, {pipeline_mode = #tpu.pipeline_mode<synchronous>, transform_indices = @transform_1, window_bounds = array<i64: 16, 32>}, {pipeline_mode = #tpu.pipeline_mode<synchronous>, transform_indices = @transform_2, window_bounds = array<i64: 32, 32>}, {pipeline_mode = #tpu.pipeline_mode<synchronous>, transform_indices = @transform_3, window_bounds = array<i64: 32, 32>}, {pipeline_mode = #tpu.pipeline_mode<synchronous>, transform_indices = @transform_4, window_bounds = array<i64: 1, 32>}, {pipeline_mode = #tpu.pipeline_mode<synchronous>, transform_indices = @transform_5, window_bounds = array<i64: 32, 32>}, {pipeline_mode = #tpu.pipeline_mode<synchronous>, transform_indices = @transform_6, window_bounds = array<i64: 1, 32>}, {pipeline_mode = #tpu.pipeline_mode<synchronous>, transform_indices = @transform_7, window_bounds = array<i64: 1, 32>}, {pipeline_mode = #tpu.pipeline_mode<synchronous>, transform_indices = @transform_8, window_bounds = array<i64: 1, 1>}, {pipeline_mode = #tpu.pipeline_mode<synchronous>, transform_indices = @transform_9, window_bounds = array<i64: 32, 96>}, {pipeline_mode = #tpu.pipeline_mode<synchronous>, transform_indices = @transform_10, window_bounds = array<i64: 32, 96>}, {pipeline_mode = #tpu.pipeline_mode<synchronous>, transform_indices = @transform_11, window_bounds = array<i64: 32, 96>}, {pipeline_mode = #tpu.pipeline_mode<synchronous>, transform_indices = @transform_12, window_bounds = array<i64: 1, 96>}, {pipeline_mode = #tpu.pipeline_mode<synchronous>, transform_indices = @transform_13, window_bounds = array<i64: 1, 96>}, {pipeline_mode = #tpu.pipeline_mode<synchronous>, transform_indices = @transform_14, window_bounds = array<i64: 32, 32>}, {pipeline_mode = #tpu.pipeline_mode<synchronous>, transform_indices = @transform_15, window_bounds = array<i64: 1, 32>}, {transform_indices = @transform_16, window_bounds = array<i64: 1, 2, 32>}, {transform_indices = @transform_17, window_bounds = array<i64: 1, 2, 8>}, {pipeline_mode = #tpu.pipeline_mode<synchronous>, transform_indices = @transform_18, window_bounds = array<i64: 2, 32>}]} {
    %c0_i32 = arith.constant 0 : i32
    %0 = arith.cmpi eq, %arg0, %c0_i32 : i32
    %1 = arith.extui %0 : i1 to i32
    %c0_i32_0 = arith.constant 0 : i32
    %2 = arith.cmpi ne, %1, %c0_i32_0 : i32
    scf.if %2 {
      %c0_57 = arith.constant 0 : index
      %c0_58 = arith.constant 0 : index
      %109 = vector.load %arg1[%c0_57, %c0_58] : memref<2x32xf32, #tpu.memory_space<vmem>>, vector<2x32xf32>
      %c0_59 = arith.constant 0 : index
      %c0_60 = arith.constant 0 : index
      %110 = vector.load %arg20[%c0_59, %c0_60] : memref<2x32xf32, #tpu.memory_space<vmem>>, vector<2x32xf32>
      tpu.vector_store %arg20[%c0_59, %c0_60], %109 {strides = array<i32>} : memref<2x32xf32, #tpu.memory_space<vmem>>, vector<2x32xf32>,
      %111 = tpu.iota {dimensions = array<i32: 1>} : vector<2x32xi32>
      %c0_i32_61 = arith.constant 0 : i32
      %112 = vector.broadcast %c0_i32_61 : i32 to vector<2x32xi32>
      %113 = arith.cmpi eq, %111, %112 : vector<2x32xi32>
      %114 = arith.extui %113 : vector<2x32xi1> to vector<2x32xi32>
      %115 = arith.sitofp %114 : vector<2x32xi32> to vector<2x32xf32>
      %c0_62 = arith.constant 0 : index
      %c0_63 = arith.constant 0 : index
      %116 = vector.load %arg21[%c0_62, %c0_63] : memref<2x32xf32, #tpu.memory_space<vmem>>, vector<2x32xf32>
      tpu.vector_store %arg21[%c0_62, %c0_63], %115 {strides = array<i32>} : memref<2x32xf32, #tpu.memory_space<vmem>>, vector<2x32xf32>,
      %c0_64 = arith.constant 0 : index
      %c0_65 = arith.constant 0 : index
      %117 = vector.load %arg2[%c0_64, %c0_65] : memref<16x32xf32, #tpu.memory_space<vmem>>, vector<16x32xf32>
      %c0_66 = arith.constant 0 : index
      %c0_67 = arith.constant 0 : index
      %118 = vector.load %arg6[%c0_66, %c0_67] : memref<32x32xf32, #tpu.memory_space<vmem>>, vector<32x32xf32>
      %cst_68 = arith.constant dense<0.000000e+00> : vector<16x32xf32>
      %119 = tpu.matmul %117, %118, %cst_68 {dimension_numbers = #tpu.dot_dimension_numbers<[1], [0], [0], [1], [0, 0, 1, 1], [], []>} : vector<16x32xf32>, vector<32x32xf32>, vector<16x32xf32> -> vector<16x32xf32>
      %c0_69 = arith.constant 0 : index
      %c0_70 = arith.constant 0 : index
      %120 = vector.load %arg7[%c0_69, %c0_70] : memref<1x32xf32, #tpu.memory_space<vmem>>, vector<1x32xf32>
      %121 = vector.broadcast %120 : vector<1x32xf32> to vector<16x32xf32>
      %122 = arith.addf %119, %121 : vector<16x32xf32>
      %c0_71 = arith.constant 0 : index
      %c0_72 = arith.constant 0 : index
      %123 = vector.load %arg22[%c0_71, %c0_72] : memref<16x32xf32, #tpu.memory_space<vmem>>, vector<16x32xf32>
      tpu.vector_store %arg22[%c0_71, %c0_72], %122 {strides = array<i32>} : memref<16x32xf32, #tpu.memory_space<vmem>>, vector<16x32xf32>,
    } else {
    }
    %c0 = arith.constant 0 : index
    %c0_1 = arith.constant 0 : index
    %3 = vector.load %arg20[%c0, %c0_1] : memref<2x32xf32, #tpu.memory_space<vmem>>, vector<2x32xf32>
    %c0_2 = arith.constant 0 : index
    %c0_3 = arith.constant 0 : index
    %4 = vector.load %arg21[%c0_2, %c0_3] : memref<2x32xf32, #tpu.memory_space<vmem>>, vector<2x32xf32>
    %c0_4 = arith.constant 0 : index
    %c0_5 = arith.constant 0 : index
    %5 = vector.load %arg3[%c0_4, %c0_5] : memref<32x32xf32, #tpu.memory_space<vmem>>, vector<32x32xf32>
    %cst = arith.constant dense<0.000000e+00> : vector<2x32xf32>
    %6 = tpu.matmul %4, %5, %cst {dimension_numbers = #tpu.dot_dimension_numbers<[1], [0], [0], [1], [0, 0, 1, 1], [], []>} : vector<2x32xf32>, vector<32x32xf32>, vector<2x32xf32> -> vector<2x32xf32>
    %c0_6 = arith.constant 0 : index
    %c0_7 = arith.constant 0 : index
    %7 = vector.load %arg2[%c0_6, %c0_7] : memref<16x32xf32, #tpu.memory_space<vmem>>, vector<16x32xf32>
    %8 = vector.shape_cast %7 : vector<16x32xf32> to vector<2x8x32xf32>
    %c0_8 = arith.constant 0 : index
    %c0_9 = arith.constant 0 : index
    %9 = vector.load %arg22[%c0_8, %c0_9] : memref<16x32xf32, #tpu.memory_space<vmem>>, vector<16x32xf32>
    %10 = vector.shape_cast %9 : vector<16x32xf32> to vector<2x8x32xf32>
    %c0_10 = arith.constant 0 : index
    %c0_11 = arith.constant 0 : index
    %11 = vector.load %arg4[%c0_10, %c0_11] : memref<32x32xf32, #tpu.memory_space<vmem>>, vector<32x32xf32>
    %cst_12 = arith.constant dense<0.000000e+00> : vector<2x32xf32>
    %12 = tpu.matmul %3, %11, %cst_12 {dimension_numbers = #tpu.dot_dimension_numbers<[1], [0], [0], [1], [0, 0, 1, 1], [], []>} : vector<2x32xf32>, vector<32x32xf32>, vector<2x32xf32> -> vector<2x32xf32>
    %c0_13 = arith.constant 0 : index
    %c0_14 = arith.constant 0 : index
    %13 = vector.load %arg5[%c0_13, %c0_14] : memref<1x32xf32, #tpu.memory_space<vmem>>, vector<1x32xf32>
    %14 = vector.broadcast %13 : vector<1x32xf32> to vector<2x32xf32>
    %15 = arith.addf %12, %14 : vector<2x32xf32>
    %16 = vector.shape_cast %15 : vector<2x32xf32> to vector<2x1x32xf32>
    %17 = vector.broadcast %16 : vector<2x1x32xf32> to vector<2x8x32xf32>
    %18 = arith.addf %17, %10 : vector<2x8x32xf32>
    %19 = math.tanh %18 : vector<2x8x32xf32>
    %c0_15 = arith.constant 0 : index
    %c0_16 = arith.constant 0 : index
    %20 = vector.load %arg8[%c0_15, %c0_16] : memref<1x32xf32, #tpu.memory_space<vmem>>, vector<1x32xf32>
    %21 = vector.shape_cast %20 : vector<1x32xf32> to vector<1x1x32xf32>
    %22 = vector.broadcast %21 : vector<1x1x32xf32> to vector<2x8x32xf32>
    %23 = arith.mulf %19, %22 : vector<2x8x32xf32>
    %cst_17 = arith.constant dense<0.000000e+00> : vector<2x8xf32>
    %24 = vector.multi_reduction <add>, %23, %cst_17 [2] : vector<2x8x32xf32> to vector<2x8xf32>
    %c0_18 = arith.constant 0 : index
    %c0_19 = arith.constant 0 : index
    %25 = vector.load %arg9[%c0_18, %c0_19] : memref<1x1xf32, #tpu.memory_space<vmem>>, vector<1x1xf32>
    %26 = vector.extract %25[0, 0] : f32 from vector<1x1xf32>
    %27 = vector.broadcast %26 : f32 to vector<2x8xf32>
    %28 = arith.addf %24, %27 : vector<2x8xf32>
    %cst_20 = arith.constant dense<0xFF800000> : vector<2xf32>
    %29 = vector.multi_reduction <maximumf>, %28, %cst_20 [1] : vector<2x8xf32> to vector<2xf32>
    %30 = vector.shape_cast %29 : vector<2xf32> to vector<2x1xf32>
    %31 = vector.broadcast %30 : vector<2x1xf32> to vector<2x8xf32>
    %32 = arith.subf %28, %31 : vector<2x8xf32>
    %33 = math.exp %32 : vector<2x8xf32>
    %cst_21 = arith.constant dense<0.000000e+00> : vector<2xf32>
    %34 = vector.multi_reduction <add>, %33, %cst_21 [1] : vector<2x8xf32> to vector<2xf32>
    %35 = vector.shape_cast %34 : vector<2xf32> to vector<2x1xf32>
    %36 = vector.broadcast %35 : vector<2x1xf32> to vector<2x8xf32>
    %37 = arith.divf %33, %36 : vector<2x8xf32>
    %38 = vector.shape_cast %37 : vector<2x8xf32> to vector<2x1x8xf32>
    "tpu.trace_start"() <{level = 10 : i32, message = "bqs,bsh->bqh"}> : () -> ()
    %cst_22 = arith.constant dense<0.000000e+00> : vector<2x1x32xf32>
    %39 = tpu.matmul %38, %8, %cst_22 {dimension_numbers = #tpu.dot_dimension_numbers<[2], [1], [1], [2], [0, 0, 0, 1, 1, 2], [0], [0]>} : vector<2x1x8xf32>, vector<2x8x32xf32>, vector<2x1x32xf32> -> vector<2x1x32xf32>
    "tpu.trace_stop"() : () -> ()
    %40 = vector.shape_cast %39 : vector<2x1x32xf32> to vector<2x32xf32>
    %c0_23 = arith.constant 0 : index
    %c0_24 = arith.constant 0 : index
    %41 = vector.load %arg10[%c0_23, %c0_24] : memref<32x96xf32, #tpu.memory_space<vmem>>, vector<32x96xf32>
    %cst_25 = arith.constant dense<0.000000e+00> : vector<2x96xf32>
    %42 = tpu.matmul %6, %41, %cst_25 {dimension_numbers = #tpu.dot_dimension_numbers<[1], [0], [0], [1], [0, 0, 1, 1], [], []>} : vector<2x32xf32>, vector<32x96xf32>, vector<2x96xf32> -> vector<2x96xf32>
    %c0_26 = arith.constant 0 : index
    %c0_27 = arith.constant 0 : index
    %43 = vector.load %arg11[%c0_26, %c0_27] : memref<32x96xf32, #tpu.memory_space<vmem>>, vector<32x96xf32>
    %cst_28 = arith.constant dense<0.000000e+00> : vector<2x96xf32>
    %44 = tpu.matmul %40, %43, %cst_28 {dimension_numbers = #tpu.dot_dimension_numbers<[1], [0], [0], [1], [0, 0, 1, 1], [], []>} : vector<2x32xf32>, vector<32x96xf32>, vector<2x96xf32> -> vector<2x96xf32>
    %45 = arith.addf %42, %44 : vector<2x96xf32>
    %c0_29 = arith.constant 0 : index
    %c0_30 = arith.constant 0 : index
    %46 = vector.load %arg13[%c0_29, %c0_30] : memref<1x96xf32, #tpu.memory_space<vmem>>, vector<1x96xf32>
    %47 = vector.broadcast %46 : vector<1x96xf32> to vector<2x96xf32>
    %48 = arith.addf %45, %47 : vector<2x96xf32>
    %c0_31 = arith.constant 0 : index
    %c0_32 = arith.constant 0 : index
    %49 = vector.load %arg12[%c0_31, %c0_32] : memref<32x96xf32, #tpu.memory_space<vmem>>, vector<32x96xf32>
    %cst_33 = arith.constant dense<0.000000e+00> : vector<2x96xf32>
    %50 = tpu.matmul %3, %49, %cst_33 {dimension_numbers = #tpu.dot_dimension_numbers<[1], [0], [0], [1], [0, 0, 1, 1], [], []>} : vector<2x32xf32>, vector<32x96xf32>, vector<2x96xf32> -> vector<2x96xf32>
    %c0_34 = arith.constant 0 : index
    %c0_35 = arith.constant 0 : index
    %51 = vector.load %arg14[%c0_34, %c0_35] : memref<1x96xf32, #tpu.memory_space<vmem>>, vector<1x96xf32>
    %52 = vector.broadcast %51 : vector<1x96xf32> to vector<2x96xf32>
    %53 = arith.addf %50, %52 : vector<2x96xf32>
    %54 = vector.extract_strided_slice %48 {offsets = [0, 0], sizes = [2, 32], strides = [1, 1]} : vector<2x96xf32> to vector<2x32xf32>
    %55 = vector.extract_strided_slice %53 {offsets = [0, 0], sizes = [2, 32], strides = [1, 1]} : vector<2x96xf32> to vector<2x32xf32>
    %56 = arith.addf %54, %55 : vector<2x32xf32>
    %57 = arith.negf %56 : vector<2x32xf32>
    %58 = math.exp %57 : vector<2x32xf32>
    %cst_36 = arith.constant 1.000000e+00 : f32
    %59 = vector.broadcast %cst_36 : f32 to vector<2x32xf32>
    %60 = arith.addf %59, %58 : vector<2x32xf32>
    %61 = arith.divf %59, %60 : vector<2x32xf32>
    %62 = vector.extract_strided_slice %48 {offsets = [0, 32], sizes = [2, 32], strides = [1, 1]} : vector<2x96xf32> to vector<2x32xf32>
    %63 = vector.extract_strided_slice %53 {offsets = [0, 32], sizes = [2, 32], strides = [1, 1]} : vector<2x96xf32> to vector<2x32xf32>
    %64 = arith.addf %62, %63 : vector<2x32xf32>
    %65 = arith.negf %64 : vector<2x32xf32>
    %66 = math.exp %65 : vector<2x32xf32>
    %cst_37 = arith.constant 1.000000e+00 : f32
    %67 = vector.broadcast %cst_37 : f32 to vector<2x32xf32>
    %68 = arith.addf %67, %66 : vector<2x32xf32>
    %69 = arith.divf %67, %68 : vector<2x32xf32>
    %70 = vector.extract_strided_slice %48 {offsets = [0, 64], sizes = [2, 32], strides = [1, 1]} : vector<2x96xf32> to vector<2x32xf32>
    %71 = vector.extract_strided_slice %53 {offsets = [0, 64], sizes = [2, 32], strides = [1, 1]} : vector<2x96xf32> to vector<2x32xf32>
    %72 = arith.mulf %61, %71 : vector<2x32xf32>
    %73 = arith.addf %70, %72 : vector<2x32xf32>
    %74 = math.tanh %73 : vector<2x32xf32>
    %cst_38 = arith.constant 1.000000e+00 : f32
    %75 = vector.broadcast %cst_38 : f32 to vector<2x32xf32>
    %76 = arith.subf %75, %69 : vector<2x32xf32>
    %77 = arith.mulf %76, %74 : vector<2x32xf32>
    %78 = arith.mulf %69, %3 : vector<2x32xf32>
    %79 = arith.addf %77, %78 : vector<2x32xf32>
    %c0_39 = arith.constant 0 : index
    %c0_40 = arith.constant 0 : index
    %80 = vector.load %arg15[%c0_39, %c0_40] : memref<32x32xf32, #tpu.memory_space<vmem>>, vector<32x32xf32>
    %cst_41 = arith.constant dense<0.000000e+00> : vector<2x32xf32>
    %81 = tpu.matmul %79, %80, %cst_41 {dimension_numbers = #tpu.dot_dimension_numbers<[1], [0], [0], [1], [0, 0, 1, 1], [], []>} : vector<2x32xf32>, vector<32x32xf32>, vector<2x32xf32> -> vector<2x32xf32>
    %c0_42 = arith.constant 0 : index
    %c0_43 = arith.constant 0 : index
    %82 = vector.load %arg16[%c0_42, %c0_43] : memref<1x32xf32, #tpu.memory_space<vmem>>, vector<1x32xf32>
    %83 = vector.broadcast %82 : vector<1x32xf32> to vector<2x32xf32>
    %84 = arith.addf %81, %83 : vector<2x32xf32>
    %c0_44 = arith.constant 0 : index
    %c0_45 = arith.constant 0 : index
    %c0_46 = arith.constant 0 : index
    %85 = vector.load %arg17[%c0_44, %c0_45, %c0_46] : memref<1x2x32xf32, #tpu.memory_space<vmem>>, vector<1x2x32xf32>
    %86 = vector.shape_cast %85 : vector<1x2x32xf32> to vector<2x32xf32>
    %87 = vector.shape_cast %84 : vector<2x32xf32> to vector<1x2x32xf32>
    tpu.vector_store %arg17[%c0_44, %c0_45, %c0_46], %87 {strides = array<i32>} : memref<1x2x32xf32, #tpu.memory_space<vmem>>, vector<1x2x32xf32>,
    %c0_47 = arith.constant 0 : index
    %c0_48 = arith.constant 0 : index
    %c0_49 = arith.constant 0 : index
    %88 = vector.load %arg18[%c0_47, %c0_48, %c0_49] : memref<1x2x8xf32, #tpu.memory_space<vmem>>, vector<1x2x8xf32>
    %89 = vector.shape_cast %88 : vector<1x2x8xf32> to vector<2x8xf32>
    %90 = vector.shape_cast %37 : vector<2x8xf32> to vector<1x2x8xf32>
    tpu.vector_store %arg18[%c0_47, %c0_48, %c0_49], %90 {strides = array<i32>} : memref<1x2x8xf32, #tpu.memory_space<vmem>>, vector<1x2x8xf32>,
    %c0_50 = arith.constant 0 : index
    %c0_51 = arith.constant 0 : index
    %91 = vector.load %arg20[%c0_50, %c0_51] : memref<2x32xf32, #tpu.memory_space<vmem>>, vector<2x32xf32>
    tpu.vector_store %arg20[%c0_50, %c0_51], %79 {strides = array<i32>} : memref<2x32xf32, #tpu.memory_space<vmem>>, vector<2x32xf32>,
    %92 = tpu.iota {dimensions = array<i32: 1>} : vector<2x32xi32>
    %cst_52 = arith.constant dense<0xFF800000> : vector<2xf32>
    %93 = vector.multi_reduction <maximumf>, %84, %cst_52 [1] : vector<2x32xf32> to vector<2xf32>
    %94 = vector.shape_cast %93 : vector<2xf32> to vector<2x1xf32>
    %95 = vector.broadcast %94 : vector<2x1xf32> to vector<2x32xf32>
    %96 = arith.cmpf oge, %84, %95 : vector<2x32xf32>
    %c32_i32 = arith.constant 32 : i32
    %97 = vector.broadcast %c32_i32 : i32 to vector<2x32xi32>
    %98 = arith.select %96, %92, %97 : vector<2x32xi1>, vector<2x32xi32>
    %cst_53 = arith.constant dense<2147483647> : vector<2xi32>
    %99 = vector.multi_reduction <minsi>, %98, %cst_53 [1] : vector<2x32xi32> to vector<2xi32>
    %100 = vector.shape_cast %99 : vector<2xi32> to vector<2x1xi32>
    %101 = vector.broadcast %100 : vector<2x1xi32> to vector<2x32xi32>
    %102 = arith.cmpi eq, %92, %101 : vector<2x32xi32>
    %103 = arith.extui %102 : vector<2x32xi1> to vector<2x32xi32>
    %104 = arith.sitofp %103 : vector<2x32xi32> to vector<2x32xf32>
    %c0_54 = arith.constant 0 : index
    %c0_55 = arith.constant 0 : index
    %105 = vector.load %arg21[%c0_54, %c0_55] : memref<2x32xf32, #tpu.memory_space<vmem>>, vector<2x32xf32>
    tpu.vector_store %arg21[%c0_54, %c0_55], %104 {strides = array<i32>} : memref<2x32xf32, #tpu.memory_space<vmem>>, vector<2x32xf32>,
    %c5_i32 = arith.constant 5 : i32
    %106 = arith.cmpi eq, %arg0, %c5_i32 : i32
    %107 = arith.extui %106 : i1 to i32
    %c0_i32_56 = arith.constant 0 : i32
    %108 = arith.cmpi ne, %107, %c0_i32_56 : i32
    scf.if %108 {
      %c0_57 = arith.constant 0 : index
      %c0_58 = arith.constant 0 : index
      %109 = vector.load %arg19[%c0_57, %c0_58] : memref<2x32xf32, #tpu.memory_space<vmem>>, vector<2x32xf32>
      tpu.vector_store %arg19[%c0_57, %c0_58], %79 {strides = array<i32>} : memref<2x32xf32, #tpu.memory_space<vmem>>, vector<2x32xf32>,
    } else {
    }
    return
  }
  func.func @transform_0(%arg0: i32) -> (i32, i32) {
    %c0_i32 = arith.constant 0 : i32
    %c0_i32_0 = arith.constant 0 : i32
    %c0_i32_1 = arith.constant 0 : i32
    return %c0_i32, %c0_i32_0 : i32, i32
  }
  func.func @transform_1(%arg0: i32) -> (i32, i32) {
    %c0_i32 = arith.constant 0 : i32
    %c0_i32_0 = arith.constant 0 : i32
    %c0_i32_1 = arith.constant 0 : i32
    return %c0_i32, %c0_i32_0 : i32, i32
  }
  func.func @transform_2(%arg0: i32) -> (i32, i32) {
    %c0_i32 = arith.constant 0 : i32
    %c0_i32_0 = arith.constant 0 : i32
    %c0_i32_1 = arith.constant 0 : i32
    return %c0_i32, %c0_i32_0 : i32, i32
  }
  func.func @transform_3(%arg0: i32) -> (i32, i32) {
    %c0_i32 = arith.constant 0 : i32
    %c0_i32_0 = arith.constant 0 : i32
    %c0_i32_1 = arith.constant 0 : i32
    return %c0_i32, %c0_i32_0 : i32, i32
  }
  func.func @transform_4(%arg0: i32) -> (i32, i32) {
    %c0_i32 = arith.constant 0 : i32
    %c0_i32_0 = arith.constant 0 : i32
    %c0_i32_1 = arith.constant 0 : i32
    return %c0_i32, %c0_i32_0 : i32, i32
  }
  func.func @transform_5(%arg0: i32) -> (i32, i32) {
    %c0_i32 = arith.constant 0 : i32
    %c0_i32_0 = arith.constant 0 : i32
    %c0_i32_1 = arith.constant 0 : i32
    return %c0_i32, %c0_i32_0 : i32, i32
  }
  func.func @transform_6(%arg0: i32) -> (i32, i32) {
    %c0_i32 = arith.constant 0 : i32
    %c0_i32_0 = arith.constant 0 : i32
    %c0_i32_1 = arith.constant 0 : i32
    return %c0_i32, %c0_i32_0 : i32, i32
  }
  func.func @transform_7(%arg0: i32) -> (i32, i32) {
    %c0_i32 = arith.constant 0 : i32
    %c0_i32_0 = arith.constant 0 : i32
    %c0_i32_1 = arith.constant 0 : i32
    return %c0_i32, %c0_i32_0 : i32, i32
  }
  func.func @transform_8(%arg0: i32) -> (i32, i32) {
    %c0_i32 = arith.constant 0 : i32
    %c0_i32_0 = arith.constant 0 : i32
    %c0_i32_1 = arith.constant 0 : i32
    return %c0_i32, %c0_i32_0 : i32, i32
  }
  func.func @transform_9(%arg0: i32) -> (i32, i32) {
    %c0_i32 = arith.constant 0 : i32
    %c0_i32_0 = arith.constant 0 : i32
    %c0_i32_1 = arith.constant 0 : i32
    return %c0_i32, %c0_i32_0 : i32, i32
  }
  func.func @transform_10(%arg0: i32) -> (i32, i32) {
    %c0_i32 = arith.constant 0 : i32
    %c0_i32_0 = arith.constant 0 : i32
    %c0_i32_1 = arith.constant 0 : i32
    return %c0_i32, %c0_i32_0 : i32, i32
  }
  func.func @transform_11(%arg0: i32) -> (i32, i32) {
    %c0_i32 = arith.constant 0 : i32
    %c0_i32_0 = arith.constant 0 : i32
    %c0_i32_1 = arith.constant 0 : i32
    return %c0_i32, %c0_i32_0 : i32, i32
  }
  func.func @transform_12(%arg0: i32) -> (i32, i32) {
    %c0_i32 = arith.constant 0 : i32
    %c0_i32_0 = arith.constant 0 : i32
    %c0_i32_1 = arith.constant 0 : i32
    return %c0_i32, %c0_i32_0 : i32, i32
  }
  func.func @transform_13(%arg0: i32) -> (i32, i32) {
    %c0_i32 = arith.constant 0 : i32
    %c0_i32_0 = arith.constant 0 : i32
    %c0_i32_1 = arith.constant 0 : i32
    return %c0_i32, %c0_i32_0 : i32, i32
  }
  func.func @transform_14(%arg0: i32) -> (i32, i32) {
    %c0_i32 = arith.constant 0 : i32
    %c0_i32_0 = arith.constant 0 : i32
    %c0_i32_1 = arith.constant 0 : i32
    return %c0_i32, %c0_i32_0 : i32, i32
  }
  func.func @transform_15(%arg0: i32) -> (i32, i32) {
    %c0_i32 = arith.constant 0 : i32
    %c0_i32_0 = arith.constant 0 : i32
    %c0_i32_1 = arith.constant 0 : i32
    return %c0_i32, %c0_i32_0 : i32, i32
  }
  func.func @transform_16(%arg0: i32) -> (i32, i32, i32) {
    %c0_i32 = arith.constant 0 : i32
    %c0_i32_0 = arith.constant 0 : i32
    %c0_i32_1 = arith.constant 0 : i32
    return %arg0, %c0_i32, %c0_i32_0 : i32, i32, i32
  }
  func.func @transform_17(%arg0: i32) -> (i32, i32, i32) {
    %c0_i32 = arith.constant 0 : i32
    %c0_i32_0 = arith.constant 0 : i32
    %c0_i32_1 = arith.constant 0 : i32
    return %arg0, %c0_i32, %c0_i32_0 : i32, i32, i32
  }
  func.func @transform_18(%arg0: i32) -> (i32, i32) {
    %c0_i32 = arith.constant 0 : i32
    %c0_i32_0 = arith.constant 0 : i32
    %c0_i32_1 = arith.constant 0 : i32
    return %c0_i32, %c0_i32_0 : i32, i32
  }
}

</mosaic_0001>

<llo_original>
// kernel: _forward_impl.2
$region0: #{_forward_impl.2}
  #allocation0 [shape = 'u32[]', space=smem, size = 0x4, offset = 0x4, fixed_abs, tag = 'smem constant byte address 0x4 - core index']
  #allocation1 [shape = 'u32[144,128]{1,0:T(1,128)}', space=vmem, size = 0x12000, scoped, tag = 'internal scratch']
  %s0 = inlined_call_operand.vmem [shape: f32[8,2,32], index: 0, kind: input, shape index: {}]
  %s1 = inlined_call_operand.vmem [shape: f32[32,96], index: 1, kind: input, shape index: {}]
  %s2 = inlined_call_operand.vmem [shape: f32[32,96], index: 2, kind: input, shape index: {}]
  %s3 = inlined_call_operand.vmem [shape: f32[1,96], index: 3, kind: input, shape index: {}]
  %s4 = inlined_call_operand.vmem [shape: f32[1,96], index: 4, kind: input, shape index: {}]
  %s5 = inlined_call_operand.vmem [shape: f32[8,2,32], index: 5, kind: output, shape index: {0}]
  %s6 = inlined_call_operand.vmem [shape: f32[2,32], index: 6, kind: output, shape index: {1}]
  %7 = xla_tuple %s5, %s6
  %s8 = sld [smem:[#allocation0]]
  $region38: #{_forward_impl.2} parent=0
    _
  %s10 = ssub.s32 1, %s8
  %s11 = scalar_select 0, %s10, %s8
  // Predicated region
  $region2: #{_forward_impl.2} parent=0 // pred_check
    _
  $region3: #{_forward_impl.2} parent=0 // pred_check_branch
    %13 = sbr.rel (0) target = $region5
  $region4: #{_forward_impl.2} parent=0 // pred_region
    _
  $region5: #{_forward_impl.2} parent=0 // pred_fallthru
    _
  // Predicated region
  $region6: #{_forward_impl.2} parent=0 // pred_check
    _
  $region7: #{_forward_impl.2} parent=0 // pred_check_branch
    %15 = sbr.rel (0) target = $region9
  $region8: #{_forward_impl.2} parent=0 // pred_region
    _
  $region9: #{_forward_impl.2} parent=0 // pred_fallthru
    _
  // Predicated region
  $region10: #{_forward_impl.2} parent=0 // pred_check
    _
  $region11: #{_forward_impl.2} parent=0 // pred_check_branch
    %17 = sbr.rel (0) target = $region13
  $region12: #{_forward_impl.2} parent=0 // pred_region
    _
  $region13: #{_forward_impl.2} parent=0 // pred_fallthru
    _
  // Predicated region
  $region14: #{_forward_impl.2} parent=0 // pred_check
    _
  $region15: #{_forward_impl.2} parent=0 // pred_check_branch
    %19 = sbr.rel (0) target = $region17
  $region16: #{_forward_impl.2} parent=0 // pred_region
    _
  $region17: #{_forward_impl.2} parent=0 // pred_fallthru
    _
  // Predicated region
  $region18: #{_forward_impl.2} parent=0 // pred_check
    _
  $region19: #{_forward_impl.2} parent=0 // pred_check_branch
    %21 = sbr.rel (0) target = $region21
  $region20: #{_forward_impl.2} parent=0 // pred_region
    _
  $region21: #{_forward_impl.2} parent=0 // pred_fallthru
    _
  %v22 = vld [vmem:[%s1] sm:$0xff]
  %v23 = vld [vmem:[%s1 + $0x8] sm:$0xff]
  %v24 = vld [vmem:[%s1 + $0x10] sm:$0xff]
  %v25 = vld [vmem:[%s1 + $0x18] sm:$0xff]
  %v26 = vld [vmem:[%s2] sm:$0xff]
  %v27 = vld [vmem:[%s2 + $0x8] sm:$0xff]
  %v28 = vld [vmem:[%s2 + $0x10] sm:$0xff]
  %v29 = vld [vmem:[%s2 + $0x18] sm:$0xff]
  %v30 = vld [vmem:[%s3] sm:$0x1]
  %v31 = vld [vmem:[%s4] sm:$0x1]
  %v32 = vld [vmem:[%s0] sm:$0x3]
  %v34 = vlaneseq
  %v35 = vshrl.u32 %v34, 7
  %v36 = vsub.s32 0, %v35
  %v37 = vrot.slane %v30, %v36
  %vm39 = vcmask 261120
  %v41 = vsel %vm39, %v32, 0
  %43 = vmatprep.subr.mxu0 0.0
  %44 = vmatpush1.msra.mxu0 0.0
  %45 = vmatprep.subr.mxu0 0.0
  %46 = vmatpush1.msra.mxu0 0.0
  %47 = vmatprep.subr.mxu0 0.0
  %48 = vmatpush1.msra.mxu0 0.0
  %49 = vmatprep.subr.mxu0 0.0
  %50 = vmatpush1.msra.mxu0 0.0
  %51 = vmatprep.subr.mxu0 0.0
  %52 = vmatpush1.msra.mxu0 0.0
  %53 = vmatprep.subr.mxu0 0.0
  %54 = vmatpush1.msra.mxu0 0.0
  %55 = vmatprep.subr.mxu0 0.0
  %56 = vmatpush1.msra.mxu0 0.0
  %57 = vmatprep.subr.mxu0 0.0
  %58 = vmatpush1.msra.mxu0 0.0
  %59 = vmatprep.subr.mxu0 0.0
  %60 = vmatpush1.msra.mxu0 0.0
  %61 = vmatprep.subr.mxu0 0.0
  %62 = vmatpush1.msra.mxu0 0.0
  %63 = vmatprep.subr.mxu0 0.0
  %64 = vmatpush1.msra.mxu0 0.0
  %65 = vmatprep.subr.mxu0 0.0
  %66 = vmatpush1.msra.mxu0 0.0
  %67 = vmatprep.subr.mxu0 0.0
  %68 = vmatpush1.msra.mxu0 %v25
  %69 = vmatprep.subr.mxu0 0.0
  %70 = vmatpush1.msra.mxu0 %v24
  %71 = vmatprep.subr.mxu0 0.0
  %72 = vmatpush1.msra.mxu0 %v23
  %73 = vmatprep.subr.mxu0 0.0
  %74 = vmatpush1.msra.mxu0 %v22
  %75 = vmatprep.subr.mxu0 0.0
  %76 = vmatpush2.msra.mxu0 0.0
  %77 = vmatprep.subr.mxu0 0.0
  %78 = vmatpush2.msra.mxu0 0.0
  %79 = vmatprep.subr.mxu0 0.0
  %80 = vmatpush2.msra.mxu0 0.0
  %81 = vmatprep.subr.mxu0 0.0
  %82 = vmatpush2.msra.mxu0 0.0
  %83 = vmatprep.subr.mxu0 0.0
  %84 = vmatpush2.msra.mxu0 0.0
  %85 = vmatprep.subr.mxu0 0.0
  %86 = vmatpush2.msra.mxu0 0.0
  %87 = vmatprep.subr.mxu0 0.0
  %88 = vmatpush2.msra.mxu0 0.0
  %89 = vmatprep.subr.mxu0 0.0
  %90 = vmatpush2.msra.mxu0 0.0
  %91 = vmatprep.subr.mxu0 0.0
  %92 = vmatpush2.msra.mxu0 0.0
  %93 = vmatprep.subr.mxu0 0.0
  %94 = vmatpush2.msra.mxu0 0.0
  %95 = vmatprep.subr.mxu0 0.0
  %96 = vmatpush2.msra.mxu0 0.0
  %97 = vmatprep.subr.mxu0 0.0
  %98 = vmatpush2.msra.mxu0 0.0
  %99 = vmatprep.subr.mxu0 0.0
  %100 = vmatpush2.msra.mxu0 0.0
  %101 = vmatprep.subr.mxu0 0.0
  %102 = vmatpush2.msra.mxu0 0.0
  %103 = vmatprep.subr.mxu0 0.0
  %104 = vmatpush2.msra.mxu0 0.0
  %105 = vmatprep.subr.mxu0 0.0
  %106 = vmatpush2.msra.mxu0 0.0
  %107 = vmatprep.mubr.f32.mxu0 0.0
  %108 = vmatmul.mubr.f32.gmra.mxu0 %v41
  %v109 = vpop.f32.mrf.mxu0
  %v110 = vadd.f32 %v37, %v109
  %v111 = vpop.f32.mrf.mxu0
  %112 = vdwg.mxu0
  %v114 = vlaneseq
  %v115 = vshrl.u32 %v114, 7
  %v116 = vsub.s32 0, %v115
  %v117 = vrot.slane %v31, %v116
  %v120 = vsel %vm39, 0.0, 0
  %122 = vmatprep.subr.mxu0 0.0
  %123 = vmatpush1.msra.mxu0 0.0
  %124 = vmatprep.subr.mxu0 0.0
  %125 = vmatpush1.msra.mxu0 0.0
  %126 = vmatprep.subr.mxu0 0.0
  %127 = vmatpush1.msra.mxu0 0.0
  %128 = vmatprep.subr.mxu0 0.0
  %129 = vmatpush1.msra.mxu0 0.0
  %130 = vmatprep.subr.mxu0 0.0
  %131 = vmatpush1.msra.mxu0 0.0
  %132 = vmatprep.subr.mxu0 0.0
  %133 = vmatpush1.msra.mxu0 0.0
  %134 = vmatprep.subr.mxu0 0.0
  %135 = vmatpush1.msra.mxu0 0.0
  %136 = vmatprep.subr.mxu0 0.0
  %137 = vmatpush1.msra.mxu0 0.0
  %138 = vmatprep.subr.mxu0 0.0
  %139 = vmatpush1.msra.mxu0 0.0
  %140 = vmatprep.subr.mxu0 0.0
  %141 = vmatpush1.msra.mxu0 0.0
  %142 = vmatprep.subr.mxu0 0.0
  %143 = vmatpush1.msra.mxu0 0.0
  %144 = vmatprep.subr.mxu0 0.0
  %145 = vmatpush1.msra.mxu0 0.0
  %146 = vmatprep.subr.mxu0 0.0
  %147 = vmatpush1.msra.mxu0 %v29
  %148 = vmatprep.subr.mxu0 0.0
  %149 = vmatpush1.msra.mxu0 %v28
  %150 = vmatprep.subr.mxu0 0.0
  %151 = vmatpush1.msra.mxu0 %v27
  %152 = vmatprep.subr.mxu0 0.0
  %153 = vmatpush1.msra.mxu0 %v26
  %154 = vmatprep.subr.mxu0 0.0
  %155 = vmatpush2.msra.mxu0 0.0
  %156 = vmatprep.subr.mxu0 0.0
  %157 = vmatpush2.msra.mxu0 0.0
  %158 = vmatprep.subr.mxu0 0.0
  %159 = vmatpush2.msra.mxu0 0.0
  %160 = vmatprep.subr.mxu0 0.0
  %161 = vmatpush2.msra.mxu0 0.0
  %162 = vmatprep.subr.mxu0 0.0
  %163 = vmatpush2.msra.mxu0 0.0
  %164 = vmatprep.subr.mxu0 0.0
  %165 = vmatpush2.msra.mxu0 0.0
  %166 = vmatprep.subr.mxu0 0.0
  %167 = vmatpush2.msra.mxu0 0.0
  %168 = vmatprep.subr.mxu0 0.0
  %169 = vmatpush2.msra.mxu0 0.0
  %170 = vmatprep.subr.mxu0 0.0
  %171 = vmatpush2.msra.mxu0 0.0
  %172 = vmatprep.subr.mxu0 0.0
  %173 = vmatpush2.msra.mxu0 0.0
  %174 = vmatprep.subr.mxu0 0.0
  %175 = vmatpush2.msra.mxu0 0.0
  %176 = vmatprep.subr.mxu0 0.0
  %177 = vmatpush2.msra.mxu0 0.0
  %178 = vmatprep.subr.mxu0 0.0
  %179 = vmatpush2.msra.mxu0 0.0
  %180 = vmatprep.subr.mxu0 0.0
  %181 = vmatpush2.msra.mxu0 0.0
  %182 = vmatprep.subr.mxu0 0.0
  %183 = vmatpush2.msra.mxu0 0.0
  %184 = vmatprep.subr.mxu0 0.0
  %185 = vmatpush2.msra.mxu0 0.0
  %186 = vmatprep.mubr.f32.mxu0 0.0
  %187 = vmatmul.mubr.f32.gmra.mxu0 %v120
  %v188 = vpop.f32.mrf.mxu0
  %v189 = vadd.f32 %v117, %v188
  %v190 = vpop.f32.mrf.mxu0
  %191 = vdwg.mxu0
  %v192 = vadd.f32 %v110, %v189
  %v193 = vxor.u32 %v192, 2147483648
  %v194 = vmul.f32 %v193, 1.442695
  %v195 = vpow.pop %v194
  %v196 = vadd.f32 %v195, 1.0
  %v197 = vrcp.pop %v196
  %v198 = vmul.f32 1.0, %v197
  %200 = vrot.lane.b32.xlu0 %v189, 64
  %v201 = vpop.permute.xlu0 %200
  %v203 = vmul.f32 %v198, %v201
  %205 = vrot.lane.b32.xlu0 %v203, 64
  %v206 = vpop.permute.xlu0 %205
  %v208 = vadd.f32 %v110, %v206
  %v209 = vtanh.pop %v208
  %v210 = vsub.f32 1.0, %v198
  %212 = vrot.lane.b32.xlu0 %v209, 96
  %v213 = vpop.permute.xlu0 %212
  %v215 = vmul.f32 %v210, %v213
  %v216 = vmul.f32 %v198, 0.0
  %v217 = vadd.f32 %v215, %v216
  %219 = vrot.lane.b32.xlu0 %v217, 96
  %v220 = vpop.permute.xlu0 %219
  %vm222 = vcmask 254976
  %223 = vst.msk [vmem:[%s5] sm:$0x3] %vm222, %v220
  %s224 = scalar_lea.vmem %s0, 2
  %v225 = vld [vmem:[%s224] sm:$0x3]
  %v227 = vsel %vm39, %v225, 0
  %229 = vmatprep.subr.mxu0 0.0
  %230 = vmatpush1.msra.mxu0 0.0
  %231 = vmatprep.subr.mxu0 0.0
  %232 = vmatpush1.msra.mxu0 0.0
  %233 = vmatprep.subr.mxu0 0.0
  %234 = vmatpush1.msra.mxu0 0.0
  %235 = vmatprep.subr.mxu0 0.0
  %236 = vmatpush1.msra.mxu0 0.0
  %237 = vmatprep.subr.mxu0 0.0
  %238 = vmatpush1.msra.mxu0 0.0
  %239 = vmatprep.subr.mxu0 0.0
  %240 = vmatpush1.msra.mxu0 0.0
  %241 = vmatprep.subr.mxu0 0.0
  %242 = vmatpush1.msra.mxu0 0.0
  %243 = vmatprep.subr.mxu0 0.0
  %244 = vmatpush1.msra.mxu0 0.0
  %245 = vmatprep.subr.mxu0 0.0
  %246 = vmatpush1.msra.mxu0 0.0
  %247 = vmatprep.subr.mxu0 0.0
  %248 = vmatpush1.msra.mxu0 0.0
  %249 = vmatprep.subr.mxu0 0.0
  %250 = vmatpush1.msra.mxu0 0.0
  %251 = vmatprep.subr.mxu0 0.0
  %252 = vmatpush1.msra.mxu0 0.0
  %253 = vmatprep.subr.mxu0 0.0
  %254 = vmatpush1.msra.mxu0 %v25
  %255 = vmatprep.subr.mxu0 0.0
  %256 = vmatpush1.msra.mxu0 %v24
  %257 = vmatprep.subr.mxu0 0.0
  %258 = vmatpush1.msra.mxu0 %v23
  %259 = vmatprep.subr.mxu0 0.0
  %260 = vmatpush1.msra.mxu0 %v22
  %261 = vmatprep.subr.mxu0 0.0
  %262 = vmatpush2.msra.mxu0 0.0
  %263 = vmatprep.subr.mxu0 0.0
  %264 = vmatpush2.msra.mxu0 0.0
  %265 = vmatprep.subr.mxu0 0.0
  %266 = vmatpush2.msra.mxu0 0.0
  %267 = vmatprep.subr.mxu0 0.0
  %268 = vmatpush2.msra.mxu0 0.0
  %269 = vmatprep.subr.mxu0 0.0
  %270 = vmatpush2.msra.mxu0 0.0
  %271 = vmatprep.subr.mxu0 0.0
  %272 = vmatpush2.msra.mxu0 0.0
  %273 = vmatprep.subr.mxu0 0.0
  %274 = vmatpush2.msra.mxu0 0.0
  %275 = vmatprep.subr.mxu0 0.0
  %276 = vmatpush2.msra.mxu0 0.0
  %277 = vmatprep.subr.mxu0 0.0
  %278 = vmatpush2.msra.mxu0 0.0
  %279 = vmatprep.subr.mxu0 0.0
  %280 = vmatpush2.msra.mxu0 0.0
  %281 = vmatprep.subr.mxu0 0.0
  %282 = vmatpush2.msra.mxu0 0.0
  %283 = vmatprep.subr.mxu0 0.0
  %284 = vmatpush2.msra.mxu0 0.0
  %285 = vmatprep.subr.mxu0 0.0
  %286 = vmatpush2.msra.mxu0 0.0
  %287 = vmatprep.subr.mxu0 0.0
  %288 = vmatpush2.msra.mxu0 0.0
  %289 = vmatprep.subr.mxu0 0.0
  %290 = vmatpush2.msra.mxu0 0.0
  %291 = vmatprep.subr.mxu0 0.0
  %292 = vmatpush2.msra.mxu0 0.0
  %293 = vmatprep.mubr.f32.mxu0 0.0
  %294 = vmatmul.mubr.f32.gmra.mxu0 %v227
  %v295 = vpop.f32.mrf.mxu0
  %v296 = vadd.f32 %v37, %v295
  %v297 = vpop.f32.mrf.mxu0
  %298 = vdwg.mxu0
  %v299 = vsel %vm39, %v220, 0
  %301 = vmatprep.subr.mxu0 0.0
  %302 = vmatpush1.msra.mxu0 0.0
  %303 = vmatprep.subr.mxu0 0.0
  %304 = vmatpush1.msra.mxu0 0.0
  %305 = vmatprep.subr.mxu0 0.0
  %306 = vmatpush1.msra.mxu0 0.0
  %307 = vmatprep.subr.mxu0 0.0
  %308 = vmatpush1.msra.mxu0 0.0
  %309 = vmatprep.subr.mxu0 0.0
  %310 = vmatpush1.msra.mxu0 0.0
  %311 = vmatprep.subr.mxu0 0.0
  %312 = vmatpush1.msra.mxu0 0.0
  %313 = vmatprep.subr.mxu0 0.0
  %314 = vmatpush1.msra.mxu0 0.0
  %315 = vmatprep.subr.mxu0 0.0
  %316 = vmatpush1.msra.mxu0 0.0
  %317 = vmatprep.subr.mxu0 0.0
  %318 = vmatpush1.msra.mxu0 0.0
  %319 = vmatprep.subr.mxu0 0.0
  %320 = vmatpush1.msra.mxu0 0.0
  %321 = vmatprep.subr.mxu0 0.0
  %322 = vmatpush1.msra.mxu0 0.0
  %323 = vmatprep.subr.mxu0 0.0
  %324 = vmatpush1.msra.mxu0 0.0
  %325 = vmatprep.subr.mxu0 0.0
  %326 = vmatpush1.msra.mxu0 %v29
  %327 = vmatprep.subr.mxu0 0.0
  %328 = vmatpush1.msra.mxu0 %v28
  %329 = vmatprep.subr.mxu0 0.0
  %330 = vmatpush1.msra.mxu0 %v27
  %331 = vmatprep.subr.mxu0 0.0
  %332 = vmatpush1.msra.mxu0 %v26
  %333 = vmatprep.subr.mxu0 0.0
  %334 = vmatpush2.msra.mxu0 0.0
  %335 = vmatprep.subr.mxu0 0.0
  %336 = vmatpush2.msra.mxu0 0.0
  %337 = vmatprep.subr.mxu0 0.0
  %338 = vmatpush2.msra.mxu0 0.0
  %339 = vmatprep.subr.mxu0 0.0
  %340 = vmatpush2.msra.mxu0 0.0
  %341 = vmatprep.subr.mxu0 0.0
  %342 = vmatpush2.msra.mxu0 0.0
  %343 = vmatprep.subr.mxu0 0.0
  %344 = vmatpush2.msra.mxu0 0.0
  %345 = vmatprep.subr.mxu0 0.0
  %346 = vmatpush2.msra.mxu0 0.0
  %347 = vmatprep.subr.mxu0 0.0
  %348 = vmatpush2.msra.mxu0 0.0
  %349 = vmatprep.subr.mxu0 0.0
  %350 = vmatpush2.msra.mxu0 0.0
  %351 = vmatprep.subr.mxu0 0.0
  %352 = vmatpush2.msra.mxu0 0.0
  %353 = vmatprep.subr.mxu0 0.0
  %354 = vmatpush2.msra.mxu0 0.0
  %355 = vmatprep.subr.mxu0 0.0
  %356 = vmatpush2.msra.mxu0 0.0
  %357 = vmatprep.subr.mxu0 0.0
  %358 = vmatpush2.msra.mxu0 0.0
  %359 = vmatprep.subr.mxu0 0.0
  %360 = vmatpush2.msra.mxu0 0.0
  %361 = vmatprep.subr.mxu0 0.0
  %362 = vmatpush2.msra.mxu0 0.0
  %363 = vmatprep.subr.mxu0 0.0
  %364 = vmatpush2.msra.mxu0 0.0
  %365 = vmatprep.mubr.f32.mxu0 0.0
  %366 = vmatmul.mubr.f32.gmra.mxu0 %v299
  %v367 = vpop.f32.mrf.mxu0
  %v368 = vadd.f32 %v117, %v367
  %v369 = vpop.f32.mrf.mxu0
  %370 = vdwg.mxu0
  %v371 = vadd.f32 %v296, %v368
  %v372 = vxor.u32 %v371, 2147483648
  %v373 = vmul.f32 %v372, 1.442695
  %v374 = vpow.pop %v373
  %v375 = vadd.f32 %v374, 1.0
  %v376 = vrcp.pop %v375
  %v377 = vmul.f32 1.0, %v376
  %379 = vrot.lane.b32.xlu0 %v368, 64
  %v380 = vpop.permute.xlu0 %379
  %v382 = vmul.f32 %v377, %v380
  %384 = vrot.lane.b32.xlu0 %v382, 64
  %v385 = vpop.permute.xlu0 %384
  %v387 = vadd.f32 %v296, %v385
  %v388 = vtanh.pop %v387
  %v389 = vsub.f32 1.0, %v377
  %391 = vrot.lane.b32.xlu0 %v388, 96
  %v392 = vpop.permute.xlu0 %391
  %v394 = vmul.f32 %v389, %v392
  %v395 = vmul.f32 %v377, %v217
  %v396 = vadd.f32 %v394, %v395
  %398 = vrot.lane.b32.xlu0 %v396, 96
  %v399 = vpop.permute.xlu0 %398
  %s401 = scalar_lea.vmem %s5, 2
  %402 = vst.msk [vmem:[%s401] sm:$0x3] %vm222, %v399
  %s403 = scalar_lea.vmem %s0, 4
  %v404 = vld [vmem:[%s403] sm:$0x3]
  %v406 = vsel %vm39, %v404, 0
  %408 = vmatprep.subr.mxu0 0.0
  %409 = vmatpush1.msra.mxu0 0.0
  %410 = vmatprep.subr.mxu0 0.0
  %411 = vmatpush1.msra.mxu0 0.0
  %412 = vmatprep.subr.mxu0 0.0
  %413 = vmatpush1.msra.mxu0 0.0
  %414 = vmatprep.subr.mxu0 0.0
  %415 = vmatpush1.msra.mxu0 0.0
  %416 = vmatprep.subr.mxu0 0.0
  %417 = vmatpush1.msra.mxu0 0.0
  %418 = vmatprep.subr.mxu0 0.0
  %419 = vmatpush1.msra.mxu0 0.0
  %420 = vmatprep.subr.mxu0 0.0
  %421 = vmatpush1.msra.mxu0 0.0
  %422 = vmatprep.subr.mxu0 0.0
  %423 = vmatpush1.msra.mxu0 0.0
  %424 = vmatprep.subr.mxu0 0.0
  %425 = vmatpush1.msra.mxu0 0.0
  %426 = vmatprep.subr.mxu0 0.0
  %427 = vmatpush1.msra.mxu0 0.0
  %428 = vmatprep.subr.mxu0 0.0
  %429 = vmatpush1.msra.mxu0 0.0
  %430 = vmatprep.subr.mxu0 0.0
  %431 = vmatpush1.msra.mxu0 0.0
  %432 = vmatprep.subr.mxu0 0.0
  %433 = vmatpush1.msra.mxu0 %v25
  %434 = vmatprep.subr.mxu0 0.0
  %435 = vmatpush1.msra.mxu0 %v24
  %436 = vmatprep.subr.mxu0 0.0
  %437 = vmatpush1.msra.mxu0 %v23
  %438 = vmatprep.subr.mxu0 0.0
  %439 = vmatpush1.msra.mxu0 %v22
  %440 = vmatprep.subr.mxu0 0.0
  %441 = vmatpush2.msra.mxu0 0.0
  %442 = vmatprep.subr.mxu0 0.0
  %443 = vmatpush2.msra.mxu0 0.0
  %444 = vmatprep.subr.mxu0 0.0
  %445 = vmatpush2.msra.mxu0 0.0
  %446 = vmatprep.subr.mxu0 0.0
  %447 = vmatpush2.msra.mxu0 0.0
  %448 = vmatprep.subr.mxu0 0.0
  %449 = vmatpush2.msra.mxu0 0.0
  %450 = vmatprep.subr.mxu0 0.0
  %451 = vmatpush2.msra.mxu0 0.0
  %452 = vmatprep.subr.mxu0 0.0
  %453 = vmatpush2.msra.mxu0 0.0
  %454 = vmatprep.subr.mxu0 0.0
  %455 = vmatpush2.msra.mxu0 0.0
  %456 = vmatprep.subr.mxu0 0.0
  %457 = vmatpush2.msra.mxu0 0.0
  %458 = vmatprep.subr.mxu0 0.0
  %459 = vmatpush2.msra.mxu0 0.0
  %460 = vmatprep.subr.mxu0 0.0
  %461 = vmatpush2.msra.mxu0 0.0
  %462 = vmatprep.subr.mxu0 0.0
  %463 = vmatpush2.msra.mxu0 0.0
  %464 = vmatprep.subr.mxu0 0.0
  %465 = vmatpush2.msra.mxu0 0.0
  %466 = vmatprep.subr.mxu0 0.0
  %467 = vmatpush2.msra.mxu0 0.0
  %468 = vmatprep.subr.mxu0 0.0
  %469 = vmatpush2.msra.mxu0 0.0
  %470 = vmatprep.subr.mxu0 0.0
  %471 = vmatpush2.msra.mxu0 0.0
  %472 = vmatprep.mubr.f32.mxu0 0.0
  %473 = vmatmul.mubr.f32.gmra.mxu0 %v406
  %v474 = vpop.f32.mrf.mxu0
  %v475 = vadd.f32 %v37, %v474
  %v476 = vpop.f32.mrf.mxu0
  %477 = vdwg.mxu0
  %v478 = vsel %vm39, %v399, 0
  %480 = vmatprep.subr.mxu0 0.0
  %481 = vmatpush1.msra.mxu0 0.0
  %482 = vmatprep.subr.mxu0 0.0
  %483 = vmatpush1.msra.mxu0 0.0
  %484 = vmatprep.subr.mxu0 0.0
  %485 = vmatpush1.msra.mxu0 0.0
  %486 = vmatprep.subr.mxu0 0.0
  %487 = vmatpush1.msra.mxu0 0.0
  %488 = vmatprep.subr.mxu0 0.0
  %489 = vmatpush1.msra.mxu0 0.0
  %490 = vmatprep.subr.mxu0 0.0
  %491 = vmatpush1.msra.mxu0 0.0
  %492 = vmatprep.subr.mxu0 0.0
  %493 = vmatpush1.msra.mxu0 0.0
  %494 = vmatprep.subr.mxu0 0.0
  %495 = vmatpush1.msra.mxu0 0.0
  %496 = vmatprep.subr.mxu0 0.0
  %497 = vmatpush1.msra.mxu0 0.0
  %498 = vmatprep.subr.mxu0 0.0
  %499 = vmatpush1.msra.mxu0 0.0
  %500 = vmatprep.subr.mxu0 0.0
  %501 = vmatpush1.msra.mxu0 0.0
  %502 = vmatprep.subr.mxu0 0.0
  %503 = vmatpush1.msra.mxu0 0.0
  %504 = vmatprep.subr.mxu0 0.0
  %505 = vmatpush1.msra.mxu0 %v29
  %506 = vmatprep.subr.mxu0 0.0
  %507 = vmatpush1.msra.mxu0 %v28
  %508 = vmatprep.subr.mxu0 0.0
  %509 = vmatpush1.msra.mxu0 %v27
  %510 = vmatprep.subr.mxu0 0.0
  %511 = vmatpush1.msra.mxu0 %v26
  %512 = vmatprep.subr.mxu0 0.0
  %513 = vmatpush2.msra.mxu0 0.0
  %514 = vmatprep.subr.mxu0 0.0
  %515 = vmatpush2.msra.mxu0 0.0
  %516 = vmatprep.subr.mxu0 0.0
  %517 = vmatpush2.msra.mxu0 0.0
  %518 = vmatprep.subr.mxu0 0.0
  %519 = vmatpush2.msra.mxu0 0.0
  %520 = vmatprep.subr.mxu0 0.0
  %521 = vmatpush2.msra.mxu0 0.0
  %522 = vmatprep.subr.mxu0 0.0
  %523 = vmatpush2.msra.mxu0 0.0
  %524 = vmatprep.subr.mxu0 0.0
  %525 = vmatpush2.msra.mxu0 0.0
  %526 = vmatprep.subr.mxu0 0.0
  %527 = vmatpush2.msra.mxu0 0.0
  %528 = vmatprep.subr.mxu0 0.0
  %529 = vmatpush2.msra.mxu0 0.0
  %530 = vmatprep.subr.mxu0 0.0
  %531 = vmatpush2.msra.mxu0 0.0
  %532 = vmatprep.subr.mxu0 0.0
  %533 = vmatpush2.msra.mxu0 0.0
  %534 = vmatprep.subr.mxu0 0.0
  %535 = vmatpush2.msra.mxu0 0.0
  %536 = vmatprep.subr.mxu0 0.0
  %537 = vmatpush2.msra.mxu0 0.0
  %538 = vmatprep.subr.mxu0 0.0
  %539 = vmatpush2.msra.mxu0 0.0
  %540 = vmatprep.subr.mxu0 0.0
  %541 = vmatpush2.msra.mxu0 0.0
  %542 = vmatprep.subr.mxu0 0.0
  %543 = vmatpush2.msra.mxu0 0.0
  %544 = vmatprep.mubr.f32.mxu0 0.0
  %545 = vmatmul.mubr.f32.gmra.mxu0 %v478
  %v546 = vpop.f32.mrf.mxu0
  %v547 = vadd.f32 %v117, %v546
  %v548 = vpop.f32.mrf.mxu0
  %549 = vdwg.mxu0
  %v550 = vadd.f32 %v475, %v547
  %v551 = vxor.u32 %v550, 2147483648
  %v552 = vmul.f32 %v551, 1.442695
  %v553 = vpow.pop %v552
  %v554 = vadd.f32 %v553, 1.0
  %v555 = vrcp.pop %v554
  %v556 = vmul.f32 1.0, %v555
  %558 = vrot.lane.b32.xlu0 %v547, 64
  %v559 = vpop.permute.xlu0 %558
  %v561 = vmul.f32 %v556, %v559
  %563 = vrot.lane.b32.xlu0 %v561, 64
  %v564 = vpop.permute.xlu0 %563
  %v566 = vadd.f32 %v475, %v564
  %v567 = vtanh.pop %v566
  %v568 = vsub.f32 1.0, %v556
  %570 = vrot.lane.b32.xlu0 %v567, 96
  %v571 = vpop.permute.xlu0 %570
  %v573 = vmul.f32 %v568, %v571
  %v574 = vmul.f32 %v556, %v396
  %v575 = vadd.f32 %v573, %v574
  %577 = vrot.lane.b32.xlu0 %v575, 96
  %v578 = vpop.permute.xlu0 %577
  %s580 = scalar_lea.vmem %s5, 4
  %581 = vst.msk [vmem:[%s580] sm:$0x3] %vm222, %v578
  %s582 = scalar_lea.vmem %s0, 6
  %v583 = vld [vmem:[%s582] sm:$0x3]
  %v585 = vsel %vm39, %v583, 0
  %587 = vmatprep.subr.mxu0 0.0
  %588 = vmatpush1.msra.mxu0 0.0
  %589 = vmatprep.subr.mxu0 0.0
  %590 = vmatpush1.msra.mxu0 0.0
  %591 = vmatprep.subr.mxu0 0.0
  %592 = vmatpush1.msra.mxu0 0.0
  %593 = vmatprep.subr.mxu0 0.0
  %594 = vmatpush1.msra.mxu0 0.0
  %595 = vmatprep.subr.mxu0 0.0
  %596 = vmatpush1.msra.mxu0 0.0
  %597 = vmatprep.subr.mxu0 0.0
  %598 = vmatpush1.msra.mxu0 0.0
  %599 = vmatprep.subr.mxu0 0.0
  %600 = vmatpush1.msra.mxu0 0.0
  %601 = vmatprep.subr.mxu0 0.0
  %602 = vmatpush1.msra.mxu0 0.0
  %603 = vmatprep.subr.mxu0 0.0
  %604 = vmatpush1.msra.mxu0 0.0
  %605 = vmatprep.subr.mxu0 0.0
  %606 = vmatpush1.msra.mxu0 0.0
  %607 = vmatprep.subr.mxu0 0.0
  %608 = vmatpush1.msra.mxu0 0.0
  %609 = vmatprep.subr.mxu0 0.0
  %610 = vmatpush1.msra.mxu0 0.0
  %611 = vmatprep.subr.mxu0 0.0
  %612 = vmatpush1.msra.mxu0 %v25
  %613 = vmatprep.subr.mxu0 0.0
  %614 = vmatpush1.msra.mxu0 %v24
  %615 = vmatprep.subr.mxu0 0.0
  %616 = vmatpush1.msra.mxu0 %v23
  %617 = vmatprep.subr.mxu0 0.0
  %618 = vmatpush1.msra.mxu0 %v22
  %619 = vmatprep.subr.mxu0 0.0
  %620 = vmatpush2.msra.mxu0 0.0
  %621 = vmatprep.subr.mxu0 0.0
  %622 = vmatpush2.msra.mxu0 0.0
  %623 = vmatprep.subr.mxu0 0.0
  %624 = vmatpush2.msra.mxu0 0.0
  %625 = vmatprep.subr.mxu0 0.0
  %626 = vmatpush2.msra.mxu0 0.0
  %627 = vmatprep.subr.mxu0 0.0
  %628 = vmatpush2.msra.mxu0 0.0
  %629 = vmatprep.subr.mxu0 0.0
  %630 = vmatpush2.msra.mxu0 0.0
  %631 = vmatprep.subr.mxu0 0.0
  %632 = vmatpush2.msra.mxu0 0.0
  %633 = vmatprep.subr.mxu0 0.0
  %634 = vmatpush2.msra.mxu0 0.0
  %635 = vmatprep.subr.mxu0 0.0
  %636 = vmatpush2.msra.mxu0 0.0
  %637 = vmatprep.subr.mxu0 0.0
  %638 = vmatpush2.msra.mxu0 0.0
  %639 = vmatprep.subr.mxu0 0.0
  %640 = vmatpush2.msra.mxu0 0.0
  %641 = vmatprep.subr.mxu0 0.0
  %642 = vmatpush2.msra.mxu0 0.0
  %643 = vmatprep.subr.mxu0 0.0
  %644 = vmatpush2.msra.mxu0 0.0
  %645 = vmatprep.subr.mxu0 0.0
  %646 = vmatpush2.msra.mxu0 0.0
  %647 = vmatprep.subr.mxu0 0.0
  %648 = vmatpush2.msra.mxu0 0.0
  %649 = vmatprep.subr.mxu0 0.0
  %650 = vmatpush2.msra.mxu0 0.0
  %651 = vmatprep.mubr.f32.mxu0 0.0
  %652 = vmatmul.mubr.f32.gmra.mxu0 %v585
  %v653 = vpop.f32.mrf.mxu0
  %v654 = vadd.f32 %v37, %v653
  %v655 = vpop.f32.mrf.mxu0
  %656 = vdwg.mxu0
  %v657 = vsel %vm39, %v578, 0
  %659 = vmatprep.subr.mxu0 0.0
  %660 = vmatpush1.msra.mxu0 0.0
  %661 = vmatprep.subr.mxu0 0.0
  %662 = vmatpush1.msra.mxu0 0.0
  %663 = vmatprep.subr.mxu0 0.0
  %664 = vmatpush1.msra.mxu0 0.0
  %665 = vmatprep.subr.mxu0 0.0
  %666 = vmatpush1.msra.mxu0 0.0
  %667 = vmatprep.subr.mxu0 0.0
  %668 = vmatpush1.msra.mxu0 0.0
  %669 = vmatprep.subr.mxu0 0.0
  %670 = vmatpush1.msra.mxu0 0.0
  %671 = vmatprep.subr.mxu0 0.0
  %672 = vmatpush1.msra.mxu0 0.0
  %673 = vmatprep.subr.mxu0 0.0
  %674 = vmatpush1.msra.mxu0 0.0
  %675 = vmatprep.subr.mxu0 0.0
  %676 = vmatpush1.msra.mxu0 0.0
  %677 = vmatprep.subr.mxu0 0.0
  %678 = vmatpush1.msra.mxu0 0.0
  %679 = vmatprep.subr.mxu0 0.0
  %680 = vmatpush1.msra.mxu0 0.0
  %681 = vmatprep.subr.mxu0 0.0
  %682 = vmatpush1.msra.mxu0 0.0
  %683 = vmatprep.subr.mxu0 0.0
  %684 = vmatpush1.msra.mxu0 %v29
  %685 = vmatprep.subr.mxu0 0.0
  %686 = vmatpush1.msra.mxu0 %v28
  %687 = vmatprep.subr.mxu0 0.0
  %688 = vmatpush1.msra.mxu0 %v27
  %689 = vmatprep.subr.mxu0 0.0
  %690 = vmatpush1.msra.mxu0 %v26
  %691 = vmatprep.subr.mxu0 0.0
  %692 = vmatpush2.msra.mxu0 0.0
  %693 = vmatprep.subr.mxu0 0.0
  %694 = vmatpush2.msra.mxu0 0.0
  %695 = vmatprep.subr.mxu0 0.0
  %696 = vmatpush2.msra.mxu0 0.0
  %697 = vmatprep.subr.mxu0 0.0
  %698 = vmatpush2.msra.mxu0 0.0
  %699 = vmatprep.subr.mxu0 0.0
  %700 = vmatpush2.msra.mxu0 0.0
  %701 = vmatprep.subr.mxu0 0.0
  %702 = vmatpush2.msra.mxu0 0.0
  %703 = vmatprep.subr.mxu0 0.0
  %704 = vmatpush2.msra.mxu0 0.0
  %705 = vmatprep.subr.mxu0 0.0
  %706 = vmatpush2.msra.mxu0 0.0
  %707 = vmatprep.subr.mxu0 0.0
  %708 = vmatpush2.msra.mxu0 0.0
  %709 = vmatprep.subr.mxu0 0.0
  %710 = vmatpush2.msra.mxu0 0.0
  %711 = vmatprep.subr.mxu0 0.0
  %712 = vmatpush2.msra.mxu0 0.0
  %713 = vmatprep.subr.mxu0 0.0
  %714 = vmatpush2.msra.mxu0 0.0
  %715 = vmatprep.subr.mxu0 0.0
  %716 = vmatpush2.msra.mxu0 0.0
  %717 = vmatprep.subr.mxu0 0.0
  %718 = vmatpush2.msra.mxu0 0.0
  %719 = vmatprep.subr.mxu0 0.0
  %720 = vmatpush2.msra.mxu0 0.0
  %721 = vmatprep.subr.mxu0 0.0
  %722 = vmatpush2.msra.mxu0 0.0
  %723 = vmatprep.mubr.f32.mxu0 0.0
  %724 = vmatmul.mubr.f32.gmra.mxu0 %v657
  %v725 = vpop.f32.mrf.mxu0
  %v726 = vadd.f32 %v117, %v725
  %v727 = vpop.f32.mrf.mxu0
  %728 = vdwg.mxu0
  %v729 = vadd.f32 %v654, %v726
  %v730 = vxor.u32 %v729, 2147483648
  %v731 = vmul.f32 %v730, 1.442695
  %v732 = vpow.pop %v731
  %v733 = vadd.f32 %v732, 1.0
  %v734 = vrcp.pop %v733
  %v735 = vmul.f32 1.0, %v734
  %737 = vrot.lane.b32.xlu0 %v726, 64
  %v738 = vpop.permute.xlu0 %737
  %v740 = vmul.f32 %v735, %v738
  %742 = vrot.lane.b32.xlu0 %v740, 64
  %v743 = vpop.permute.xlu0 %742
  %v745 = vadd.f32 %v654, %v743
  %v746 = vtanh.pop %v745
  %v747 = vsub.f32 1.0, %v735
  %749 = vrot.lane.b32.xlu0 %v746, 96
  %v750 = vpop.permute.xlu0 %749
  %v752 = vmul.f32 %v747, %v750
  %v753 = vmul.f32 %v735, %v575
  %v754 = vadd.f32 %v752, %v753
  %756 = vrot.lane.b32.xlu0 %v754, 96
  %v757 = vpop.permute.xlu0 %756
  %s759 = scalar_lea.vmem %s5, 6
  %760 = vst.msk [vmem:[%s759] sm:$0x3] %vm222, %v757
  %s761 = scalar_lea.vmem %s0, 8
  %v762 = vld [vmem:[%s761] sm:$0x3]
  %v764 = vsel %vm39, %v762, 0
  %766 = vmatprep.subr.mxu0 0.0
  %767 = vmatpush1.msra.mxu0 0.0
  %768 = vmatprep.subr.mxu0 0.0
  %769 = vmatpush1.msra.mxu0 0.0
  %770 = vmatprep.subr.mxu0 0.0
  %771 = vmatpush1.msra.mxu0 0.0
  %772 = vmatprep.subr.mxu0 0.0
  %773 = vmatpush1.msra.mxu0 0.0
  %774 = vmatprep.subr.mxu0 0.0
  %775 = vmatpush1.msra.mxu0 0.0
  %776 = vmatprep.subr.mxu0 0.0
  %777 = vmatpush1.msra.mxu0 0.0
  %778 = vmatprep.subr.mxu0 0.0
  %779 = vmatpush1.msra.mxu0 0.0
  %780 = vmatprep.subr.mxu0 0.0
  %781 = vmatpush1.msra.mxu0 0.0
  %782 = vmatprep.subr.mxu0 0.0
  %783 = vmatpush1.msra.mxu0 0.0
  %784 = vmatprep.subr.mxu0 0.0
  %785 = vmatpush1.msra.mxu0 0.0
  %786 = vmatprep.subr.mxu0 0.0
  %787 = vmatpush1.msra.mxu0 0.0
  %788 = vmatprep.subr.mxu0 0.0
  %789 = vmatpush1.msra.mxu0 0.0
  %790 = vmatprep.subr.mxu0 0.0
  %791 = vmatpush1.msra.mxu0 %v25
  %792 = vmatprep.subr.mxu0 0.0
  %793 = vmatpush1.msra.mxu0 %v24
  %794 = vmatprep.subr.mxu0 0.0
  %795 = vmatpush1.msra.mxu0 %v23
  %796 = vmatprep.subr.mxu0 0.0
  %797 = vmatpush1.msra.mxu0 %v22
  %798 = vmatprep.subr.mxu0 0.0
  %799 = vmatpush2.msra.mxu0 0.0
  %800 = vmatprep.subr.mxu0 0.0
  %801 = vmatpush2.msra.mxu0 0.0
  %802 = vmatprep.subr.mxu0 0.0
  %803 = vmatpush2.msra.mxu0 0.0
  %804 = vmatprep.subr.mxu0 0.0
  %805 = vmatpush2.msra.mxu0 0.0
  %806 = vmatprep.subr.mxu0 0.0
  %807 = vmatpush2.msra.mxu0 0.0
  %808 = vmatprep.subr.mxu0 0.0
  %809 = vmatpush2.msra.mxu0 0.0
  %810 = vmatprep.subr.mxu0 0.0
  %811 = vmatpush2.msra.mxu0 0.0
  %812 = vmatprep.subr.mxu0 0.0
  %813 = vmatpush2.msra.mxu0 0.0
  %814 = vmatprep.subr.mxu0 0.0
  %815 = vmatpush2.msra.mxu0 0.0
  %816 = vmatprep.subr.mxu0 0.0
  %817 = vmatpush2.msra.mxu0 0.0
  %818 = vmatprep.subr.mxu0 0.0
  %819 = vmatpush2.msra.mxu0 0.0
  %820 = vmatprep.subr.mxu0 0.0
  %821 = vmatpush2.msra.mxu0 0.0
  %822 = vmatprep.subr.mxu0 0.0
  %823 = vmatpush2.msra.mxu0 0.0
  %824 = vmatprep.subr.mxu0 0.0
  %825 = vmatpush2.msra.mxu0 0.0
  %826 = vmatprep.subr.mxu0 0.0
  %827 = vmatpush2.msra.mxu0 0.0
  %828 = vmatprep.subr.mxu0 0.0
  %829 = vmatpush2.msra.mxu0 0.0
  %830 = vmatprep.mubr.f32.mxu0 0.0
  %831 = vmatmul.mubr.f32.gmra.mxu0 %v764
  %v832 = vpop.f32.mrf.mxu0
  %v833 = vadd.f32 %v37, %v832
  %v834 = vpop.f32.mrf.mxu0
  %835 = vdwg.mxu0
  %v836 = vsel %vm39, %v757, 0
  %838 = vmatprep.subr.mxu0 0.0
  %839 = vmatpush1.msra.mxu0 0.0
  %840 = vmatprep.subr.mxu0 0.0
  %841 = vmatpush1.msra.mxu0 0.0
  %842 = vmatprep.subr.mxu0 0.0
  %843 = vmatpush1.msra.mxu0 0.0
  %844 = vmatprep.subr.mxu0 0.0
  %845 = vmatpush1.msra.mxu0 0.0
  %846 = vmatprep.subr.mxu0 0.0
  %847 = vmatpush1.msra.mxu0 0.0
  %848 = vmatprep.subr.mxu0 0.0
  %849 = vmatpush1.msra.mxu0 0.0
  %850 = vmatprep.subr.mxu0 0.0
  %851 = vmatpush1.msra.mxu0 0.0
  %852 = vmatprep.subr.mxu0 0.0
  %853 = vmatpush1.msra.mxu0 0.0
  %854 = vmatprep.subr.mxu0 0.0
  %855 = vmatpush1.msra.mxu0 0.0
  %856 = vmatprep.subr.mxu0 0.0
  %857 = vmatpush1.msra.mxu0 0.0
  %858 = vmatprep.subr.mxu0 0.0
  %859 = vmatpush1.msra.mxu0 0.0
  %860 = vmatprep.subr.mxu0 0.0
  %861 = vmatpush1.msra.mxu0 0.0
  %862 = vmatprep.subr.mxu0 0.0
  %863 = vmatpush1.msra.mxu0 %v29
  %864 = vmatprep.subr.mxu0 0.0
  %865 = vmatpush1.msra.mxu0 %v28
  %866 = vmatprep.subr.mxu0 0.0
  %867 = vmatpush1.msra.mxu0 %v27
  %868 = vmatprep.subr.mxu0 0.0
  %869 = vmatpush1.msra.mxu0 %v26
  %870 = vmatprep.subr.mxu0 0.0
  %871 = vmatpush2.msra.mxu0 0.0
  %872 = vmatprep.subr.mxu0 0.0
  %873 = vmatpush2.msra.mxu0 0.0
  %874 = vmatprep.subr.mxu0 0.0
  %875 = vmatpush2.msra.mxu0 0.0
  %876 = vmatprep.subr.mxu0 0.0
  %877 = vmatpush2.msra.mxu0 0.0
  %878 = vmatprep.subr.mxu0 0.0
  %879 = vmatpush2.msra.mxu0 0.0
  %880 = vmatprep.subr.mxu0 0.0
  %881 = vmatpush2.msra.mxu0 0.0
  %882 = vmatprep.subr.mxu0 0.0
  %883 = vmatpush2.msra.mxu0 0.0
  %884 = vmatprep.subr.mxu0 0.0
  %885 = vmatpush2.msra.mxu0 0.0
  %886 = vmatprep.subr.mxu0 0.0
  %887 = vmatpush2.msra.mxu0 0.0
  %888 = vmatprep.subr.mxu0 0.0
  %889 = vmatpush2.msra.mxu0 0.0
  %890 = vmatprep.subr.mxu0 0.0
  %891 = vmatpush2.msra.mxu0 0.0
  %892 = vmatprep.subr.mxu0 0.0
  %893 = vmatpush2.msra.mxu0 0.0
  %894 = vmatprep.subr.mxu0 0.0
  %895 = vmatpush2.msra.mxu0 0.0
  %896 = vmatprep.subr.mxu0 0.0
  %897 = vmatpush2.msra.mxu0 0.0
  %898 = vmatprep.subr.mxu0 0.0
  %899 = vmatpush2.msra.mxu0 0.0
  %900 = vmatprep.subr.mxu0 0.0
  %901 = vmatpush2.msra.mxu0 0.0
  %902 = vmatprep.mubr.f32.mxu0 0.0
  %903 = vmatmul.mubr.f32.gmra.mxu0 %v836
  %v904 = vpop.f32.mrf.mxu0
  %v905 = vadd.f32 %v117, %v904
  %v906 = vpop.f32.mrf.mxu0
  %907 = vdwg.mxu0
  %v908 = vadd.f32 %v833, %v905
  %v909 = vxor.u32 %v908, 2147483648
  %v910 = vmul.f32 %v909, 1.442695
  %v911 = vpow.pop %v910
  %v912 = vadd.f32 %v911, 1.0
  %v913 = vrcp.pop %v912
  %v914 = vmul.f32 1.0, %v913
  %916 = vrot.lane.b32.xlu0 %v905, 64
  %v917 = vpop.permute.xlu0 %916
  %v919 = vmul.f32 %v914, %v917
  %921 = vrot.lane.b32.xlu0 %v919, 64
  %v922 = vpop.permute.xlu0 %921
  %v924 = vadd.f32 %v833, %v922
  %v925 = vtanh.pop %v924
  %v926 = vsub.f32 1.0, %v914
  %928 = vrot.lane.b32.xlu0 %v925, 96
  %v929 = vpop.permute.xlu0 %928
  %v931 = vmul.f32 %v926, %v929
  %v932 = vmul.f32 %v914, %v754
  %v933 = vadd.f32 %v931, %v932
  %935 = vrot.lane.b32.xlu0 %v933, 96
  %v936 = vpop.permute.xlu0 %935
  %s938 = scalar_lea.vmem %s5, 8
  %939 = vst.msk [vmem:[%s938] sm:$0x3] %vm222, %v936
  %s940 = scalar_lea.vmem %s0, 10
  %v941 = vld [vmem:[%s940] sm:$0x3]
  %v943 = vsel %vm39, %v941, 0
  %945 = vmatprep.subr.mxu0 0.0
  %946 = vmatpush1.msra.mxu0 0.0
  %947 = vmatprep.subr.mxu0 0.0
  %948 = vmatpush1.msra.mxu0 0.0
  %949 = vmatprep.subr.mxu0 0.0
  %950 = vmatpush1.msra.mxu0 0.0
  %951 = vmatprep.subr.mxu0 0.0
  %952 = vmatpush1.msra.mxu0 0.0
  %953 = vmatprep.subr.mxu0 0.0
  %954 = vmatpush1.msra.mxu0 0.0
  %955 = vmatprep.subr.mxu0 0.0
  %956 = vmatpush1.msra.mxu0 0.0
  %957 = vmatprep.subr.mxu0 0.0
  %958 = vmatpush1.msra.mxu0 0.0
  %959 = vmatprep.subr.mxu0 0.0
  %960 = vmatpush1.msra.mxu0 0.0
  %961 = vmatprep.subr.mxu0 0.0
  %962 = vmatpush1.msra.mxu0 0.0
  %963 = vmatprep.subr.mxu0 0.0
  %964 = vmatpush1.msra.mxu0 0.0
  %965 = vmatprep.subr.mxu0 0.0
  %966 = vmatpush1.msra.mxu0 0.0
  %967 = vmatprep.subr.mxu0 0.0
  %968 = vmatpush1.msra.mxu0 0.0
  %969 = vmatprep.subr.mxu0 0.0
  %970 = vmatpush1.msra.mxu0 %v25
  %971 = vmatprep.subr.mxu0 0.0
  %972 = vmatpush1.msra.mxu0 %v24
  %973 = vmatprep.subr.mxu0 0.0
  %974 = vmatpush1.msra.mxu0 %v23
  %975 = vmatprep.subr.mxu0 0.0
  %976 = vmatpush1.msra.mxu0 %v22
  %977 = vmatprep.subr.mxu0 0.0
  %978 = vmatpush2.msra.mxu0 0.0
  %979 = vmatprep.subr.mxu0 0.0
  %980 = vmatpush2.msra.mxu0 0.0
  %981 = vmatprep.subr.mxu0 0.0
  %982 = vmatpush2.msra.mxu0 0.0
  %983 = vmatprep.subr.mxu0 0.0
  %984 = vmatpush2.msra.mxu0 0.0
  %985 = vmatprep.subr.mxu0 0.0
  %986 = vmatpush2.msra.mxu0 0.0
  %987 = vmatprep.subr.mxu0 0.0
  %988 = vmatpush2.msra.mxu0 0.0
  %989 = vmatprep.subr.mxu0 0.0
  %990 = vmatpush2.msra.mxu0 0.0
  %991 = vmatprep.subr.mxu0 0.0
  %992 = vmatpush2.msra.mxu0 0.0
  %993 = vmatprep.subr.mxu0 0.0
  %994 = vmatpush2.msra.mxu0 0.0
  %995 = vmatprep.subr.mxu0 0.0
  %996 = vmatpush2.msra.mxu0 0.0
  %997 = vmatprep.subr.mxu0 0.0
  %998 = vmatpush2.msra.mxu0 0.0
  %999 = vmatprep.subr.mxu0 0.0
  %1000 = vmatpush2.msra.mxu0 0.0
  %1001 = vmatprep.subr.mxu0 0.0
  %1002 = vmatpush2.msra.mxu0 0.0
  %1003 = vmatprep.subr.mxu0 0.0
  %1004 = vmatpush2.msra.mxu0 0.0
  %1005 = vmatprep.subr.mxu0 0.0
  %1006 = vmatpush2.msra.mxu0 0.0
  %1007 = vmatprep.subr.mxu0 0.0
  %1008 = vmatpush2.msra.mxu0 0.0
  %1009 = vmatprep.mubr.f32.mxu0 0.0
  %1010 = vmatmul.mubr.f32.gmra.mxu0 %v943
  %v1011 = vpop.f32.mrf.mxu0
  %v1012 = vadd.f32 %v37, %v1011
  %v1013 = vpop.f32.mrf.mxu0
  %1014 = vdwg.mxu0
  %v1015 = vsel %vm39, %v936, 0
  %1017 = vmatprep.subr.mxu0 0.0
  %1018 = vmatpush1.msra.mxu0 0.0
  %1019 = vmatprep.subr.mxu0 0.0
  %1020 = vmatpush1.msra.mxu0 0.0
  %1021 = vmatprep.subr.mxu0 0.0
  %1022 = vmatpush1.msra.mxu0 0.0
  %1023 = vmatprep.subr.mxu0 0.0
  %1024 = vmatpush1.msra.mxu0 0.0
  %1025 = vmatprep.subr.mxu0 0.0
  %1026 = vmatpush1.msra.mxu0 0.0
  %1027 = vmatprep.subr.mxu0 0.0
  %1028 = vmatpush1.msra.mxu0 0.0
  %1029 = vmatprep.subr.mxu0 0.0
  %1030 = vmatpush1.msra.mxu0 0.0
  %1031 = vmatprep.subr.mxu0 0.0
  %1032 = vmatpush1.msra.mxu0 0.0
  %1033 = vmatprep.subr.mxu0 0.0
  %1034 = vmatpush1.msra.mxu0 0.0
  %1035 = vmatprep.subr.mxu0 0.0
  %1036 = vmatpush1.msra.mxu0 0.0
  %1037 = vmatprep.subr.mxu0 0.0
  %1038 = vmatpush1.msra.mxu0 0.0
  %1039 = vmatprep.subr.mxu0 0.0
  %1040 = vmatpush1.msra.mxu0 0.0
  %1041 = vmatprep.subr.mxu0 0.0
  %1042 = vmatpush1.msra.mxu0 %v29
  %1043 = vmatprep.subr.mxu0 0.0
  %1044 = vmatpush1.msra.mxu0 %v28
  %1045 = vmatprep.subr.mxu0 0.0
  %1046 = vmatpush1.msra.mxu0 %v27
  %1047 = vmatprep.subr.mxu0 0.0
  %1048 = vmatpush1.msra.mxu0 %v26
  %1049 = vmatprep.subr.mxu0 0.0
  %1050 = vmatpush2.msra.mxu0 0.0
  %1051 = vmatprep.subr.mxu0 0.0
  %1052 = vmatpush2.msra.mxu0 0.0
  %1053 = vmatprep.subr.mxu0 0.0
  %1054 = vmatpush2.msra.mxu0 0.0
  %1055 = vmatprep.subr.mxu0 0.0
  %1056 = vmatpush2.msra.mxu0 0.0
  %1057 = vmatprep.subr.mxu0 0.0
  %1058 = vmatpush2.msra.mxu0 0.0
  %1059 = vmatprep.subr.mxu0 0.0
  %1060 = vmatpush2.msra.mxu0 0.0
  %1061 = vmatprep.subr.mxu0 0.0
  %1062 = vmatpush2.msra.mxu0 0.0
  %1063 = vmatprep.subr.mxu0 0.0
  %1064 = vmatpush2.msra.mxu0 0.0
  %1065 = vmatprep.subr.mxu0 0.0
  %1066 = vmatpush2.msra.mxu0 0.0
  %1067 = vmatprep.subr.mxu0 0.0
  %1068 = vmatpush2.msra.mxu0 0.0
  %1069 = vmatprep.subr.mxu0 0.0
  %1070 = vmatpush2.msra.mxu0 0.0
  %1071 = vmatprep.subr.mxu0 0.0
  %1072 = vmatpush2.msra.mxu0 0.0
  %1073 = vmatprep.subr.mxu0 0.0
  %1074 = vmatpush2.msra.mxu0 0.0
  %1075 = vmatprep.subr.mxu0 0.0
  %1076 = vmatpush2.msra.mxu0 0.0
  %1077 = vmatprep.subr.mxu0 0.0
  %1078 = vmatpush2.msra.mxu0 0.0
  %1079 = vmatprep.subr.mxu0 0.0
  %1080 = vmatpush2.msra.mxu0 0.0
  %1081 = vmatprep.mubr.f32.mxu0 0.0
  %1082 = vmatmul.mubr.f32.gmra.mxu0 %v1015
  %v1083 = vpop.f32.mrf.mxu0
  %v1084 = vadd.f32 %v117, %v1083
  %v1085 = vpop.f32.mrf.mxu0
  %1086 = vdwg.mxu0
  %v1087 = vadd.f32 %v1012, %v1084
  %v1088 = vxor.u32 %v1087, 2147483648
  %v1089 = vmul.f32 %v1088, 1.442695
  %v1090 = vpow.pop %v1089
  %v1091 = vadd.f32 %v1090, 1.0
  %v1092 = vrcp.pop %v1091
  %v1093 = vmul.f32 1.0, %v1092
  %1095 = vrot.lane.b32.xlu0 %v1084, 64
  %v1096 = vpop.permute.xlu0 %1095
  %v1098 = vmul.f32 %v1093, %v1096
  %1100 = vrot.lane.b32.xlu0 %v1098, 64
  %v1101 = vpop.permute.xlu0 %1100
  %v1103 = vadd.f32 %v1012, %v1101
  %v1104 = vtanh.pop %v1103
  %v1105 = vsub.f32 1.0, %v1093
  %1107 = vrot.lane.b32.xlu0 %v1104, 96
  %v1108 = vpop.permute.xlu0 %1107
  %v1110 = vmul.f32 %v1105, %v1108
  %v1111 = vmul.f32 %v1093, %v933
  %v1112 = vadd.f32 %v1110, %v1111
  %1114 = vrot.lane.b32.xlu0 %v1112, 96
  %v1115 = vpop.permute.xlu0 %1114
  %s1117 = scalar_lea.vmem %s5, 10
  %1118 = vst.msk [vmem:[%s1117] sm:$0x3] %vm222, %v1115
  %s1119 = scalar_lea.vmem %s0, 12
  %v1120 = vld [vmem:[%s1119] sm:$0x3]
  %v1122 = vsel %vm39, %v1120, 0
  %1124 = vmatprep.subr.mxu0 0.0
  %1125 = vmatpush1.msra.mxu0 0.0
  %1126 = vmatprep.subr.mxu0 0.0
  %1127 = vmatpush1.msra.mxu0 0.0
  %1128 = vmatprep.subr.mxu0 0.0
  %1129 = vmatpush1.msra.mxu0 0.0
  %1130 = vmatprep.subr.mxu0 0.0
  %1131 = vmatpush1.msra.mxu0 0.0
  %1132 = vmatprep.subr.mxu0 0.0
  %1133 = vmatpush1.msra.mxu0 0.0
  %1134 = vmatprep.subr.mxu0 0.0
  %1135 = vmatpush1.msra.mxu0 0.0
  %1136 = vmatprep.subr.mxu0 0.0
  %1137 = vmatpush1.msra.mxu0 0.0
  %1138 = vmatprep.subr.mxu0 0.0
  %1139 = vmatpush1.msra.mxu0 0.0
  %1140 = vmatprep.subr.mxu0 0.0
  %1141 = vmatpush1.msra.mxu0 0.0
  %1142 = vmatprep.subr.mxu0 0.0
  %1143 = vmatpush1.msra.mxu0 0.0
  %1144 = vmatprep.subr.mxu0 0.0
  %1145 = vmatpush1.msra.mxu0 0.0
  %1146 = vmatprep.subr.mxu0 0.0
  %1147 = vmatpush1.msra.mxu0 0.0
  %1148 = vmatprep.subr.mxu0 0.0
  %1149 = vmatpush1.msra.mxu0 %v25
  %1150 = vmatprep.subr.mxu0 0.0
  %1151 = vmatpush1.msra.mxu0 %v24
  %1152 = vmatprep.subr.mxu0 0.0
  %1153 = vmatpush1.msra.mxu0 %v23
  %1154 = vmatprep.subr.mxu0 0.0
  %1155 = vmatpush1.msra.mxu0 %v22
  %1156 = vmatprep.subr.mxu0 0.0
  %1157 = vmatpush2.msra.mxu0 0.0
  %1158 = vmatprep.subr.mxu0 0.0
  %1159 = vmatpush2.msra.mxu0 0.0
  %1160 = vmatprep.subr.mxu0 0.0
  %1161 = vmatpush2.msra.mxu0 0.0
  %1162 = vmatprep.subr.mxu0 0.0
  %1163 = vmatpush2.msra.mxu0 0.0
  %1164 = vmatprep.subr.mxu0 0.0
  %1165 = vmatpush2.msra.mxu0 0.0
  %1166 = vmatprep.subr.mxu0 0.0
  %1167 = vmatpush2.msra.mxu0 0.0
  %1168 = vmatprep.subr.mxu0 0.0
  %1169 = vmatpush2.msra.mxu0 0.0
  %1170 = vmatprep.subr.mxu0 0.0
  %1171 = vmatpush2.msra.mxu0 0.0
  %1172 = vmatprep.subr.mxu0 0.0
  %1173 = vmatpush2.msra.mxu0 0.0
  %1174 = vmatprep.subr.mxu0 0.0
  %1175 = vmatpush2.msra.mxu0 0.0
  %1176 = vmatprep.subr.mxu0 0.0
  %1177 = vmatpush2.msra.mxu0 0.0
  %1178 = vmatprep.subr.mxu0 0.0
  %1179 = vmatpush2.msra.mxu0 0.0
  %1180 = vmatprep.subr.mxu0 0.0
  %1181 = vmatpush2.msra.mxu0 0.0
  %1182 = vmatprep.subr.mxu0 0.0
  %1183 = vmatpush2.msra.mxu0 0.0
  %1184 = vmatprep.subr.mxu0 0.0
  %1185 = vmatpush2.msra.mxu0 0.0
  %1186 = vmatprep.subr.mxu0 0.0
  %1187 = vmatpush2.msra.mxu0 0.0
  %1188 = vmatprep.mubr.f32.mxu0 0.0
  %1189 = vmatmul.mubr.f32.gmra.mxu0 %v1122
  %v1190 = vpop.f32.mrf.mxu0
  %v1191 = vadd.f32 %v37, %v1190
  %v1192 = vpop.f32.mrf.mxu0
  %1193 = vdwg.mxu0
  %v1194 = vsel %vm39, %v1115, 0
  %1196 = vmatprep.subr.mxu0 0.0
  %1197 = vmatpush1.msra.mxu0 0.0
  %1198 = vmatprep.subr.mxu0 0.0
  %1199 = vmatpush1.msra.mxu0 0.0
  %1200 = vmatprep.subr.mxu0 0.0
  %1201 = vmatpush1.msra.mxu0 0.0
  %1202 = vmatprep.subr.mxu0 0.0
  %1203 = vmatpush1.msra.mxu0 0.0
  %1204 = vmatprep.subr.mxu0 0.0
  %1205 = vmatpush1.msra.mxu0 0.0
  %1206 = vmatprep.subr.mxu0 0.0
  %1207 = vmatpush1.msra.mxu0 0.0
  %1208 = vmatprep.subr.mxu0 0.0
  %1209 = vmatpush1.msra.mxu0 0.0
  %1210 = vmatprep.subr.mxu0 0.0
  %1211 = vmatpush1.msra.mxu0 0.0
  %1212 = vmatprep.subr.mxu0 0.0
  %1213 = vmatpush1.msra.mxu0 0.0
  %1214 = vmatprep.subr.mxu0 0.0
  %1215 = vmatpush1.msra.mxu0 0.0
  %1216 = vmatprep.subr.mxu0 0.0
  %1217 = vmatpush1.msra.mxu0 0.0
  %1218 = vmatprep.subr.mxu0 0.0
  %1219 = vmatpush1.msra.mxu0 0.0
  %1220 = vmatprep.subr.mxu0 0.0
  %1221 = vmatpush1.msra.mxu0 %v29
  %1222 = vmatprep.subr.mxu0 0.0
  %1223 = vmatpush1.msra.mxu0 %v28
  %1224 = vmatprep.subr.mxu0 0.0
  %1225 = vmatpush1.msra.mxu0 %v27
  %1226 = vmatprep.subr.mxu0 0.0
  %1227 = vmatpush1.msra.mxu0 %v26
  %1228 = vmatprep.subr.mxu0 0.0
  %1229 = vmatpush2.msra.mxu0 0.0
  %1230 = vmatprep.subr.mxu0 0.0
  %1231 = vmatpush2.msra.mxu0 0.0
  %1232 = vmatprep.subr.mxu0 0.0
  %1233 = vmatpush2.msra.mxu0 0.0
  %1234 = vmatprep.subr.mxu0 0.0
  %1235 = vmatpush2.msra.mxu0 0.0
  %1236 = vmatprep.subr.mxu0 0.0
  %1237 = vmatpush2.msra.mxu0 0.0
  %1238 = vmatprep.subr.mxu0 0.0
  %1239 = vmatpush2.msra.mxu0 0.0
  %1240 = vmatprep.subr.mxu0 0.0
  %1241 = vmatpush2.msra.mxu0 0.0
  %1242 = vmatprep.subr.mxu0 0.0
  %1243 = vmatpush2.msra.mxu0 0.0
  %1244 = vmatprep.subr.mxu0 0.0
  %1245 = vmatpush2.msra.mxu0 0.0
  %1246 = vmatprep.subr.mxu0 0.0
  %1247 = vmatpush2.msra.mxu0 0.0
  %1248 = vmatprep.subr.mxu0 0.0
  %1249 = vmatpush2.msra.mxu0 0.0
  %1250 = vmatprep.subr.mxu0 0.0
  %1251 = vmatpush2.msra.mxu0 0.0
  %1252 = vmatprep.subr.mxu0 0.0
  %1253 = vmatpush2.msra.mxu0 0.0
  %1254 = vmatprep.subr.mxu0 0.0
  %1255 = vmatpush2.msra.mxu0 0.0
  %1256 = vmatprep.subr.mxu0 0.0
  %1257 = vmatpush2.msra.mxu0 0.0
  %1258 = vmatprep.subr.mxu0 0.0
  %1259 = vmatpush2.msra.mxu0 0.0
  %1260 = vmatprep.mubr.f32.mxu0 0.0
  %1261 = vmatmul.mubr.f32.gmra.mxu0 %v1194
  %v1262 = vpop.f32.mrf.mxu0
  %v1263 = vadd.f32 %v117, %v1262
  %v1264 = vpop.f32.mrf.mxu0
  %1265 = vdwg.mxu0
  %v1266 = vadd.f32 %v1191, %v1263
  %v1267 = vxor.u32 %v1266, 2147483648
  %v1268 = vmul.f32 %v1267, 1.442695
  %v1269 = vpow.pop %v1268
  %v1270 = vadd.f32 %v1269, 1.0
  %v1271 = vrcp.pop %v1270
  %v1272 = vmul.f32 1.0, %v1271
  %1274 = vrot.lane.b32.xlu0 %v1263, 64
  %v1275 = vpop.permute.xlu0 %1274
  %v1277 = vmul.f32 %v1272, %v1275
  %1279 = vrot.lane.b32.xlu0 %v1277, 64
  %v1280 = vpop.permute.xlu0 %1279
  %v1282 = vadd.f32 %v1191, %v1280
  %v1283 = vtanh.pop %v1282
  %v1284 = vsub.f32 1.0, %v1272
  %1286 = vrot.lane.b32.xlu0 %v1283, 96
  %v1287 = vpop.permute.xlu0 %1286
  %v1289 = vmul.f32 %v1284, %v1287
  %v1290 = vmul.f32 %v1272, %v1112
  %v1291 = vadd.f32 %v1289, %v1290
  %1293 = vrot.lane.b32.xlu0 %v1291, 96
  %v1294 = vpop.permute.xlu0 %1293
  %s1296 = scalar_lea.vmem %s5, 12
  %1297 = vst.msk [vmem:[%s1296] sm:$0x3] %vm222, %v1294
  %s1298 = scalar_lea.vmem %s0, 14
  %v1299 = vld [vmem:[%s1298] sm:$0x3]
  %v1301 = vsel %vm39, %v1299, 0
  %1303 = vmatprep.subr.mxu0 0.0
  %1304 = vmatpush1.msra.mxu0 0.0
  %1305 = vmatprep.subr.mxu0 0.0
  %1306 = vmatpush1.msra.mxu0 0.0
  %1307 = vmatprep.subr.mxu0 0.0
  %1308 = vmatpush1.msra.mxu0 0.0
  %1309 = vmatprep.subr.mxu0 0.0
  %1310 = vmatpush1.msra.mxu0 0.0
  %1311 = vmatprep.subr.mxu0 0.0
  %1312 = vmatpush1.msra.mxu0 0.0
  %1313 = vmatprep.subr.mxu0 0.0
  %1314 = vmatpush1.msra.mxu0 0.0
  %1315 = vmatprep.subr.mxu0 0.0
  %1316 = vmatpush1.msra.mxu0 0.0
  %1317 = vmatprep.subr.mxu0 0.0
  %1318 = vmatpush1.msra.mxu0 0.0
  %1319 = vmatprep.subr.mxu0 0.0
  %1320 = vmatpush1.msra.mxu0 0.0
  %1321 = vmatprep.subr.mxu0 0.0
  %1322 = vmatpush1.msra.mxu0 0.0
  %1323 = vmatprep.subr.mxu0 0.0
  %1324 = vmatpush1.msra.mxu0 0.0
  %1325 = vmatprep.subr.mxu0 0.0
  %1326 = vmatpush1.msra.mxu0 0.0
  %1327 = vmatprep.subr.mxu0 0.0
  %1328 = vmatpush1.msra.mxu0 %v25
  %1329 = vmatprep.subr.mxu0 0.0
  %1330 = vmatpush1.msra.mxu0 %v24
  %1331 = vmatprep.subr.mxu0 0.0
  %1332 = vmatpush1.msra.mxu0 %v23
  %1333 = vmatprep.subr.mxu0 0.0
  %1334 = vmatpush1.msra.mxu0 %v22
  %1335 = vmatprep.subr.mxu0 0.0
  %1336 = vmatpush2.msra.mxu0 0.0
  %1337 = vmatprep.subr.mxu0 0.0
  %1338 = vmatpush2.msra.mxu0 0.0
  %1339 = vmatprep.subr.mxu0 0.0
  %1340 = vmatpush2.msra.mxu0 0.0
  %1341 = vmatprep.subr.mxu0 0.0
  %1342 = vmatpush2.msra.mxu0 0.0
  %1343 = vmatprep.subr.mxu0 0.0
  %1344 = vmatpush2.msra.mxu0 0.0
  %1345 = vmatprep.subr.mxu0 0.0
  %1346 = vmatpush2.msra.mxu0 0.0
  %1347 = vmatprep.subr.mxu0 0.0
  %1348 = vmatpush2.msra.mxu0 0.0
  %1349 = vmatprep.subr.mxu0 0.0
  %1350 = vmatpush2.msra.mxu0 0.0
  %1351 = vmatprep.subr.mxu0 0.0
  %1352 = vmatpush2.msra.mxu0 0.0
  %1353 = vmatprep.subr.mxu0 0.0
  %1354 = vmatpush2.msra.mxu0 0.0
  %1355 = vmatprep.subr.mxu0 0.0
  %1356 = vmatpush2.msra.mxu0 0.0
  %1357 = vmatprep.subr.mxu0 0.0
  %1358 = vmatpush2.msra.mxu0 0.0
  %1359 = vmatprep.subr.mxu0 0.0
  %1360 = vmatpush2.msra.mxu0 0.0
  %1361 = vmatprep.subr.mxu0 0.0
  %1362 = vmatpush2.msra.mxu0 0.0
  %1363 = vmatprep.subr.mxu0 0.0
  %1364 = vmatpush2.msra.mxu0 0.0
  %1365 = vmatprep.subr.mxu0 0.0
  %1366 = vmatpush2.msra.mxu0 0.0
  %1367 = vmatprep.mubr.f32.mxu0 0.0
  %1368 = vmatmul.mubr.f32.gmra.mxu0 %v1301
  %v1369 = vpop.f32.mrf.mxu0
  %v1370 = vadd.f32 %v37, %v1369
  %v1371 = vpop.f32.mrf.mxu0
  %1372 = vdwg.mxu0
  %v1373 = vsel %vm39, %v1294, 0
  %1375 = vmatprep.subr.mxu0 0.0
  %1376 = vmatpush1.msra.mxu0 0.0
  %1377 = vmatprep.subr.mxu0 0.0
  %1378 = vmatpush1.msra.mxu0 0.0
  %1379 = vmatprep.subr.mxu0 0.0
  %1380 = vmatpush1.msra.mxu0 0.0
  %1381 = vmatprep.subr.mxu0 0.0
  %1382 = vmatpush1.msra.mxu0 0.0
  %1383 = vmatprep.subr.mxu0 0.0
  %1384 = vmatpush1.msra.mxu0 0.0
  %1385 = vmatprep.subr.mxu0 0.0
  %1386 = vmatpush1.msra.mxu0 0.0
  %1387 = vmatprep.subr.mxu0 0.0
  %1388 = vmatpush1.msra.mxu0 0.0
  %1389 = vmatprep.subr.mxu0 0.0
  %1390 = vmatpush1.msra.mxu0 0.0
  %1391 = vmatprep.subr.mxu0 0.0
  %1392 = vmatpush1.msra.mxu0 0.0
  %1393 = vmatprep.subr.mxu0 0.0
  %1394 = vmatpush1.msra.mxu0 0.0
  %1395 = vmatprep.subr.mxu0 0.0
  %1396 = vmatpush1.msra.mxu0 0.0
  %1397 = vmatprep.subr.mxu0 0.0
  %1398 = vmatpush1.msra.mxu0 0.0
  %1399 = vmatprep.subr.mxu0 0.0
  %1400 = vmatpush1.msra.mxu0 %v29
  %1401 = vmatprep.subr.mxu0 0.0
  %1402 = vmatpush1.msra.mxu0 %v28
  %1403 = vmatprep.subr.mxu0 0.0
  %1404 = vmatpush1.msra.mxu0 %v27
  %1405 = vmatprep.subr.mxu0 0.0
  %1406 = vmatpush1.msra.mxu0 %v26
  %1407 = vmatprep.subr.mxu0 0.0
  %1408 = vmatpush2.msra.mxu0 0.0
  %1409 = vmatprep.subr.mxu0 0.0
  %1410 = vmatpush2.msra.mxu0 0.0
  %1411 = vmatprep.subr.mxu0 0.0
  %1412 = vmatpush2.msra.mxu0 0.0
  %1413 = vmatprep.subr.mxu0 0.0
  %1414 = vmatpush2.msra.mxu0 0.0
  %1415 = vmatprep.subr.mxu0 0.0
  %1416 = vmatpush2.msra.mxu0 0.0
  %1417 = vmatprep.subr.mxu0 0.0
  %1418 = vmatpush2.msra.mxu0 0.0
  %1419 = vmatprep.subr.mxu0 0.0
  %1420 = vmatpush2.msra.mxu0 0.0
  %1421 = vmatprep.subr.mxu0 0.0
  %1422 = vmatpush2.msra.mxu0 0.0
  %1423 = vmatprep.subr.mxu0 0.0
  %1424 = vmatpush2.msra.mxu0 0.0
  %1425 = vmatprep.subr.mxu0 0.0
  %1426 = vmatpush2.msra.mxu0 0.0
  %1427 = vmatprep.subr.mxu0 0.0
  %1428 = vmatpush2.msra.mxu0 0.0
  %1429 = vmatprep.subr.mxu0 0.0
  %1430 = vmatpush2.msra.mxu0 0.0
  %1431 = vmatprep.subr.mxu0 0.0
  %1432 = vmatpush2.msra.mxu0 0.0
  %1433 = vmatprep.subr.mxu0 0.0
  %1434 = vmatpush2.msra.mxu0 0.0
  %1435 = vmatprep.subr.mxu0 0.0
  %1436 = vmatpush2.msra.mxu0 0.0
  %1437 = vmatprep.subr.mxu0 0.0
  %1438 = vmatpush2.msra.mxu0 0.0
  %1439 = vmatprep.mubr.f32.mxu0 0.0
  %1440 = vmatmul.mubr.f32.gmra.mxu0 %v1373
  %v1441 = vpop.f32.mrf.mxu0
  %v1442 = vadd.f32 %v117, %v1441
  %v1443 = vpop.f32.mrf.mxu0
  %1444 = vdwg.mxu0
  %v1445 = vadd.f32 %v1370, %v1442
  %v1446 = vxor.u32 %v1445, 2147483648
  %v1447 = vmul.f32 %v1446, 1.442695
  %v1448 = vpow.pop %v1447
  %v1449 = vadd.f32 %v1448, 1.0
  %v1450 = vrcp.pop %v1449
  %v1451 = vmul.f32 1.0, %v1450
  %1453 = vrot.lane.b32.xlu0 %v1442, 64
  %v1454 = vpop.permute.xlu0 %1453
  %v1456 = vmul.f32 %v1451, %v1454
  %1458 = vrot.lane.b32.xlu0 %v1456, 64
  %v1459 = vpop.permute.xlu0 %1458
  %v1461 = vadd.f32 %v1370, %v1459
  %v1462 = vtanh.pop %v1461
  %v1463 = vsub.f32 1.0, %v1451
  %1465 = vrot.lane.b32.xlu0 %v1462, 96
  %v1466 = vpop.permute.xlu0 %1465
  %v1468 = vmul.f32 %v1463, %v1466
  %v1469 = vmul.f32 %v1451, %v1291
  %v1470 = vadd.f32 %v1468, %v1469
  %1472 = vrot.lane.b32.xlu0 %v1470, 96
  %v1473 = vpop.permute.xlu0 %1472
  %s1475 = scalar_lea.vmem %s5, 14
  %1476 = vst.msk [vmem:[%s1475] sm:$0x3] %vm222, %v1473
  %1477 = vst.msk [vmem:[%s6] sm:$0x3] %vm222, %v1473
  // Predicated region
  $region22: #{_forward_impl.2} parent=0 // pred_check
    _
  $region23: #{_forward_impl.2} parent=0 // pred_check_branch
    %1479 = sbr.rel (0) target = $region25
  $region24: #{_forward_impl.2} parent=0 // pred_region
    _
  $region25: #{_forward_impl.2} parent=0 // pred_fallthru
    _
  // Predicated region
  $region26: #{_forward_impl.2} parent=0 // pred_check
    _
  $region27: #{_forward_impl.2} parent=0 // pred_check_branch
    %1481 = sbr.rel (0) target = $region29
  $region28: #{_forward_impl.2} parent=0 // pred_region
    _
  $region29: #{_forward_impl.2} parent=0 // pred_fallthru
    _
  // Predicated region
  $region30: #{_forward_impl.2} parent=0 // pred_check
    _
  $region31: #{_forward_impl.2} parent=0 // pred_check_branch
    %1483 = sbr.rel (0) target = $region33
  $region32: #{_forward_impl.2} parent=0 // pred_region
    _
  $region33: #{_forward_impl.2} parent=0 // pred_fallthru
    _
  // Predicated region
  $region34: #{_forward_impl.2} parent=0 // pred_check
    _
  $region35: #{_forward_impl.2} parent=0 // pred_check_branch
    %1485 = sbr.rel (0) target = $region37
  $region36: #{_forward_impl.2} parent=0 // pred_region
    _
  $region37: #{_forward_impl.2} parent=0 // pred_fallthru
    _

// kernel: _forward_impl.3
$region0: #{_forward_impl.3}
  #allocation0 [shape = 'u32[]', space=smem, size = 0x4, offset = 0x4, fixed_abs, tag = 'smem constant byte address 0x4 - core index']
  #allocation1 [shape = 'u32[144,128]{1,0:T(1,128)}', space=vmem, size = 0x12000, scoped, tag = 'internal scratch']
  #allocation2 [shape = 'f32[2,32]{1,0:T(2,128)}', space=vmem, size = 0x400, scoped, tag = 'scratch operand']
  #allocation3 [shape = 'f32[2,32]{1,0:T(2,128)}', space=vmem, size = 0x400, scoped, tag = 'scratch operand']
  #allocation4 [shape = 'f32[16,32]{1,0:T(8,128)}', space=vmem, size = 0x2000, scoped, tag = 'scratch operand']
  #allocation5 [shape = 'f32[1,1]{1,0:T(1,128)S(1)}', space=vmem, size = 0x200, scoped, tag = 'scoped memory for _forward_impl.3']
  %s0 = inlined_call_operand.vmem [shape: f32[2,32], index: 0, kind: input, shape index: {}]
  %s1 = inlined_call_operand.vmem [shape: f32[16,32], index: 1, kind: input, shape index: {}]
  %s2 = inlined_call_operand.vmem [shape: f32[32,32], index: 2, kind: input, shape index: {}]
  %s3 = inlined_call_operand.vmem [shape: f32[32,32], index: 3, kind: input, shape index: {}]
  %s4 = inlined_call_operand.vmem [shape: f32[1,32], index: 4, kind: input, shape index: {}]
  %s5 = inlined_call_operand.vmem [shape: f32[32,32], index: 5, kind: input, shape index: {}]
  %s6 = inlined_call_operand.vmem [shape: f32[1,32], index: 6, kind: input, shape index: {}]
  %s7 = inlined_call_operand.vmem [shape: f32[1,32], index: 7, kind: input, shape index: {}]
  %s8 = inlined_call_operand.<no memory space> [shape: f32[1,1], index: 8, kind: input, shape index: {}]
  %s9 = inlined_call_operand.vmem [shape: f32[32,96], index: 9, kind: input, shape index: {}]
  %s10 = inlined_call_operand.vmem [shape: f32[32,96], index: 10, kind: input, shape index: {}]
  %s11 = inlined_call_operand.vmem [shape: f32[32,96], index: 11, kind: input, shape index: {}]
  %s12 = inlined_call_operand.vmem [shape: f32[1,96], index: 12, kind: input, shape index: {}]
  %s13 = inlined_call_operand.vmem [shape: f32[1,96], index: 13, kind: input, shape index: {}]
  %s14 = inlined_call_operand.vmem [shape: f32[32,32], index: 14, kind: input, shape index: {}]
  %s15 = inlined_call_operand.vmem [shape: f32[1,32], index: 15, kind: input, shape index: {}]
  %s16 = inlined_call_operand.vmem [shape: f32[6,2,32], index: 16, kind: output, shape index: {0}]
  %s17 = inlined_call_operand.hbm [shape: f32[6,2,8], index: 17, kind: output, shape index: {1}]
  %s18 = inlined_call_operand.hbm [shape: f32[2,32], index: 18, kind: output, shape index: {2}]
  %19 = xla_tuple %s16, %s17, %s18
  %s20 = sld [smem:[#allocation0]]
  $region121: #{_forward_impl.3} parent=0
    _
  %s22 = ssub.s32 1, %s20
  %s23 = scalar_select 0, %s22, %s20
  %v24 = vstv %s8
  %25 = vst [vmem:[#allocation5] sm:$0x1] %v24
  $region1: #{_forward_impl.3} parent=0
    #allocation6 [shape = 'u8[2048]{0}', space=vmem, size = 0x800, scoped, tag = 'output window, operand 1']
    #allocation7 [shape = 's32[2]{0}', space=sflag, size = 0x8, scoped, tag = 'scoped memory for _forward_impl.3']
    #allocation8 [shape = 'u8[1024]{0}', space=vmem, size = 0x400, scoped, tag = 'output window, operand 2, single buffered']
    #allocation9 [shape = 's32[1]{0}', space=sflag, size = 0x4, scoped, tag = 'scoped memory for _forward_impl.3']
    %26 = vsyncpa [#allocation7], 0
    %s27 = scalar_lea.sflag [#allocation7], 1
    %28 = vsyncpa %s27, 0
    %29 = vsyncpa [#allocation9], 0
    loop: start=0, step=1, limit=8
    $region2: #{_forward_impl.3} parent=1 // loop_pre_header
      _
    $region3: #{_forward_impl.3} parent=1 // loop_header
      %s31 = sphi 0, %s35
      %p32 = scmp.ge.s32.totalorder %s31, 8
      %s39 = sphi 0, %s39
      %s41 = sphi 0, %s39
      %s42 = sphi 0, %s41
      %s56 = sphi 0, %s42
      %s60 = sphi 0, %s60
      %s62 = sphi 0, %s60
      %s63 = sphi 0, %s62
      %s77 = sphi 0, %s63
      %s81 = sphi 0, %s81
      %s83 = sphi 0, %s81
      %s84 = sphi 0, %s83
      %s98 = sphi 0, %s84
      %s102 = sphi 0, %s102
      %s104 = sphi 0, %s102
      %s105 = sphi 0, %s104
      %s119 = sphi 0, %s105
      %s123 = sphi 0, %s123
      %s125 = sphi 0, %s123
      %s126 = sphi 0, %s125
      %s140 = sphi 0, %s126
      %s144 = sphi 0, %s144
      %s146 = sphi 0, %s144
      %s147 = sphi 0, %s146
      %s161 = sphi 0, %s147
      %s165 = sphi 0, %s165
      %s167 = sphi 0, %s165
      %s168 = sphi 0, %s167
      %s182 = sphi 0, %s168
      %s186 = sphi 0, %s186
      %s188 = sphi 0, %s186
      %s189 = sphi 0, %s188
      %s203 = sphi 0, %s189
      %s207 = sphi 0, %s207
      %s209 = sphi 0, %s207
      %s210 = sphi 0, %s209
      %s224 = sphi 0, %s210
      %s228 = sphi 0, %s228
      %s230 = sphi 0, %s228
      %s231 = sphi 0, %s230
      %s245 = sphi 0, %s231
      %s249 = sphi 0, %s249
      %s251 = sphi 0, %s249
      %s252 = sphi 0, %s251
      %s266 = sphi 0, %s252
      %s270 = sphi 0, %s270
      %s272 = sphi 0, %s270
      %s273 = sphi 0, %s272
      %s287 = sphi 0, %s273
      %s291 = sphi 0, %s291
      %s293 = sphi 0, %s291
      %s294 = sphi 0, %s293
      %s308 = sphi 0, %s294
      %s312 = sphi 0, %s312
      %s314 = sphi 0, %s312
      %s315 = sphi 0, %s314
      %s329 = sphi 0, %s315
      %s333 = sphi 0, %s333
      %s335 = sphi 0, %s333
      %s336 = sphi 0, %s335
      %s350 = sphi 0, %s336
      %s354 = sphi 0, %s354
      %s356 = sphi 0, %s354
      %s357 = sphi 0, %s356
      %s371 = sphi 0, %s357
      %s377 = sphi 0, %s379
      %s380 = sphi 0, %s377
      %s381 = sphi 0, %s380
      %s397 = sphi 0, %s381
      %s403 = sphi 0, %s405
      %s406 = sphi 0, %s403
      %s407 = sphi 0, %s406
      %s423 = sphi 0, %s407
      %s427 = sphi 0, %s427
      %s429 = sphi 0, %s427
      %s430 = sphi 0, %s429
      %s444 = sphi 0, %s430
    $region4: #{_forward_impl.3} parent=1 // loop_header_branch
      %34 = sbr.rel (%p32) target = $region8
    $region5: #{_forward_impl.3} parent=1 // loop_body
      %s36 = ssub.s32 %s31, 1
      %s37 = ssub.s32 %s31, 2
      %s38 = sadd.s32 %s31, 1
      %s40 = sadd.s32 %s39, 1
      %p43 = scmp.eq.s32.totalorder %s31, 5
      %p44 = scmp.ne.s32.totalorder %s39, %s41
      %p45 = scmp.eq.s32.totalorder %s31, 0
      %p46 = por %p44, %p45
      %p47 = scmp.ne.s32.totalorder %s39, %s41
      %p48 = scmp.eq.s32.totalorder %s36, 5
      %p49 = por %p47, %p48
      %p50 = scmp.ne.s32.totalorder %s41, %s42
      %p51 = scmp.eq.s32.totalorder %s36, 0
      %p52 = por %p50, %p51
      %p53 = scmp.ne.s32.totalorder %s41, %s42
      %p54 = scmp.eq.s32.totalorder %s37, 5
      %p55 = por %p53, %p54
      %p57 = scmp.ne.s32.totalorder %s42, %s56
      %p58 = scmp.eq.s32.totalorder %s37, 0
      %p59 = por %p57, %p58
      %s61 = sadd.s32 %s60, 1
      %p64 = scmp.eq.s32.totalorder %s31, 5
      %p65 = scmp.ne.s32.totalorder %s60, %s62
      %p66 = scmp.eq.s32.totalorder %s31, 0
      %p67 = por %p65, %p66
      %p68 = scmp.ne.s32.totalorder %s60, %s62
      %p69 = scmp.eq.s32.totalorder %s36, 5
      %p70 = por %p68, %p69
      %p71 = scmp.ne.s32.totalorder %s62, %s63
      %p72 = scmp.eq.s32.totalorder %s36, 0
      %p73 = por %p71, %p72
      %p74 = scmp.ne.s32.totalorder %s62, %s63
      %p75 = scmp.eq.s32.totalorder %s37, 5
      %p76 = por %p74, %p75
      %p78 = scmp.ne.s32.totalorder %s63, %s77
      %p79 = scmp.eq.s32.totalorder %s37, 0
      %p80 = por %p78, %p79
      %s82 = sadd.s32 %s81, 1
      %p85 = scmp.eq.s32.totalorder %s31, 5
      %p86 = scmp.ne.s32.totalorder %s81, %s83
      %p87 = scmp.eq.s32.totalorder %s31, 0
      %p88 = por %p86, %p87
      %p89 = scmp.ne.s32.totalorder %s81, %s83
      %p90 = scmp.eq.s32.totalorder %s36, 5
      %p91 = por %p89, %p90
      %p92 = scmp.ne.s32.totalorder %s83, %s84
      %p93 = scmp.eq.s32.totalorder %s36, 0
      %p94 = por %p92, %p93
      %p95 = scmp.ne.s32.totalorder %s83, %s84
      %p96 = scmp.eq.s32.totalorder %s37, 5
      %p97 = por %p95, %p96
      %p99 = scmp.ne.s32.totalorder %s84, %s98
      %p100 = scmp.eq.s32.totalorder %s37, 0
      %p101 = por %p99, %p100
      %s103 = sadd.s32 %s102, 1
      %p106 = scmp.eq.s32.totalorder %s31, 5
      %p107 = scmp.ne.s32.totalorder %s102, %s104
      %p108 = scmp.eq.s32.totalorder %s31, 0
      %p109 = por %p107, %p108
      %p110 = scmp.ne.s32.totalorder %s102, %s104
      %p111 = scmp.eq.s32.totalorder %s36, 5
      %p112 = por %p110, %p111
      %p113 = scmp.ne.s32.totalorder %s104, %s105
      %p114 = scmp.eq.s32.totalorder %s36, 0
      %p115 = por %p113, %p114
      %p116 = scmp.ne.s32.totalorder %s104, %s105
      %p117 = scmp.eq.s32.totalorder %s37, 5
      %p118 = por %p116, %p117
      %p120 = scmp.ne.s32.totalorder %s105, %s119
      %p121 = scmp.eq.s32.totalorder %s37, 0
      %p122 = por %p120, %p121
      %s124 = sadd.s32 %s123, 1
      %p127 = scmp.eq.s32.totalorder %s31, 5
      %p128 = scmp.ne.s32.totalorder %s123, %s125
      %p129 = scmp.eq.s32.totalorder %s31, 0
      %p130 = por %p128, %p129
      %p131 = scmp.ne.s32.totalorder %s123, %s125
      %p132 = scmp.eq.s32.totalorder %s36, 5
      %p133 = por %p131, %p132
      %p134 = scmp.ne.s32.totalorder %s125, %s126
      %p135 = scmp.eq.s32.totalorder %s36, 0
      %p136 = por %p134, %p135
      %p137 = scmp.ne.s32.totalorder %s125, %s126
      %p138 = scmp.eq.s32.totalorder %s37, 5
      %p139 = por %p137, %p138
      %p141 = scmp.ne.s32.totalorder %s126, %s140
      %p142 = scmp.eq.s32.totalorder %s37, 0
      %p143 = por %p141, %p142
      %s145 = sadd.s32 %s144, 1
      %p148 = scmp.eq.s32.totalorder %s31, 5
      %p149 = scmp.ne.s32.totalorder %s144, %s146
      %p150 = scmp.eq.s32.totalorder %s31, 0
      %p151 = por %p149, %p150
      %p152 = scmp.ne.s32.totalorder %s144, %s146
      %p153 = scmp.eq.s32.totalorder %s36, 5
      %p154 = por %p152, %p153
      %p155 = scmp.ne.s32.totalorder %s146, %s147
      %p156 = scmp.eq.s32.totalorder %s36, 0
      %p157 = por %p155, %p156
      %p158 = scmp.ne.s32.totalorder %s146, %s147
      %p159 = scmp.eq.s32.totalorder %s37, 5
      %p160 = por %p158, %p159
      %p162 = scmp.ne.s32.totalorder %s147, %s161
      %p163 = scmp.eq.s32.totalorder %s37, 0
      %p164 = por %p162, %p163
      %s166 = sadd.s32 %s165, 1
      %p169 = scmp.eq.s32.totalorder %s31, 5
      %p170 = scmp.ne.s32.totalorder %s165, %s167
      %p171 = scmp.eq.s32.totalorder %s31, 0
      %p172 = por %p170, %p171
      %p173 = scmp.ne.s32.totalorder %s165, %s167
      %p174 = scmp.eq.s32.totalorder %s36, 5
      %p175 = por %p173, %p174
      %p176 = scmp.ne.s32.totalorder %s167, %s168
      %p177 = scmp.eq.s32.totalorder %s36, 0
      %p178 = por %p176, %p177
      %p179 = scmp.ne.s32.totalorder %s167, %s168
      %p180 = scmp.eq.s32.totalorder %s37, 5
      %p181 = por %p179, %p180
      %p183 = scmp.ne.s32.totalorder %s168, %s182
      %p184 = scmp.eq.s32.totalorder %s37, 0
      %p185 = por %p183, %p184
      %s187 = sadd.s32 %s186, 1
      %p190 = scmp.eq.s32.totalorder %s31, 5
      %p191 = scmp.ne.s32.totalorder %s186, %s188
      %p192 = scmp.eq.s32.totalorder %s31, 0
      %p193 = por %p191, %p192
      %p194 = scmp.ne.s32.totalorder %s186, %s188
      %p195 = scmp.eq.s32.totalorder %s36, 5
      %p196 = por %p194, %p195
      %p197 = scmp.ne.s32.totalorder %s188, %s189
      %p198 = scmp.eq.s32.totalorder %s36, 0
      %p199 = por %p197, %p198
      %p200 = scmp.ne.s32.totalorder %s188, %s189
      %p201 = scmp.eq.s32.totalorder %s37, 5
      %p202 = por %p200, %p201
      %p204 = scmp.ne.s32.totalorder %s189, %s203
      %p205 = scmp.eq.s32.totalorder %s37, 0
      %p206 = por %p204, %p205
      %s208 = sadd.s32 %s207, 1
      %p211 = scmp.eq.s32.totalorder %s31, 5
      %p212 = scmp.ne.s32.totalorder %s207, %s209
      %p213 = scmp.eq.s32.totalorder %s31, 0
      %p214 = por %p212, %p213
      %p215 = scmp.ne.s32.totalorder %s207, %s209
      %p216 = scmp.eq.s32.totalorder %s36, 5
      %p217 = por %p215, %p216
      %p218 = scmp.ne.s32.totalorder %s209, %s210
      %p219 = scmp.eq.s32.totalorder %s36, 0
      %p220 = por %p218, %p219
      %p221 = scmp.ne.s32.totalorder %s209, %s210
      %p222 = scmp.eq.s32.totalorder %s37, 5
      %p223 = por %p221, %p222
      %p225 = scmp.ne.s32.totalorder %s210, %s224
      %p226 = scmp.eq.s32.totalorder %s37, 0
      %p227 = por %p225, %p226
      %s229 = sadd.s32 %s228, 1
      %p232 = scmp.eq.s32.totalorder %s31, 5
      %p233 = scmp.ne.s32.totalorder %s228, %s230
      %p234 = scmp.eq.s32.totalorder %s31, 0
      %p235 = por %p233, %p234
      %p236 = scmp.ne.s32.totalorder %s228, %s230
      %p237 = scmp.eq.s32.totalorder %s36, 5
      %p238 = por %p236, %p237
      %p239 = scmp.ne.s32.totalorder %s230, %s231
      %p240 = scmp.eq.s32.totalorder %s36, 0
      %p241 = por %p239, %p240
      %p242 = scmp.ne.s32.totalorder %s230, %s231
      %p243 = scmp.eq.s32.totalorder %s37, 5
      %p244 = por %p242, %p243
      %p246 = scmp.ne.s32.totalorder %s231, %s245
      %p247 = scmp.eq.s32.totalorder %s37, 0
      %p248 = por %p246, %p247
      %s250 = sadd.s32 %s249, 1
      %p253 = scmp.eq.s32.totalorder %s31, 5
      %p254 = scmp.ne.s32.totalorder %s249, %s251
      %p255 = scmp.eq.s32.totalorder %s31, 0
      %p256 = por %p254, %p255
      %p257 = scmp.ne.s32.totalorder %s249, %s251
      %p258 = scmp.eq.s32.totalorder %s36, 5
      %p259 = por %p257, %p258
      %p260 = scmp.ne.s32.totalorder %s251, %s252
      %p261 = scmp.eq.s32.totalorder %s36, 0
      %p262 = por %p260, %p261
      %p263 = scmp.ne.s32.totalorder %s251, %s252
      %p264 = scmp.eq.s32.totalorder %s37, 5
      %p265 = por %p263, %p264
      %p267 = scmp.ne.s32.totalorder %s252, %s266
      %p268 = scmp.eq.s32.totalorder %s37, 0
      %p269 = por %p267, %p268
      %s271 = sadd.s32 %s270, 1
      %p274 = scmp.eq.s32.totalorder %s31, 5
      %p275 = scmp.ne.s32.totalorder %s270, %s272
      %p276 = scmp.eq.s32.totalorder %s31, 0
      %p277 = por %p275, %p276
      %p278 = scmp.ne.s32.totalorder %s270, %s272
      %p279 = scmp.eq.s32.totalorder %s36, 5
      %p280 = por %p278, %p279
      %p281 = scmp.ne.s32.totalorder %s272, %s273
      %p282 = scmp.eq.s32.totalorder %s36, 0
      %p283 = por %p281, %p282
      %p284 = scmp.ne.s32.totalorder %s272, %s273
      %p285 = scmp.eq.s32.totalorder %s37, 5
      %p286 = por %p284, %p285
      %p288 = scmp.ne.s32.totalorder %s273, %s287
      %p289 = scmp.eq.s32.totalorder %s37, 0
      %p290 = por %p288, %p289
      %s292 = sadd.s32 %s291, 1
      %p295 = scmp.eq.s32.totalorder %s31, 5
      %p296 = scmp.ne.s32.totalorder %s291, %s293
      %p297 = scmp.eq.s32.totalorder %s31, 0
      %p298 = por %p296, %p297
      %p299 = scmp.ne.s32.totalorder %s291, %s293
      %p300 = scmp.eq.s32.totalorder %s36, 5
      %p301 = por %p299, %p300
      %p302 = scmp.ne.s32.totalorder %s293, %s294
      %p303 = scmp.eq.s32.totalorder %s36, 0
      %p304 = por %p302, %p303
      %p305 = scmp.ne.s32.totalorder %s293, %s294
      %p306 = scmp.eq.s32.totalorder %s37, 5
      %p307 = por %p305, %p306
      %p309 = scmp.ne.s32.totalorder %s294, %s308
      %p310 = scmp.eq.s32.totalorder %s37, 0
      %p311 = por %p309, %p310
      %s313 = sadd.s32 %s312, 1
      %p316 = scmp.eq.s32.totalorder %s31, 5
      %p317 = scmp.ne.s32.totalorder %s312, %s314
      %p318 = scmp.eq.s32.totalorder %s31, 0
      %p319 = por %p317, %p318
      %p320 = scmp.ne.s32.totalorder %s312, %s314
      %p321 = scmp.eq.s32.totalorder %s36, 5
      %p322 = por %p320, %p321
      %p323 = scmp.ne.s32.totalorder %s314, %s315
      %p324 = scmp.eq.s32.totalorder %s36, 0
      %p325 = por %p323, %p324
      %p326 = scmp.ne.s32.totalorder %s314, %s315
      %p327 = scmp.eq.s32.totalorder %s37, 5
      %p328 = por %p326, %p327
      %p330 = scmp.ne.s32.totalorder %s315, %s329
      %p331 = scmp.eq.s32.totalorder %s37, 0
      %p332 = por %p330, %p331
      %s334 = sadd.s32 %s333, 1
      %p337 = scmp.eq.s32.totalorder %s31, 5
      %p338 = scmp.ne.s32.totalorder %s333, %s335
      %p339 = scmp.eq.s32.totalorder %s31, 0
      %p340 = por %p338, %p339
      %p341 = scmp.ne.s32.totalorder %s333, %s335
      %p342 = scmp.eq.s32.totalorder %s36, 5
      %p343 = por %p341, %p342
      %p344 = scmp.ne.s32.totalorder %s335, %s336
      %p345 = scmp.eq.s32.totalorder %s36, 0
      %p346 = por %p344, %p345
      %p347 = scmp.ne.s32.totalorder %s335, %s336
      %p348 = scmp.eq.s32.totalorder %s37, 5
      %p349 = por %p347, %p348
      %p351 = scmp.ne.s32.totalorder %s336, %s350
      %p352 = scmp.eq.s32.totalorder %s37, 0
      %p353 = por %p351, %p352
      %s355 = sadd.s32 %s354, 1
      %p358 = scmp.eq.s32.totalorder %s31, 5
      %p359 = scmp.ne.s32.totalorder %s354, %s356
      %p360 = scmp.eq.s32.totalorder %s31, 0
      %p361 = por %p359, %p360
      %p362 = scmp.ne.s32.totalorder %s354, %s356
      %p363 = scmp.eq.s32.totalorder %s36, 5
      %p364 = por %p362, %p363
      %p365 = scmp.ne.s32.totalorder %s356, %s357
      %p366 = scmp.eq.s32.totalorder %s36, 0
      %p367 = por %p365, %p366
      %p368 = scmp.ne.s32.totalorder %s356, %s357
      %p369 = scmp.eq.s32.totalorder %s37, 5
      %p370 = por %p368, %p369
      %p372 = scmp.ne.s32.totalorder %s357, %s371
      %p373 = scmp.eq.s32.totalorder %s37, 0
      %p374 = por %p372, %p373
      %s375 = ssub.s32 %s31, %s38
      %p376 = scmp.eq.s32.totalorder %s375, 0
      %s378 = sadd.s32 %s377, 1
      %s379 = scalar_select %p376, %s377, %s378
      %p382 = pneg %p376
      %p383 = scmp.eq.s32.totalorder %s31, 5
      %p384 = por %p382, %p383
      %p385 = scmp.ne.s32.totalorder %s377, %s380
      %p386 = scmp.eq.s32.totalorder %s31, 0
      %p387 = por %p385, %p386
      %p388 = scmp.ne.s32.totalorder %s377, %s380
      %p389 = scmp.eq.s32.totalorder %s36, 5
      %p390 = por %p388, %p389
      %p391 = scmp.ne.s32.totalorder %s380, %s381
      %p392 = scmp.eq.s32.totalorder %s36, 0
      %p393 = por %p391, %p392
      %p394 = scmp.ne.s32.totalorder %s380, %s381
      %p395 = scmp.eq.s32.totalorder %s37, 5
      %p396 = por %p394, %p395
      %p398 = scmp.ne.s32.totalorder %s381, %s397
      %p399 = scmp.eq.s32.totalorder %s37, 0
      %p400 = por %p398, %p399
      %s401 = ssub.s32 %s31, %s38
      %p402 = scmp.eq.s32.totalorder %s401, 0
      %s404 = sadd.s32 %s403, 1
      %s405 = scalar_select %p402, %s403, %s404
      %p408 = pneg %p402
      %p409 = scmp.eq.s32.totalorder %s31, 5
      %p410 = por %p408, %p409
      %p411 = scmp.ne.s32.totalorder %s403, %s406
      %p412 = scmp.eq.s32.totalorder %s31, 0
      %p413 = por %p411, %p412
      %p414 = scmp.ne.s32.totalorder %s403, %s406
      %p415 = scmp.eq.s32.totalorder %s36, 5
      %p416 = por %p414, %p415
      %p417 = scmp.ne.s32.totalorder %s406, %s407
      %p418 = scmp.eq.s32.totalorder %s36, 0
      %p419 = por %p417, %p418
      %p420 = scmp.ne.s32.totalorder %s406, %s407
      %p421 = scmp.eq.s32.totalorder %s37, 5
      %p422 = por %p420, %p421
      %p424 = scmp.ne.s32.totalorder %s407, %s423
      %p425 = scmp.eq.s32.totalorder %s37, 0
      %p426 = por %p424, %p425
      %s428 = sadd.s32 %s427, 1
      %p431 = scmp.eq.s32.totalorder %s31, 5
      %p432 = scmp.ne.s32.totalorder %s427, %s429
      %p433 = scmp.eq.s32.totalorder %s31, 0
      %p434 = por %p432, %p433
      %p435 = scmp.ne.s32.totalorder %s427, %s429
      %p436 = scmp.eq.s32.totalorder %s36, 5
      %p437 = por %p435, %p436
      %p438 = scmp.ne.s32.totalorder %s429, %s430
      %p439 = scmp.eq.s32.totalorder %s36, 0
      %p440 = por %p438, %p439
      %p441 = scmp.ne.s32.totalorder %s429, %s430
      %p442 = scmp.eq.s32.totalorder %s37, 5
      %p443 = por %p441, %p442
      %p445 = scmp.ne.s32.totalorder %s430, %s444
      %p446 = scmp.eq.s32.totalorder %s37, 0
      %p447 = por %p445, %p446
      %p448 = scmp.le.s32.totalorder 1, %s31
      %p449 = scmp.lt.s32.totalorder %s31, 7
      %p450 = pnand %p448, %p449
      %p451 = pneg %p450
      // Predicated region
      $region9: #{_forward_impl.3} parent=5 // pred_check
        _
      $region10: #{_forward_impl.3} parent=5 // pred_check_branch
        %453 = sbr.rel (%p450) target = $region12
      $region11: #{_forward_impl.3} parent=5 // pred_region
        %s454 = ssub.s32 %s31, 1
        // Predicated region
        $region13: #{_forward_impl.3} parent=11 // pred_check
          %p455 = pneg %p52
        $region14: #{_forward_impl.3} parent=11 // pred_check_branch
          %457 = sbr.rel (%p455) target = $region16
        $region15: #{_forward_impl.3} parent=11 // pred_region
          _
        $region16: #{_forward_impl.3} parent=11 // pred_fallthru
          _
        // Predicated region
        $region17: #{_forward_impl.3} parent=11 // pred_check
          %p458 = pneg %p73
        $region18: #{_forward_impl.3} parent=11 // pred_check_branch
          %460 = sbr.rel (%p458) target = $region20
        $region19: #{_forward_impl.3} parent=11 // pred_region
          _
        $region20: #{_forward_impl.3} parent=11 // pred_fallthru
          _
        // Predicated region
        $region21: #{_forward_impl.3} parent=11 // pred_check
          %p461 = pneg %p94
        $region22: #{_forward_impl.3} parent=11 // pred_check_branch
          %463 = sbr.rel (%p461) target = $region24
        $region23: #{_forward_impl.3} parent=11 // pred_region
          _
        $region24: #{_forward_impl.3} parent=11 // pred_fallthru
          _
        // Predicated region
        $region25: #{_forward_impl.3} parent=11 // pred_check
          %p464 = pneg %p115
        $region26: #{_forward_impl.3} parent=11 // pred_check_branch
          %466 = sbr.rel (%p464) target = $region28
        $region27: #{_forward_impl.3} parent=11 // pred_region
          _
        $region28: #{_forward_impl.3} parent=11 // pred_fallthru
          _
        // Predicated region
        $region29: #{_forward_impl.3} parent=11 // pred_check
          %p467 = pneg %p136
        $region30: #{_forward_impl.3} parent=11 // pred_check_branch
          %469 = sbr.rel (%p467) target = $region32
        $region31: #{_forward_impl.3} parent=11 // pred_region
          _
        $region32: #{_forward_impl.3} parent=11 // pred_fallthru
          _
        // Predicated region
        $region33: #{_forward_impl.3} parent=11 // pred_check
          %p470 = pneg %p157
        $region34: #{_forward_impl.3} parent=11 // pred_check_branch
          %472 = sbr.rel (%p470) target = $region36
        $region35: #{_forward_impl.3} parent=11 // pred_region
          _
        $region36: #{_forward_impl.3} parent=11 // pred_fallthru
          _
        // Predicated region
        $region37: #{_forward_impl.3} parent=11 // pred_check
          %p473 = pneg %p178
        $region38: #{_forward_impl.3} parent=11 // pred_check_branch
          %475 = sbr.rel (%p473) target = $region40
        $region39: #{_forward_impl.3} parent=11 // pred_region
          _
        $region40: #{_forward_impl.3} parent=11 // pred_fallthru
          _
        // Predicated region
        $region41: #{_forward_impl.3} parent=11 // pred_check
          %p476 = pneg %p199
        $region42: #{_forward_impl.3} parent=11 // pred_check_branch
          %478 = sbr.rel (%p476) target = $region44
        $region43: #{_forward_impl.3} parent=11 // pred_region
          _
        $region44: #{_forward_impl.3} parent=11 // pred_fallthru
          _
        // Predicated region
        $region45: #{_forward_impl.3} parent=11 // pred_check
          %p479 = pneg %p220
        $region46: #{_forward_impl.3} parent=11 // pred_check_branch
          %481 = sbr.rel (%p479) target = $region48
        $region47: #{_forward_impl.3} parent=11 // pred_region
          _
        $region48: #{_forward_impl.3} parent=11 // pred_fallthru
          _
        // Predicated region
        $region49: #{_forward_impl.3} parent=11 // pred_check
          %p482 = pneg %p241
        $region50: #{_forward_impl.3} parent=11 // pred_check_branch
          %484 = sbr.rel (%p482) target = $region52
        $region51: #{_forward_impl.3} parent=11 // pred_region
          _
        $region52: #{_forward_impl.3} parent=11 // pred_fallthru
          _
        // Predicated region
        $region53: #{_forward_impl.3} parent=11 // pred_check
          %p485 = pneg %p262
        $region54: #{_forward_impl.3} parent=11 // pred_check_branch
          %487 = sbr.rel (%p485) target = $region56
        $region55: #{_forward_impl.3} parent=11 // pred_region
          _
        $region56: #{_forward_impl.3} parent=11 // pred_fallthru
          _
        // Predicated region
        $region57: #{_forward_impl.3} parent=11 // pred_check
          %p488 = pneg %p283
        $region58: #{_forward_impl.3} parent=11 // pred_check_branch
          %490 = sbr.rel (%p488) target = $region60
        $region59: #{_forward_impl.3} parent=11 // pred_region
          _
        $region60: #{_forward_impl.3} parent=11 // pred_fallthru
          _
        // Predicated region
        $region61: #{_forward_impl.3} parent=11 // pred_check
          %p491 = pneg %p304
        $region62: #{_forward_impl.3} parent=11 // pred_check_branch
          %493 = sbr.rel (%p491) target = $region64
        $region63: #{_forward_impl.3} parent=11 // pred_region
          _
        $region64: #{_forward_impl.3} parent=11 // pred_fallthru
          _
        // Predicated region
        $region65: #{_forward_impl.3} parent=11 // pred_check
          %p494 = pneg %p325
        $region66: #{_forward_impl.3} parent=11 // pred_check_branch
          %496 = sbr.rel (%p494) target = $region68
        $region67: #{_forward_impl.3} parent=11 // pred_region
          _
        $region68: #{_forward_impl.3} parent=11 // pred_fallthru
          _
        // Predicated region
        $region69: #{_forward_impl.3} parent=11 // pred_check
          %p497 = pneg %p346
        $region70: #{_forward_impl.3} parent=11 // pred_check_branch
          %499 = sbr.rel (%p497) target = $region72
        $region71: #{_forward_impl.3} parent=11 // pred_region
          _
        $region72: #{_forward_impl.3} parent=11 // pred_fallthru
          _
        // Predicated region
        $region73: #{_forward_impl.3} parent=11 // pred_check
          %p500 = pneg %p367
        $region74: #{_forward_impl.3} parent=11 // pred_check_branch
          %502 = sbr.rel (%p500) target = $region76
        $region75: #{_forward_impl.3} parent=11 // pred_region
          _
        $region76: #{_forward_impl.3} parent=11 // pred_fallthru
          _
      $region12: #{_forward_impl.3} parent=5 // pred_fallthru
        _
      %p503 = scmp.lt.s32.totalorder %s31, 6
      // Predicated region
      $region77: #{_forward_impl.3} parent=5 // pred_check
        %p504 = pneg %p503
      $region78: #{_forward_impl.3} parent=5 // pred_check_branch
        %506 = sbr.rel (%p504) target = $region80
      $region79: #{_forward_impl.3} parent=5 // pred_region
        _
      $region80: #{_forward_impl.3} parent=5 // pred_fallthru
        _
      %p507 = scmp.le.s32.totalorder 1, %s31
      %p508 = scmp.lt.s32.totalorder %s31, 7
      %p509 = pnand %p507, %p508
      %p510 = pneg %p509
      // Predicated region
      $region81: #{_forward_impl.3} parent=5 // pred_check
        _
      $region82: #{_forward_impl.3} parent=5 // pred_check_branch
        %512 = sbr.rel (%p509) target = $region84
      $region83: #{_forward_impl.3} parent=5 // pred_region
        %s513 = ssub.s32 %s31, 1
        %p514 = pneg %p52
        %p515 = pneg %p49
        %p516 = pneg %p73
        %p517 = pneg %p70
        %p518 = pneg %p94
        %p519 = pneg %p91
        %p520 = pneg %p115
        %p521 = pneg %p112
        %p522 = pneg %p136
        %p523 = pneg %p133
        %p524 = pneg %p157
        %p525 = pneg %p154
        %p526 = pneg %p178
        %p527 = pneg %p175
        %p528 = pneg %p199
        %p529 = pneg %p196
        %p530 = pneg %p220
        %p531 = pneg %p217
        %p532 = pneg %p241
        %p533 = pneg %p238
        %p534 = pneg %p262
        %p535 = pneg %p259
        %p536 = pneg %p283
        %p537 = pneg %p280
        %p538 = pneg %p304
        %p539 = pneg %p301
        %p540 = pneg %p325
        %p541 = pneg %p322
        %p542 = pneg %p346
        %p543 = pneg %p343
        %p544 = pneg %p367
        %p545 = pneg %p364
        %p546 = pneg %p393
        %p547 = pneg %p390
        %p548 = scmp.lt.s32.totalorder %s36, 5
        %s549 = scalar_select %p548, %s36, 5
        %s550 = smul.addr %s549, 2
        %s551 = scalar_lea.vmem %s16, %s550
        %p552 = pneg %p419
        %p553 = pneg %p416
        %s554 = sand.u32 %s406, 1
        %s555 = scalar_lea.sflag [#allocation7], %s554
        %s556 = sand.u32 %s406, 1
        %s557 = smul.addr %s556, 2
        %s558 = scalar_lea.vmem [#allocation6], %s557
        %p559 = pneg %p440
        %p560 = pneg %p437
        %p561 = scmp.lt.s32.totalorder %s36, 5
        %s562 = scalar_select %p561, %s36, 5
        %s563 = smul.addr %s562, 2
        %s564 = scalar_lea.vmem %s16, %s563
        %p565 = scmp.eq.s32.totalorder %s36, 0
        // Predicated region
        $region85: #{_forward_impl.3} parent=83 // pred_check
          %p566 = pneg %p565
        $region86: #{_forward_impl.3} parent=83 // pred_check_branch
          %568 = sbr.rel (%p566) target = $region88
        $region87: #{_forward_impl.3} parent=83 // pred_region
          %v569 = vld [vmem:[%s0] sm:$0x3]
          %vm570 = vcmask 254976
          %571 = vst.msk [vmem:[#allocation2] sm:$0x3] %vm570, %v569
          %v572 = vlaneseq
          %v573 = vand.u32 %v572, 127
          %vm574 = vcmp.eq.s32.totalorder %v573, 0
          %v575 = vsel %vm574, 1, 0
          %v576 = vcvt.s32.f32 %v575
          %577 = vst.msk [vmem:[#allocation3] sm:$0x3] %vm570, %v576
          %v578 = vld [vmem:[%s1] sm:$0xff]
          %v579 = vld [vmem:[%s1 + $0x8] sm:$0xff]
          %v580 = vld [vmem:[%s5] sm:$0xff]
          %v581 = vld [vmem:[%s5 + $0x8] sm:$0xff]
          %v582 = vld [vmem:[%s5 + $0x10] sm:$0xff]
          %v583 = vld [vmem:[%s5 + $0x18] sm:$0xff]
          %v584 = vld [vmem:[%s6] sm:$0x1]
          %v586 = vlaneseq
          %v587 = vshrl.u32 %v586, 7
          %v588 = vsub.s32 0, %v587
          %v589 = vrot.slane %v584, %v588
          %vm591 = vcmask 261120
          %v593 = vsel %vm591, %v578, 0
          %v596 = vsel %vm591, %v579, 0
          %598 = vmatprep.subr.mxu0 0.0
          %599 = vmatpush1.msra.mxu0 0.0
          %600 = vmatprep.subr.mxu0 0.0
          %601 = vmatpush1.msra.mxu0 0.0
          %602 = vmatprep.subr.mxu0 0.0
          %603 = vmatpush1.msra.mxu0 0.0
          %604 = vmatprep.subr.mxu0 0.0
          %605 = vmatpush1.msra.mxu0 0.0
          %606 = vmatprep.subr.mxu0 0.0
          %607 = vmatpush1.msra.mxu0 0.0
          %608 = vmatprep.subr.mxu0 0.0
          %609 = vmatpush1.msra.mxu0 0.0
          %610 = vmatprep.subr.mxu0 0.0
          %611 = vmatpush1.msra.mxu0 0.0
          %612 = vmatprep.subr.mxu0 0.0
          %613 = vmatpush1.msra.mxu0 0.0
          %614 = vmatprep.subr.mxu0 0.0
          %615 = vmatpush1.msra.mxu0 0.0
          %616 = vmatprep.subr.mxu0 0.0
          %617 = vmatpush1.msra.mxu0 0.0
          %618 = vmatprep.subr.mxu0 0.0
          %619 = vmatpush1.msra.mxu0 0.0
          %620 = vmatprep.subr.mxu0 0.0
          %621 = vmatpush1.msra.mxu0 0.0
          %622 = vmatprep.subr.mxu0 0.0
          %623 = vmatpush1.msra.mxu0 %v583
          %624 = vmatprep.subr.mxu0 0.0
          %625 = vmatpush1.msra.mxu0 %v582
          %626 = vmatprep.subr.mxu0 0.0
          %627 = vmatpush1.msra.mxu0 %v581
          %628 = vmatprep.subr.mxu0 0.0
          %629 = vmatpush1.msra.mxu0 %v580
          %630 = vmatprep.subr.mxu0 0.0
          %631 = vmatpush2.msra.mxu0 0.0
          %632 = vmatprep.subr.mxu0 0.0
          %633 = vmatpush2.msra.mxu0 0.0
          %634 = vmatprep.subr.mxu0 0.0
          %635 = vmatpush2.msra.mxu0 0.0
          %636 = vmatprep.subr.mxu0 0.0
          %637 = vmatpush2.msra.mxu0 0.0
          %638 = vmatprep.subr.mxu0 0.0
          %639 = vmatpush2.msra.mxu0 0.0
          %640 = vmatprep.subr.mxu0 0.0
          %641 = vmatpush2.msra.mxu0 0.0
          %642 = vmatprep.subr.mxu0 0.0
          %643 = vmatpush2.msra.mxu0 0.0
          %644 = vmatprep.subr.mxu0 0.0
          %645 = vmatpush2.msra.mxu0 0.0
          %646 = vmatprep.subr.mxu0 0.0
          %647 = vmatpush2.msra.mxu0 0.0
          %648 = vmatprep.subr.mxu0 0.0
          %649 = vmatpush2.msra.mxu0 0.0
          %650 = vmatprep.subr.mxu0 0.0
          %651 = vmatpush2.msra.mxu0 0.0
          %652 = vmatprep.subr.mxu0 0.0
          %653 = vmatpush2.msra.mxu0 0.0
          %654 = vmatprep.subr.mxu0 0.0
          %655 = vmatpush2.msra.mxu0 0.0
          %656 = vmatprep.subr.mxu0 0.0
          %657 = vmatpush2.msra.mxu0 0.0
          %658 = vmatprep.subr.mxu0 0.0
          %659 = vmatpush2.msra.mxu0 0.0
          %660 = vmatprep.subr.mxu0 0.0
          %661 = vmatpush2.msra.mxu0 0.0
          %662 = vmatprep.mubr.f32.mxu0 0.0
          %663 = vmatmul.mubr.f32.gmra.mxu0 %v593
          %v664 = vpop.f32.mrf.mxu0
          %v665 = vadd.f32 %v589, %v664
          %v666 = vpop.f32.mrf.mxu0
          %667 = vmatprep.mubr.f32.mxu0 0.0
          %668 = vmatmul.mubr.f32.gmra.mxu0 %v596
          %v669 = vpop.f32.mrf.mxu0
          %v670 = vadd.f32 %v589, %v669
          %v671 = vpop.f32.mrf.mxu0
          %672 = vdwg.mxu0
          %673 = vst.msk [vmem:[#allocation4] sm:$0xff] %vm591, %v665
          %674 = vst.msk [vmem:[#allocation4 + $0x8] sm:$0xff] %vm591, %v670
        $region88: #{_forward_impl.3} parent=83 // pred_fallthru
          _
        %v675 = vld [vmem:[#allocation2] sm:$0x3]
        %v676 = vld [vmem:[#allocation3] sm:$0x3]
        %v677 = vld [vmem:[%s2] sm:$0xff]
        %v678 = vld [vmem:[%s2 + $0x8] sm:$0xff]
        %v679 = vld [vmem:[%s2 + $0x10] sm:$0xff]
        %v680 = vld [vmem:[%s2 + $0x18] sm:$0xff]
        %vm681 = vcmask 261120
        %v683 = vsel %vm681, %v676, 0
        %685 = vmatprep.subr.mxu0 0.0
        %686 = vmatpush1.msra.mxu0 0.0
        %687 = vmatprep.subr.mxu0 0.0
        %688 = vmatpush1.msra.mxu0 0.0
        %689 = vmatprep.subr.mxu0 0.0
        %690 = vmatpush1.msra.mxu0 0.0
        %691 = vmatprep.subr.mxu0 0.0
        %692 = vmatpush1.msra.mxu0 0.0
        %693 = vmatprep.subr.mxu0 0.0
        %694 = vmatpush1.msra.mxu0 0.0
        %695 = vmatprep.subr.mxu0 0.0
        %696 = vmatpush1.msra.mxu0 0.0
        %697 = vmatprep.subr.mxu0 0.0
        %698 = vmatpush1.msra.mxu0 0.0
        %699 = vmatprep.subr.mxu0 0.0
        %700 = vmatpush1.msra.mxu0 0.0
        %701 = vmatprep.subr.mxu0 0.0
        %702 = vmatpush1.msra.mxu0 0.0
        %703 = vmatprep.subr.mxu0 0.0
        %704 = vmatpush1.msra.mxu0 0.0
        %705 = vmatprep.subr.mxu0 0.0
        %706 = vmatpush1.msra.mxu0 0.0
        %707 = vmatprep.subr.mxu0 0.0
        %708 = vmatpush1.msra.mxu0 0.0
        %709 = vmatprep.subr.mxu0 0.0
        %710 = vmatpush1.msra.mxu0 %v680
        %711 = vmatprep.subr.mxu0 0.0
        %712 = vmatpush1.msra.mxu0 %v679
        %713 = vmatprep.subr.mxu0 0.0
        %714 = vmatpush1.msra.mxu0 %v678
        %715 = vmatprep.subr.mxu0 0.0
        %716 = vmatpush1.msra.mxu0 %v677
        %717 = vmatprep.subr.mxu0 0.0
        %718 = vmatpush2.msra.mxu0 0.0
        %719 = vmatprep.subr.mxu0 0.0
        %720 = vmatpush2.msra.mxu0 0.0
        %721 = vmatprep.subr.mxu0 0.0
        %722 = vmatpush2.msra.mxu0 0.0
        %723 = vmatprep.subr.mxu0 0.0
        %724 = vmatpush2.msra.mxu0 0.0
        %725 = vmatprep.subr.mxu0 0.0
        %726 = vmatpush2.msra.mxu0 0.0
        %727 = vmatprep.subr.mxu0 0.0
        %728 = vmatpush2.msra.mxu0 0.0
        %729 = vmatprep.subr.mxu0 0.0
        %730 = vmatpush2.msra.mxu0 0.0
        %731 = vmatprep.subr.mxu0 0.0
        %732 = vmatpush2.msra.mxu0 0.0
        %733 = vmatprep.subr.mxu0 0.0
        %734 = vmatpush2.msra.mxu0 0.0
        %735 = vmatprep.subr.mxu0 0.0
        %736 = vmatpush2.msra.mxu0 0.0
        %737 = vmatprep.subr.mxu0 0.0
        %738 = vmatpush2.msra.mxu0 0.0
        %739 = vmatprep.subr.mxu0 0.0
        %740 = vmatpush2.msra.mxu0 0.0
        %741 = vmatprep.subr.mxu0 0.0
        %742 = vmatpush2.msra.mxu0 0.0
        %743 = vmatprep.subr.mxu0 0.0
        %744 = vmatpush2.msra.mxu0 0.0
        %745 = vmatprep.subr.mxu0 0.0
        %746 = vmatpush2.msra.mxu0 0.0
        %747 = vmatprep.subr.mxu0 0.0
        %748 = vmatpush2.msra.mxu0 0.0
        %749 = vmatprep.mubr.f32.mxu0 0.0
        %750 = vmatmul.mubr.f32.gmra.mxu0 %v683
        %v751 = vpop.f32.mrf.mxu0
        %v752 = vadd.f32 0.0, %v751
        %v753 = vpop.f32.mrf.mxu0
        %754 = vdwg.mxu0
        %v755 = vld [vmem:[%s1] sm:$0xff]
        %v756 = vld [vmem:[%s1 + $0x8] sm:$0xff]
        %v757 = vld [vmem:[#allocation4] sm:$0xff]
        %v758 = vld [vmem:[#allocation4 + $0x8] sm:$0xff]
        %v759 = vld [vmem:[%s3] sm:$0xff]
        %v760 = vld [vmem:[%s3 + $0x8] sm:$0xff]
        %v761 = vld [vmem:[%s3 + $0x10] sm:$0xff]
        %v762 = vld [vmem:[%s3 + $0x18] sm:$0xff]
        %v763 = vld [vmem:[%s4] sm:$0x1]
        %v765 = vlaneseq
        %v766 = vshrl.u32 %v765, 7
        %v767 = vsub.s32 0, %v766
        %v768 = vrot.slane %v763, %v767
        %v771 = vsel %vm681, %v675, 0
        %773 = vmatprep.subr.mxu0 0.0
        %774 = vmatpush1.msra.mxu0 0.0
        %775 = vmatprep.subr.mxu0 0.0
        %776 = vmatpush1.msra.mxu0 0.0
        %777 = vmatprep.subr.mxu0 0.0
        %778 = vmatpush1.msra.mxu0 0.0
        %779 = vmatprep.subr.mxu0 0.0
        %780 = vmatpush1.msra.mxu0 0.0
        %781 = vmatprep.subr.mxu0 0.0
        %782 = vmatpush1.msra.mxu0 0.0
        %783 = vmatprep.subr.mxu0 0.0
        %784 = vmatpush1.msra.mxu0 0.0
        %785 = vmatprep.subr.mxu0 0.0
        %786 = vmatpush1.msra.mxu0 0.0
        %787 = vmatprep.subr.mxu0 0.0
        %788 = vmatpush1.msra.mxu0 0.0
        %789 = vmatprep.subr.mxu0 0.0
        %790 = vmatpush1.msra.mxu0 0.0
        %791 = vmatprep.subr.mxu0 0.0
        %792 = vmatpush1.msra.mxu0 0.0
        %793 = vmatprep.subr.mxu0 0.0
        %794 = vmatpush1.msra.mxu0 0.0
        %795 = vmatprep.subr.mxu0 0.0
        %796 = vmatpush1.msra.mxu0 0.0
        %797 = vmatprep.subr.mxu0 0.0
        %798 = vmatpush1.msra.mxu0 %v762
        %799 = vmatprep.subr.mxu0 0.0
        %800 = vmatpush1.msra.mxu0 %v761
        %801 = vmatprep.subr.mxu0 0.0
        %802 = vmatpush1.msra.mxu0 %v760
        %803 = vmatprep.subr.mxu0 0.0
        %804 = vmatpush1.msra.mxu0 %v759
        %805 = vmatprep.subr.mxu0 0.0
        %806 = vmatpush2.msra.mxu0 0.0
        %807 = vmatprep.subr.mxu0 0.0
        %808 = vmatpush2.msra.mxu0 0.0
        %809 = vmatprep.subr.mxu0 0.0
        %810 = vmatpush2.msra.mxu0 0.0
        %811 = vmatprep.subr.mxu0 0.0
        %812 = vmatpush2.msra.mxu0 0.0
        %813 = vmatprep.subr.mxu0 0.0
        %814 = vmatpush2.msra.mxu0 0.0
        %815 = vmatprep.subr.mxu0 0.0
        %816 = vmatpush2.msra.mxu0 0.0
        %817 = vmatprep.subr.mxu0 0.0
        %818 = vmatpush2.msra.mxu0 0.0
        %819 = vmatprep.subr.mxu0 0.0
        %820 = vmatpush2.msra.mxu0 0.0
        %821 = vmatprep.subr.mxu0 0.0
        %822 = vmatpush2.msra.mxu0 0.0
        %823 = vmatprep.subr.mxu0 0.0
        %824 = vmatpush2.msra.mxu0 0.0
        %825 = vmatprep.subr.mxu0 0.0
        %826 = vmatpush2.msra.mxu0 0.0
        %827 = vmatprep.subr.mxu0 0.0
        %828 = vmatpush2.msra.mxu0 0.0
        %829 = vmatprep.subr.mxu0 0.0
        %830 = vmatpush2.msra.mxu0 0.0
        %831 = vmatprep.subr.mxu0 0.0
        %832 = vmatpush2.msra.mxu0 0.0
        %833 = vmatprep.subr.mxu0 0.0
        %834 = vmatpush2.msra.mxu0 0.0
        %835 = vmatprep.subr.mxu0 0.0
        %836 = vmatpush2.msra.mxu0 0.0
        %837 = vmatprep.mubr.f32.mxu0 0.0
        %838 = vmatmul.mubr.f32.gmra.mxu0 %v771
        %v839 = vpop.f32.mrf.mxu0
        %v840 = vadd.f32 %v768, %v839
        %v841 = vpop.f32.mrf.mxu0
        %842 = vdwg.mxu0
        %v845 = vunpack.c.l.s4 1966171168
        %v846 = vunpack.c.0.s8 %v845
        %v847 = vlaneseq
        %v848 = vshrl.u32 %v847, 7
        %v849 = vsub.s32 %v846, %v848
        %v850 = vrot.slane %v840, %v849
        %v851 = vcombine.high %v850, %v850
        %v853 = vunpack.c.l.s4 1966171168
        %v854 = vunpack.c.0.s8 %v853
        %v855 = vlaneseq
        %v856 = vshrl.u32 %v855, 7
        %v857 = vsub.s32 %v854, %v856
        %v858 = vrot.slane %v850, %v857
        %v860 = vunpack.c.l.s4 1966171168
        %v861 = vunpack.c.0.s8 %v860
        %v862 = vlaneseq
        %v863 = vshrl.u32 %v862, 7
        %v864 = vsub.s32 %v861, %v863
        %v865 = vrot.slane %v851, %v864
        %v866 = vlaneseq
        %v867 = vshrl.u32 %v866, 7
        %v868 = vsub.s32 0, %v867
        %v869 = vrot.slane %v858, %v868
        %v870 = vlaneseq
        %v871 = vshrl.u32 %v870, 7
        %v872 = vsub.s32 0, %v871
        %v873 = vrot.slane %v865, %v872
        %v876 = vadd.f32 %v869, %v757
        %v877 = vadd.f32 %v873, %v758
        %v878 = vtanh.pop %v876
        %v879 = vtanh.pop %v877
        %v880 = vld [vmem:[%s7] sm:$0x1]
        %v882 = vlaneseq
        %v883 = vshrl.u32 %v882, 7
        %v884 = vsub.s32 0, %v883
        %v885 = vrot.slane %v880, %v884
        %v887 = vmul.f32 %v878, %v885
        %v888 = vmul.f32 %v879, %v885
        %v889 = vsel %vm681, %v887, 0.0
        %890 = vadd.xlane.f32.xlu0 %v889
        %v891 = vpop.xlane.xlu0 %890
        %v892 = vsel %vm681, %v888, 0.0
        %893 = vadd.xlane.f32.xlu0 %v892
        %v894 = vpop.xlane.xlu0 %893
        %v895 = vld [vmem:[#allocation5] sm:$0x1]
        %s896 = vtos %v895
        %v897 = vstv %s896
        %v898 = vadd.f32 %v891, %v897
        %v899 = vadd.f32 %v894, %v897
        %v902 = vlaneseq
        %v903 = vand.u32 %v902, 127
        %v904 = vlaneseq
        %v905 = vshrl.u32 %v904, 7
        %v906 = vsub.s32 %v903, %v905
        %v907 = vrot.slane %v898, %v906
        %v908 = vlaneseq
        %v909 = vshrl.u32 %v908, 7
        %v910 = vsub.s32 %v903, %v909
        %v911 = vrot.slane %v899, %v910
        %vm912 = vcmask 1041409
        %v913 = vsel %vm912, %v911, %v907
        %vm915 = vcmask 58368
        %v916 = vsel %vm915, %v913, -inf
        %917 = vmax.xlane.f32.xlu0 %v916
        %v918 = vpop.xlane.xlu0 %917
        %v920 = vlaneseq
        %v921 = vshrl.u32 %v920, 7
        %v922 = vsub.s32 0, %v921
        %v923 = vrot.slane %v918, %v922
        %v924 = vlaneseq
        %v925 = vshrl.u32 %v924, 7
        %v926 = vsub.s32 1, %v925
        %v927 = vrot.slane %v918, %v926
        %v930 = vsub.f32 %v898, %v923
        %v931 = vsub.f32 %v899, %v927
        %v932 = vmul.f32 %v930, 1.442695
        %v933 = vpow.pop %v932
        %v934 = vmul.f32 %v931, 1.442695
        %v935 = vpow.pop %v934
        %938 = vset.pattern.permute.xlu0 0
        %939 = vperm.xlu0 %938, %v933
        %v940 = vpop.permute.xlu0 %939
        %941 = vset.pattern.permute.xlu0 0
        %942 = vperm.xlu0 %941, %v935
        %v943 = vpop.permute.xlu0 %942
        %v944 = vlaneseq
        %v945 = vshrl.u32 %v944, 7
        %v946 = vsub.s32 %v903, %v945
        %v947 = vrot.slane %v940, %v946
        %v948 = vlaneseq
        %v949 = vshrl.u32 %v948, 7
        %v950 = vsub.s32 %v903, %v949
        %v951 = vrot.slane %v943, %v950
        %v952 = vsel %vm912, %v951, %v947
        %v954 = vsel %vm915, %v952, 0.0
        %955 = vadd.xlane.f32.xlu0 %v954
        %v956 = vpop.xlane.xlu0 %955
        %v958 = vlaneseq
        %v959 = vshrl.u32 %v958, 7
        %v960 = vsub.s32 0, %v959
        %v961 = vrot.slane %v956, %v960
        %v962 = vlaneseq
        %v963 = vshrl.u32 %v962, 7
        %v964 = vsub.s32 1, %v963
        %v965 = vrot.slane %v956, %v964
        %v968 = vrcp.pop %v961
        %v969 = vmul.f32 %v933, %v968
        %v970 = vrcp.pop %v965
        %v971 = vmul.f32 %v935, %v970
        %973 = vset.pattern.permute.xlu0 0
        %974 = vperm.xlu0 %973, %v969
        %v975 = vpop.permute.xlu0 %974
        %v976 = vlaneseq
        %v977 = vshrl.u32 %v976, 7
        %v978 = vsub.s32 %v903, %v977
        %v979 = vrot.slane %v975, %v978
        %vm980 = vcmask 64512
        %v981 = vsel %vm980, %v979, 0
        %983 = vmatprep.subr.mxu0 0.0
        %984 = vmatpush1.msra.mxu0 0.0
        %985 = vmatprep.subr.mxu0 0.0
        %986 = vmatpush1.msra.mxu0 0.0
        %987 = vmatprep.subr.mxu0 0.0
        %988 = vmatpush1.msra.mxu0 0.0
        %989 = vmatprep.subr.mxu0 0.0
        %990 = vmatpush1.msra.mxu0 0.0
        %991 = vmatprep.subr.mxu0 0.0
        %992 = vmatpush1.msra.mxu0 0.0
        %993 = vmatprep.subr.mxu0 0.0
        %994 = vmatpush1.msra.mxu0 0.0
        %995 = vmatprep.subr.mxu0 0.0
        %996 = vmatpush1.msra.mxu0 0.0
        %997 = vmatprep.subr.mxu0 0.0
        %998 = vmatpush1.msra.mxu0 0.0
        %999 = vmatprep.subr.mxu0 0.0
        %1000 = vmatpush1.msra.mxu0 0.0
        %1001 = vmatprep.subr.mxu0 0.0
        %1002 = vmatpush1.msra.mxu0 0.0
        %1003 = vmatprep.subr.mxu0 0.0
        %1004 = vmatpush1.msra.mxu0 0.0
        %1005 = vmatprep.subr.mxu0 0.0
        %1006 = vmatpush1.msra.mxu0 0.0
        %1007 = vmatprep.subr.mxu0 0.0
        %1008 = vmatpush1.msra.mxu0 0.0
        %1009 = vmatprep.subr.mxu0 0.0
        %1010 = vmatpush1.msra.mxu0 0.0
        %1011 = vmatprep.subr.mxu0 0.0
        %1012 = vmatpush1.msra.mxu0 0.0
        %1013 = vmatprep.subr.mxu0 0.0
        %1014 = vmatpush1.msra.mxu0 %v755
        %1015 = vmatprep.subr.mxu0 0.0
        %1016 = vmatpush2.msra.mxu0 0.0
        %1017 = vmatprep.subr.mxu0 0.0
        %1018 = vmatpush2.msra.mxu0 0.0
        %1019 = vmatprep.subr.mxu0 0.0
        %1020 = vmatpush2.msra.mxu0 0.0
        %1021 = vmatprep.subr.mxu0 0.0
        %1022 = vmatpush2.msra.mxu0 0.0
        %1023 = vmatprep.subr.mxu0 0.0
        %1024 = vmatpush2.msra.mxu0 0.0
        %1025 = vmatprep.subr.mxu0 0.0
        %1026 = vmatpush2.msra.mxu0 0.0
        %1027 = vmatprep.subr.mxu0 0.0
        %1028 = vmatpush2.msra.mxu0 0.0
        %1029 = vmatprep.subr.mxu0 0.0
        %1030 = vmatpush2.msra.mxu0 0.0
        %1031 = vmatprep.subr.mxu0 0.0
        %1032 = vmatpush2.msra.mxu0 0.0
        %1033 = vmatprep.subr.mxu0 0.0
        %1034 = vmatpush2.msra.mxu0 0.0
        %1035 = vmatprep.subr.mxu0 0.0
        %1036 = vmatpush2.msra.mxu0 0.0
        %1037 = vmatprep.subr.mxu0 0.0
        %1038 = vmatpush2.msra.mxu0 0.0
        %1039 = vmatprep.subr.mxu0 0.0
        %1040 = vmatpush2.msra.mxu0 0.0
        %1041 = vmatprep.subr.mxu0 0.0
        %1042 = vmatpush2.msra.mxu0 0.0
        %1043 = vmatprep.subr.mxu0 0.0
        %1044 = vmatpush2.msra.mxu0 0.0
        %1045 = vmatprep.subr.mxu0 0.0
        %1046 = vmatpush2.msra.mxu0 0.0
        %1047 = vmatprep.mubr.f32.mxu0 0.0
        %1048 = vmatmul.mubr.f32.gmra.mxu0 %v981
        %v1049 = vpop.f32.mrf.mxu0
        %v1050 = vadd.f32 0.0, %v1049
        %v1051 = vpop.f32.mrf.mxu0
        %1052 = vdwg.mxu0
        %1054 = vset.pattern.permute.xlu0 0
        %1055 = vperm.xlu0 %1054, %v971
        %v1056 = vpop.permute.xlu0 %1055
        %v1057 = vlaneseq
        %v1058 = vshrl.u32 %v1057, 7
        %v1059 = vsub.s32 %v903, %v1058
        %v1060 = vrot.slane %v1056, %v1059
        %v1061 = vsel %vm980, %v1060, 0
        %1063 = vmatprep.subr.mxu0 0.0
        %1064 = vmatpush1.msra.mxu0 0.0
        %1065 = vmatprep.subr.mxu0 0.0
        %1066 = vmatpush1.msra.mxu0 0.0
        %1067 = vmatprep.subr.mxu0 0.0
        %1068 = vmatpush1.msra.mxu0 0.0
        %1069 = vmatprep.subr.mxu0 0.0
        %1070 = vmatpush1.msra.mxu0 0.0
        %1071 = vmatprep.subr.mxu0 0.0
        %1072 = vmatpush1.msra.mxu0 0.0
        %1073 = vmatprep.subr.mxu0 0.0
        %1074 = vmatpush1.msra.mxu0 0.0
        %1075 = vmatprep.subr.mxu0 0.0
        %1076 = vmatpush1.msra.mxu0 0.0
        %1077 = vmatprep.subr.mxu0 0.0
        %1078 = vmatpush1.msra.mxu0 0.0
        %1079 = vmatprep.subr.mxu0 0.0
        %1080 = vmatpush1.msra.mxu0 0.0
        %1081 = vmatprep.subr.mxu0 0.0
        %1082 = vmatpush1.msra.mxu0 0.0
        %1083 = vmatprep.subr.mxu0 0.0
        %1084 = vmatpush1.msra.mxu0 0.0
        %1085 = vmatprep.subr.mxu0 0.0
        %1086 = vmatpush1.msra.mxu0 0.0
        %1087 = vmatprep.subr.mxu0 0.0
        %1088 = vmatpush1.msra.mxu0 0.0
        %1089 = vmatprep.subr.mxu0 0.0
        %1090 = vmatpush1.msra.mxu0 0.0
        %1091 = vmatprep.subr.mxu0 0.0
        %1092 = vmatpush1.msra.mxu0 0.0
        %1093 = vmatprep.subr.mxu0 0.0
        %1094 = vmatpush1.msra.mxu0 %v756
        %1095 = vmatprep.subr.mxu0 0.0
        %1096 = vmatpush2.msra.mxu0 0.0
        %1097 = vmatprep.subr.mxu0 0.0
        %1098 = vmatpush2.msra.mxu0 0.0
        %1099 = vmatprep.subr.mxu0 0.0
        %1100 = vmatpush2.msra.mxu0 0.0
        %1101 = vmatprep.subr.mxu0 0.0
        %1102 = vmatpush2.msra.mxu0 0.0
        %1103 = vmatprep.subr.mxu0 0.0
        %1104 = vmatpush2.msra.mxu0 0.0
        %1105 = vmatprep.subr.mxu0 0.0
        %1106 = vmatpush2.msra.mxu0 0.0
        %1107 = vmatprep.subr.mxu0 0.0
        %1108 = vmatpush2.msra.mxu0 0.0
        %1109 = vmatprep.subr.mxu0 0.0
        %1110 = vmatpush2.msra.mxu0 0.0
        %1111 = vmatprep.subr.mxu0 0.0
        %1112 = vmatpush2.msra.mxu0 0.0
        %1113 = vmatprep.subr.mxu0 0.0
        %1114 = vmatpush2.msra.mxu0 0.0
        %1115 = vmatprep.subr.mxu0 0.0
        %1116 = vmatpush2.msra.mxu0 0.0
        %1117 = vmatprep.subr.mxu0 0.0
        %1118 = vmatpush2.msra.mxu0 0.0
        %1119 = vmatprep.subr.mxu0 0.0
        %1120 = vmatpush2.msra.mxu0 0.0
        %1121 = vmatprep.subr.mxu0 0.0
        %1122 = vmatpush2.msra.mxu0 0.0
        %1123 = vmatprep.subr.mxu0 0.0
        %1124 = vmatpush2.msra.mxu0 0.0
        %1125 = vmatprep.subr.mxu0 0.0
        %1126 = vmatpush2.msra.mxu0 0.0
        %1127 = vmatprep.mubr.f32.mxu0 0.0
        %1128 = vmatmul.mubr.f32.gmra.mxu0 %v1061
        %v1129 = vpop.f32.mrf.mxu0
        %v1130 = vadd.f32 0.0, %v1129
        %v1131 = vpop.f32.mrf.mxu0
        %1132 = vdwg.mxu0
        %v1133 = vld [vmem:[%s9] sm:$0xff]
        %v1134 = vld [vmem:[%s9 + $0x8] sm:$0xff]
        %v1135 = vld [vmem:[%s9 + $0x10] sm:$0xff]
        %v1136 = vld [vmem:[%s9 + $0x18] sm:$0xff]
        %v1137 = vld [vmem:[%s10] sm:$0xff]
        %v1138 = vld [vmem:[%s10 + $0x8] sm:$0xff]
        %v1139 = vld [vmem:[%s10 + $0x10] sm:$0xff]
        %v1140 = vld [vmem:[%s10 + $0x18] sm:$0xff]
        %v1143 = vrot.slane %v1130, 7
        %v1144 = vsel %vm912, %v1143, %v1050
        %v1145 = vsel %vm681, %v1144, 0
        %1147 = vmatprep.subr.mxu0 0.0
        %1148 = vmatpush1.msra.mxu0 0.0
        %1149 = vmatprep.subr.mxu0 0.0
        %1150 = vmatpush1.msra.mxu0 0.0
        %1151 = vmatprep.subr.mxu0 0.0
        %1152 = vmatpush1.msra.mxu0 0.0
        %1153 = vmatprep.subr.mxu0 0.0
        %1154 = vmatpush1.msra.mxu0 0.0
        %1155 = vmatprep.subr.mxu0 0.0
        %1156 = vmatpush1.msra.mxu0 0.0
        %1157 = vmatprep.subr.mxu0 0.0
        %1158 = vmatpush1.msra.mxu0 0.0
        %1159 = vmatprep.subr.mxu0 0.0
        %1160 = vmatpush1.msra.mxu0 0.0
        %1161 = vmatprep.subr.mxu0 0.0
        %1162 = vmatpush1.msra.mxu0 0.0
        %1163 = vmatprep.subr.mxu0 0.0
        %1164 = vmatpush1.msra.mxu0 0.0
        %1165 = vmatprep.subr.mxu0 0.0
        %1166 = vmatpush1.msra.mxu0 0.0
        %1167 = vmatprep.subr.mxu0 0.0
        %1168 = vmatpush1.msra.mxu0 0.0
        %1169 = vmatprep.subr.mxu0 0.0
        %1170 = vmatpush1.msra.mxu0 0.0
        %1171 = vmatprep.subr.mxu0 0.0
        %1172 = vmatpush1.msra.mxu0 %v1140
        %1173 = vmatprep.subr.mxu0 0.0
        %1174 = vmatpush1.msra.mxu0 %v1139
        %1175 = vmatprep.subr.mxu0 0.0
        %1176 = vmatpush1.msra.mxu0 %v1138
        %1177 = vmatprep.subr.mxu0 0.0
        %1178 = vmatpush1.msra.mxu0 %v1137
        %1179 = vmatprep.subr.mxu0 0.0
        %1180 = vmatpush2.msra.mxu0 0.0
        %1181 = vmatprep.subr.mxu0 0.0
        %1182 = vmatpush2.msra.mxu0 0.0
        %1183 = vmatprep.subr.mxu0 0.0
        %1184 = vmatpush2.msra.mxu0 0.0
        %1185 = vmatprep.subr.mxu0 0.0
        %1186 = vmatpush2.msra.mxu0 0.0
        %1187 = vmatprep.subr.mxu0 0.0
        %1188 = vmatpush2.msra.mxu0 0.0
        %1189 = vmatprep.subr.mxu0 0.0
        %1190 = vmatpush2.msra.mxu0 0.0
        %1191 = vmatprep.subr.mxu0 0.0
        %1192 = vmatpush2.msra.mxu0 0.0
        %1193 = vmatprep.subr.mxu0 0.0
        %1194 = vmatpush2.msra.mxu0 0.0
        %1195 = vmatprep.subr.mxu0 0.0
        %1196 = vmatpush2.msra.mxu0 0.0
        %1197 = vmatprep.subr.mxu0 0.0
        %1198 = vmatpush2.msra.mxu0 0.0
        %1199 = vmatprep.subr.mxu0 0.0
        %1200 = vmatpush2.msra.mxu0 0.0
        %1201 = vmatprep.subr.mxu0 0.0
        %1202 = vmatpush2.msra.mxu0 0.0
        %1203 = vmatprep.subr.mxu0 0.0
        %1204 = vmatpush2.msra.mxu0 0.0
        %1205 = vmatprep.subr.mxu0 0.0
        %1206 = vmatpush2.msra.mxu0 0.0
        %1207 = vmatprep.subr.mxu0 0.0
        %1208 = vmatpush2.msra.mxu0 0.0
        %1209 = vmatprep.subr.mxu0 0.0
        %1210 = vmatpush2.msra.mxu0 0.0
        %1211 = vmatprep.mubr.f32.mxu0 0.0
        %1212 = vmatmul.mubr.f32.gmra.mxu0 %v1145
        %v1213 = vpop.f32.mrf.mxu0
        %v1214 = vadd.f32 0.0, %v1213
        %v1215 = vpop.f32.mrf.mxu0
        %1216 = vdwg.mxu0
        %v1218 = vsel %vm681, %v752, 0
        %1220 = vmatprep.subr.mxu0 0.0
        %1221 = vmatpush1.msra.mxu0 0.0
        %1222 = vmatprep.subr.mxu0 0.0
        %1223 = vmatpush1.msra.mxu0 0.0
        %1224 = vmatprep.subr.mxu0 0.0
        %1225 = vmatpush1.msra.mxu0 0.0
        %1226 = vmatprep.subr.mxu0 0.0
        %1227 = vmatpush1.msra.mxu0 0.0
        %1228 = vmatprep.subr.mxu0 0.0
        %1229 = vmatpush1.msra.mxu0 0.0
        %1230 = vmatprep.subr.mxu0 0.0
        %1231 = vmatpush1.msra.mxu0 0.0
        %1232 = vmatprep.subr.mxu0 0.0
        %1233 = vmatpush1.msra.mxu0 0.0
        %1234 = vmatprep.subr.mxu0 0.0
        %1235 = vmatpush1.msra.mxu0 0.0
        %1236 = vmatprep.subr.mxu0 0.0
        %1237 = vmatpush1.msra.mxu0 0.0
        %1238 = vmatprep.subr.mxu0 0.0
        %1239 = vmatpush1.msra.mxu0 0.0
        %1240 = vmatprep.subr.mxu0 0.0
        %1241 = vmatpush1.msra.mxu0 0.0
        %1242 = vmatprep.subr.mxu0 0.0
        %1243 = vmatpush1.msra.mxu0 0.0
        %1244 = vmatprep.subr.mxu0 0.0
        %1245 = vmatpush1.msra.mxu0 %v1136
        %1246 = vmatprep.subr.mxu0 0.0
        %1247 = vmatpush1.msra.mxu0 %v1135
        %1248 = vmatprep.subr.mxu0 0.0
        %1249 = vmatpush1.msra.mxu0 %v1134
        %1250 = vmatprep.subr.mxu0 0.0
        %1251 = vmatpush1.msra.mxu0 %v1133
        %1252 = vmatprep.subr.mxu0 0.0
        %1253 = vmatpush2.msra.mxu0 0.0
        %1254 = vmatprep.subr.mxu0 0.0
        %1255 = vmatpush2.msra.mxu0 0.0
        %1256 = vmatprep.subr.mxu0 0.0
        %1257 = vmatpush2.msra.mxu0 0.0
        %1258 = vmatprep.subr.mxu0 0.0
        %1259 = vmatpush2.msra.mxu0 0.0
        %1260 = vmatprep.subr.mxu0 0.0
        %1261 = vmatpush2.msra.mxu0 0.0
        %1262 = vmatprep.subr.mxu0 0.0
        %1263 = vmatpush2.msra.mxu0 0.0
        %1264 = vmatprep.subr.mxu0 0.0
        %1265 = vmatpush2.msra.mxu0 0.0
        %1266 = vmatprep.subr.mxu0 0.0
        %1267 = vmatpush2.msra.mxu0 0.0
        %1268 = vmatprep.subr.mxu0 0.0
        %1269 = vmatpush2.msra.mxu0 0.0
        %1270 = vmatprep.subr.mxu0 0.0
        %1271 = vmatpush2.msra.mxu0 0.0
        %1272 = vmatprep.subr.mxu0 0.0
        %1273 = vmatpush2.msra.mxu0 0.0
        %1274 = vmatprep.subr.mxu0 0.0
        %1275 = vmatpush2.msra.mxu0 0.0
        %1276 = vmatprep.subr.mxu0 0.0
        %1277 = vmatpush2.msra.mxu0 0.0
        %1278 = vmatprep.subr.mxu0 0.0
        %1279 = vmatpush2.msra.mxu0 0.0
        %1280 = vmatprep.subr.mxu0 0.0
        %1281 = vmatpush2.msra.mxu0 0.0
        %1282 = vmatprep.subr.mxu0 0.0
        %1283 = vmatpush2.msra.mxu0 0.0
        %1284 = vmatprep.mubr.f32.mxu0 0.0
        %1285 = vmatmul.mubr.f32.gmra.mxu0 %v1218
        %v1286 = vpop.f32.mrf.mxu0
        %v1287 = vadd.f32 %v1214, %v1286
        %v1288 = vpop.f32.mrf.mxu0
        %1289 = vdwg.mxu0
        %v1290 = vld [vmem:[%s12] sm:$0x1]
        %v1292 = vlaneseq
        %v1293 = vshrl.u32 %v1292, 7
        %v1294 = vsub.s32 0, %v1293
        %v1295 = vrot.slane %v1290, %v1294
        %v1297 = vadd.f32 %v1287, %v1295
        %v1298 = vld [vmem:[%s11] sm:$0xff]
        %v1299 = vld [vmem:[%s11 + $0x8] sm:$0xff]
        %v1300 = vld [vmem:[%s11 + $0x10] sm:$0xff]
        %v1301 = vld [vmem:[%s11 + $0x18] sm:$0xff]
        %v1302 = vld [vmem:[%s13] sm:$0x1]
        %v1304 = vlaneseq
        %v1305 = vshrl.u32 %v1304, 7
        %v1306 = vsub.s32 0, %v1305
        %v1307 = vrot.slane %v1302, %v1306
        %1309 = vmatprep.subr.mxu0 0.0
        %1310 = vmatpush1.msra.mxu0 0.0
        %1311 = vmatprep.subr.mxu0 0.0
        %1312 = vmatpush1.msra.mxu0 0.0
        %1313 = vmatprep.subr.mxu0 0.0
        %1314 = vmatpush1.msra.mxu0 0.0
        %1315 = vmatprep.subr.mxu0 0.0
        %1316 = vmatpush1.msra.mxu0 0.0
        %1317 = vmatprep.subr.mxu0 0.0
        %1318 = vmatpush1.msra.mxu0 0.0
        %1319 = vmatprep.subr.mxu0 0.0
        %1320 = vmatpush1.msra.mxu0 0.0
        %1321 = vmatprep.subr.mxu0 0.0
        %1322 = vmatpush1.msra.mxu0 0.0
        %1323 = vmatprep.subr.mxu0 0.0
        %1324 = vmatpush1.msra.mxu0 0.0
        %1325 = vmatprep.subr.mxu0 0.0
        %1326 = vmatpush1.msra.mxu0 0.0
        %1327 = vmatprep.subr.mxu0 0.0
        %1328 = vmatpush1.msra.mxu0 0.0
        %1329 = vmatprep.subr.mxu0 0.0
        %1330 = vmatpush1.msra.mxu0 0.0
        %1331 = vmatprep.subr.mxu0 0.0
        %1332 = vmatpush1.msra.mxu0 0.0
        %1333 = vmatprep.subr.mxu0 0.0
        %1334 = vmatpush1.msra.mxu0 %v1301
        %1335 = vmatprep.subr.mxu0 0.0
        %1336 = vmatpush1.msra.mxu0 %v1300
        %1337 = vmatprep.subr.mxu0 0.0
        %1338 = vmatpush1.msra.mxu0 %v1299
        %1339 = vmatprep.subr.mxu0 0.0
        %1340 = vmatpush1.msra.mxu0 %v1298
        %1341 = vmatprep.subr.mxu0 0.0
        %1342 = vmatpush2.msra.mxu0 0.0
        %1343 = vmatprep.subr.mxu0 0.0
        %1344 = vmatpush2.msra.mxu0 0.0
        %1345 = vmatprep.subr.mxu0 0.0
        %1346 = vmatpush2.msra.mxu0 0.0
        %1347 = vmatprep.subr.mxu0 0.0
        %1348 = vmatpush2.msra.mxu0 0.0
        %1349 = vmatprep.subr.mxu0 0.0
        %1350 = vmatpush2.msra.mxu0 0.0
        %1351 = vmatprep.subr.mxu0 0.0
        %1352 = vmatpush2.msra.mxu0 0.0
        %1353 = vmatprep.subr.mxu0 0.0
        %1354 = vmatpush2.msra.mxu0 0.0
        %1355 = vmatprep.subr.mxu0 0.0
        %1356 = vmatpush2.msra.mxu0 0.0
        %1357 = vmatprep.subr.mxu0 0.0
        %1358 = vmatpush2.msra.mxu0 0.0
        %1359 = vmatprep.subr.mxu0 0.0
        %1360 = vmatpush2.msra.mxu0 0.0
        %1361 = vmatprep.subr.mxu0 0.0
        %1362 = vmatpush2.msra.mxu0 0.0
        %1363 = vmatprep.subr.mxu0 0.0
        %1364 = vmatpush2.msra.mxu0 0.0
        %1365 = vmatprep.subr.mxu0 0.0
        %1366 = vmatpush2.msra.mxu0 0.0
        %1367 = vmatprep.subr.mxu0 0.0
        %1368 = vmatpush2.msra.mxu0 0.0
        %1369 = vmatprep.subr.mxu0 0.0
        %1370 = vmatpush2.msra.mxu0 0.0
        %1371 = vmatprep.subr.mxu0 0.0
        %1372 = vmatpush2.msra.mxu0 0.0
        %1373 = vmatprep.mubr.f32.mxu0 0.0
        %1374 = vmatmul.mubr.f32.gmra.mxu0 %v771
        %v1375 = vpop.f32.mrf.mxu0
        %v1376 = vadd.f32 %v1307, %v1375
        %v1377 = vpop.f32.mrf.mxu0
        %1378 = vdwg.mxu0
        %v1379 = vadd.f32 %v1297, %v1376
        %v1380 = vxor.u32 %v1379, 2147483648
        %v1381 = vmul.f32 %v1380, 1.442695
        %v1382 = vpow.pop %v1381
        %v1383 = vadd.f32 %v1382, 1.0
        %v1384 = vrcp.pop %v1383
        %v1385 = vmul.f32 1.0, %v1384
        %1387 = vrot.lane.b32.xlu0 %v1376, 64
        %v1388 = vpop.permute.xlu0 %1387
        %v1390 = vmul.f32 %v1385, %v1388
        %1392 = vrot.lane.b32.xlu0 %v1390, 64
        %v1393 = vpop.permute.xlu0 %1392
        %v1395 = vadd.f32 %v1297, %v1393
        %v1396 = vtanh.pop %v1395
        %v1397 = vsub.f32 1.0, %v1385
        %1399 = vrot.lane.b32.xlu0 %v1396, 96
        %v1400 = vpop.permute.xlu0 %1399
        %v1402 = vmul.f32 %v1397, %v1400
        %1403 = vrot.lane.b32.xlu0 %v675, 32
        %v1404 = vpop.permute.xlu0 %1403
        %v1406 = vmul.f32 %v1385, %v1404
        %v1407 = vadd.f32 %v1402, %v1406
        %v1408 = vld [vmem:[%s14] sm:$0xff]
        %v1409 = vld [vmem:[%s14 + $0x8] sm:$0xff]
        %v1410 = vld [vmem:[%s14 + $0x10] sm:$0xff]
        %v1411 = vld [vmem:[%s14 + $0x18] sm:$0xff]
        %v1412 = vld [vmem:[%s15] sm:$0x1]
        %v1414 = vlaneseq
        %v1415 = vshrl.u32 %v1414, 7
        %v1416 = vsub.s32 0, %v1415
        %v1417 = vrot.slane %v1412, %v1416
        %1420 = vrot.lane.b32.xlu0 %v1407, 96
        %v1421 = vpop.permute.xlu0 %1420
        %v1422 = vsel %vm681, %v1421, 0
        %1424 = vmatprep.subr.mxu0 0.0
        %1425 = vmatpush1.msra.mxu0 0.0
        %1426 = vmatprep.subr.mxu0 0.0
        %1427 = vmatpush1.msra.mxu0 0.0
        %1428 = vmatprep.subr.mxu0 0.0
        %1429 = vmatpush1.msra.mxu0 0.0
        %1430 = vmatprep.subr.mxu0 0.0
        %1431 = vmatpush1.msra.mxu0 0.0
        %1432 = vmatprep.subr.mxu0 0.0
        %1433 = vmatpush1.msra.mxu0 0.0
        %1434 = vmatprep.subr.mxu0 0.0
        %1435 = vmatpush1.msra.mxu0 0.0
        %1436 = vmatprep.subr.mxu0 0.0
        %1437 = vmatpush1.msra.mxu0 0.0
        %1438 = vmatprep.subr.mxu0 0.0
        %1439 = vmatpush1.msra.mxu0 0.0
        %1440 = vmatprep.subr.mxu0 0.0
        %1441 = vmatpush1.msra.mxu0 0.0
        %1442 = vmatprep.subr.mxu0 0.0
        %1443 = vmatpush1.msra.mxu0 0.0
        %1444 = vmatprep.subr.mxu0 0.0
        %1445 = vmatpush1.msra.mxu0 0.0
        %1446 = vmatprep.subr.mxu0 0.0
        %1447 = vmatpush1.msra.mxu0 0.0
        %1448 = vmatprep.subr.mxu0 0.0
        %1449 = vmatpush1.msra.mxu0 %v1411
        %1450 = vmatprep.subr.mxu0 0.0
        %1451 = vmatpush1.msra.mxu0 %v1410
        %1452 = vmatprep.subr.mxu0 0.0
        %1453 = vmatpush1.msra.mxu0 %v1409
        %1454 = vmatprep.subr.mxu0 0.0
        %1455 = vmatpush1.msra.mxu0 %v1408
        %1456 = vmatprep.subr.mxu0 0.0
        %1457 = vmatpush2.msra.mxu0 0.0
        %1458 = vmatprep.subr.mxu0 0.0
        %1459 = vmatpush2.msra.mxu0 0.0
        %1460 = vmatprep.subr.mxu0 0.0
        %1461 = vmatpush2.msra.mxu0 0.0
        %1462 = vmatprep.subr.mxu0 0.0
        %1463 = vmatpush2.msra.mxu0 0.0
        %1464 = vmatprep.subr.mxu0 0.0
        %1465 = vmatpush2.msra.mxu0 0.0
        %1466 = vmatprep.subr.mxu0 0.0
        %1467 = vmatpush2.msra.mxu0 0.0
        %1468 = vmatprep.subr.mxu0 0.0
        %1469 = vmatpush2.msra.mxu0 0.0
        %1470 = vmatprep.subr.mxu0 0.0
        %1471 = vmatpush2.msra.mxu0 0.0
        %1472 = vmatprep.subr.mxu0 0.0
        %1473 = vmatpush2.msra.mxu0 0.0
        %1474 = vmatprep.subr.mxu0 0.0
        %1475 = vmatpush2.msra.mxu0 0.0
        %1476 = vmatprep.subr.mxu0 0.0
        %1477 = vmatpush2.msra.mxu0 0.0
        %1478 = vmatprep.subr.mxu0 0.0
        %1479 = vmatpush2.msra.mxu0 0.0
        %1480 = vmatprep.subr.mxu0 0.0
        %1481 = vmatpush2.msra.mxu0 0.0
        %1482 = vmatprep.subr.mxu0 0.0
        %1483 = vmatpush2.msra.mxu0 0.0
        %1484 = vmatprep.subr.mxu0 0.0
        %1485 = vmatpush2.msra.mxu0 0.0
        %1486 = vmatprep.subr.mxu0 0.0
        %1487 = vmatpush2.msra.mxu0 0.0
        %1488 = vmatprep.mubr.f32.mxu0 0.0
        %1489 = vmatmul.mubr.f32.gmra.mxu0 %v1422
        %v1490 = vpop.f32.mrf.mxu0
        %v1491 = vadd.f32 %v1417, %v1490
        %v1492 = vpop.f32.mrf.mxu0
        %1493 = vdwg.mxu0
        %vm1494 = vcmask 254976
        %1495 = vst.msk [vmem:[%s564] sm:$0x3] %vm1494, %v1491
        %v1496 = vsel %vm912, %v1060, %v979
        %1498 = vst.msk [vmem:[%s558] sm:$0x3] %vm915, %v1496
        %1500 = vst.msk [vmem:[#allocation2] sm:$0x3] %vm1494, %v1421
        %v1501 = vsel %vm1494, %v1491, -inf
        %1502 = vmax.xlane.f32.xlu0 %v1501
        %v1503 = vpop.xlane.xlu0 %1502
        %vm1504 = vcmp.ge.f32.partialorder %v1491, %v1503
        %v1505 = vsel %vm1504, %v903, 32
        %v1506 = vsel %vm1494, %v1505, 2147483647
        %v1507 = vand.u32 %v1506, 65535
        %v1508 = vshra.s32 %v1506, 16
        %v1509 = vcvt.s32.f32 %v1507
        %v1510 = vcvt.s32.f32 %v1508
        %1511 = vmin.xlane.f32.xlu0 %v1510
        %v1512 = vpop.xlane.xlu0 %1511
        %vm1513 = vcmp.eq.f32.partialorder %v1510, %v1512
        %v1514 = vsel %vm1513, %v1509, inf
        %1515 = vmin.xlane.f32.xlu0 %v1514
        %v1516 = vpop.xlane.xlu0 %1515
        %v1517 = vcvt.f32.s32 %v1516
        %v1518 = vcvt.f32.s32 %v1512
        %v1519 = vshll.u32 %v1518, 16
        %v1520 = vadd.s32 %v1519, %v1517
        %vm1521 = vcmp.eq.s32.totalorder %v903, %v1520
        %v1522 = vsel %vm1521, 1, 0
        %v1523 = vcvt.s32.f32 %v1522
        %1524 = vst.msk [vmem:[#allocation3] sm:$0x3] %vm1494, %v1523
        %p1525 = scmp.eq.s32.totalorder %s36, 5
        // Predicated region
        $region89: #{_forward_impl.3} parent=83 // pred_check
          %p1526 = pneg %p1525
        $region90: #{_forward_impl.3} parent=83 // pred_check_branch
          %1528 = sbr.rel (%p1526) target = $region92
        $region91: #{_forward_impl.3} parent=83 // pred_region
          %1529 = vst.msk [vmem:[#allocation8] sm:$0x3] %vm1494, %v1421
        $region92: #{_forward_impl.3} parent=83 // pred_fallthru
          _
        %p1530 = scmp.lt.s32.totalorder %s36, 5
        %s1531 = scalar_select %p1530, %s36, 5
        %s1532 = smul.addr %s1531, 2
        %s1533 = scalar_lea.vmem %s16, %s1532
        %s1534 = sand.u32 %s406, 1
        %s1535 = scalar_lea.sflag [#allocation7], %s1534
        %s1536 = sand.u32 %s406, 1
        %s1537 = smul.addr %s1536, 2
        %s1538 = scalar_lea.vmem [#allocation6], %s1537
        // Predicated region
        $region93: #{_forward_impl.3} parent=83 // pred_check
          %p1539 = pneg %p390
        $region94: #{_forward_impl.3} parent=83 // pred_check_branch
          %1541 = sbr.rel (%p1539) target = $region96
        $region95: #{_forward_impl.3} parent=83 // pred_region
          _
        $region96: #{_forward_impl.3} parent=83 // pred_fallthru
          _
        // Predicated region
        $region97: #{_forward_impl.3} parent=83 // pred_check
          %p1542 = pneg %p416
        $region98: #{_forward_impl.3} parent=83 // pred_check_branch
          %1544 = sbr.rel (%p1542) target = $region100
        $region99: #{_forward_impl.3} parent=83 // pred_region
          %s1546 = ssub.s32 32, 32
          %1547 = vsyncadd %s1535, %s1546
          %s1548 = smul.addr %s36, 32
          %s1549 = scalar_lea.hbm %s17, %s1548
          %s1551 = sshll.u32 %s1538, 4
          %s1552 = int_to_ptr.vmem [resolvable:$true] %s1551
          %1554 = dma.vmem_to_hbm [thread:$0]  %s1552, 32, %s1549, %s1535
        $region100: #{_forward_impl.3} parent=83 // pred_fallthru
          _
        // Predicated region
        $region101: #{_forward_impl.3} parent=83 // pred_check
          %p1555 = pneg %p437
        $region102: #{_forward_impl.3} parent=83 // pred_check_branch
          %1557 = sbr.rel (%p1555) target = $region104
        $region103: #{_forward_impl.3} parent=83 // pred_region
          %s1559 = ssub.s32 32, 32
          %1560 = vsyncadd [#allocation9], %s1559
          %s1562 = sshll.u32 [#allocation8], 4
          %s1563 = int_to_ptr.vmem [resolvable:$true] %s1562
          %1565 = dma.vmem_to_hbm [thread:$0]  %s1563, 32, %s18, [#allocation9]
        $region104: #{_forward_impl.3} parent=83 // pred_fallthru
          _
        // Predicated region
        $region105: #{_forward_impl.3} parent=83 // pred_check
          %p1566 = pneg %p437
        $region106: #{_forward_impl.3} parent=83 // pred_check_branch
          %1568 = sbr.rel (%p1566) target = $region108
        $region107: #{_forward_impl.3} parent=83 // pred_region
          %1569 = dma.done [#allocation9], 32
        $region108: #{_forward_impl.3} parent=83 // pred_fallthru
          _
      $region84: #{_forward_impl.3} parent=5 // pred_fallthru
        _
      %p1570 = scmp.le.s32.totalorder 2, %s31
      // Predicated region
      $region109: #{_forward_impl.3} parent=5 // pred_check
        %p1571 = pneg %p1570
      $region110: #{_forward_impl.3} parent=5 // pred_check_branch
        %1573 = sbr.rel (%p1571) target = $region112
      $region111: #{_forward_impl.3} parent=5 // pred_region
        %s1574 = ssub.s32 %s31, 2
        // Predicated region
        $region113: #{_forward_impl.3} parent=111 // pred_check
          %p1575 = pneg %p396
        $region114: #{_forward_impl.3} parent=111 // pred_check_branch
          %1577 = sbr.rel (%p1575) target = $region116
        $region115: #{_forward_impl.3} parent=111 // pred_region
          %p1578 = scmp.lt.s32.totalorder %s37, 5
          %s1579 = scalar_select %p1578, %s37, 5
          %s1580 = smul.addr %s1579, 2
          %s1581 = scalar_lea.vmem %s16, %s1580
        $region116: #{_forward_impl.3} parent=111 // pred_fallthru
          _
        // Predicated region
        $region117: #{_forward_impl.3} parent=111 // pred_check
          %p1582 = pneg %p422
        $region118: #{_forward_impl.3} parent=111 // pred_check_branch
          %1584 = sbr.rel (%p1582) target = $region120
        $region119: #{_forward_impl.3} parent=111 // pred_region
          %s1585 = sand.u32 %s407, 1
          %s1586 = scalar_lea.sflag [#allocation7], %s1585
          %s1587 = sand.u32 %s407, 1
          %s1588 = smul.addr %s1587, 2
          %s1589 = scalar_lea.vmem [#allocation6], %s1588
          %1590 = dma.done %s1586, 32
        $region120: #{_forward_impl.3} parent=111 // pred_fallthru
          _
      $region112: #{_forward_impl.3} parent=5 // pred_fallthru
        _
    $region6: #{_forward_impl.3} parent=1 // loop_footer
      %s35 = sadd.s32 1, %s31
    $region7: #{_forward_impl.3} parent=1 // loop_footer_branch
      %30 = sbr.rel target = $region3
    $region8: #{_forward_impl.3} parent=1 // loop_exit
      _
    %1591 = vsyncpa [#allocation7], 1
    %s1592 = scalar_lea.sflag [#allocation7], 1
    %1593 = vsyncpa %s1592, 1
    %1594 = vsyncpa [#allocation9], 1

</llo_original>
